<compile_context>
chip_gen: v7x
topology: tpu7x:2x2x1
jax: 0.10.0
libtpu: 0.0.40
codegen_flags: <defaults>
</compile_context>

<pallas_src>
import functools

import numpy as np
import jax
import jax.numpy as jnp
from jax.experimental import pallas as pl
from jax.experimental.pallas import tpu as pltpu

# ----------------------------- hyper-parameters ------------------------------
BATCH = 2                     # utterances per call (grid axis)
N_WAVE = 2048                 # raw audio samples per utterance
CONV_K = 16                   # feature-extractor conv kernel == stride
T_FRAMES = N_WAVE // CONV_K   # 128 frames
D_CONV = 32                   # conv feature dim
D_MODEL = 32                  # transformer hidden dim
N_HEADS = 2
D_HEAD = D_MODEL // N_HEADS   # 16
D_FF = 64
N_LAYERS = 2
SEGMENTATION_LAYER = 2        # index into hidden_states (0 = embeddings)
SEG_LEN = 8                   # frames per (uniform) segment
N_SEGMENTS = T_FRAMES // SEG_LEN   # 16
N_CLUSTERS = 16               # quantizer1 codebook size
LN_EPS = 1e-5
FRAME_SEC = 0.02              # 50 Hz frame rate -> seconds

# ------------------------- packed parameter slab layout ----------------------
# All weights stored transposed (out_dim, in_dim); all bias / LN vectors
# stored pre-broadcast to the full 128 lanes. Row offsets are multiples of 8.
LAYER_W_ROWS = 3 * D_MODEL + D_MODEL + D_FF + D_MODEL        # 224
OFF_CONV_W = 0                                               # (D_CONV, CONV_K)
OFF_FP_W = OFF_CONV_W + D_CONV                               # (D_MODEL, D_CONV)
OFF_LAYER_W = OFF_FP_W + D_MODEL                             # per-layer weights
OFF_Q1 = OFF_LAYER_W + N_LAYERS * LAYER_W_ROWS               # (K, D_MODEL)
OFF_POOL = OFF_Q1 + N_CLUSTERS                               # (S, T)
OFF_BIAS = OFF_POOL + N_SEGMENTS                             # pre-broadcast vectors

B_CONV_B = OFF_BIAS
B_FP_LN_G = B_CONV_B + D_CONV
B_FP_LN_B = B_FP_LN_G + D_CONV
B_FP_B = B_FP_LN_B + D_CONV
B_ENC_LN_G = B_FP_B + D_MODEL
B_ENC_LN_B = B_ENC_LN_G + D_MODEL
OFF_LAYER_B = B_ENC_LN_B + D_MODEL

LB_QKV = 0                       # (3*D_MODEL,)
LB_BO = LB_QKV + 3 * D_MODEL     # (D_MODEL,)
LB_LN1G = LB_BO + D_MODEL
LB_LN1B = LB_LN1G + D_MODEL
LB_FC1B = LB_LN1B + D_MODEL      # (D_FF,)
LB_FC2B = LB_FC1B + D_FF
LB_LN2G = LB_FC2B + D_MODEL
LB_LN2B = LB_LN2G + D_MODEL
LAYER_B_ROWS = LB_LN2B + D_MODEL                             # 352

SLAB_ROWS = OFF_LAYER_B + N_LAYERS * LAYER_B_ROWS            # 1440
SLAB_LANES = 128


# ------------------------- fully fused forward kernel ------------------------
def _fused_hubert_kernel(patches_ref, slab_ref, hs_ref, sim_ref, idx_ref):
    f32 = jnp.float32

    def vec(row, dim):
        # pre-broadcast (dim, 128) parameter vector: plain full-lane row slice
        return slab_ref[row:row + dim, :]

    def layernorm_t(x, g_row, b_row):
        # LayerNorm over the feature axis (sublanes) of a (D, T) activation.
        d = x.shape[0]
        mean = jnp.mean(x, axis=0, keepdims=True)
        xc = x - mean
        var = jnp.mean(xc * xc, axis=0, keepdims=True)
        return xc * jax.lax.rsqrt(var + LN_EPS) * vec(g_row, d) + vec(b_row, d)

    # ---- Wav2Vec2Processor: zero-mean / unit-variance, folded into the conv:
    #      conv((x - m) * s) = s * conv(x) + (b - s * m * rowsum(W))        ----
    x = patches_ref[...]                                           # (T, CONV_K)
    m = jnp.mean(jnp.mean(x, axis=-1, keepdims=True), axis=0, keepdims=True)
    ex2 = jnp.mean(jnp.mean(x * x, axis=-1, keepdims=True), axis=0, keepdims=True)
    inv_std = jax.lax.rsqrt(ex2 - m * m + 1e-7)                    # (1, 1)

    # ---- feature extractor: Conv1d(kernel=stride=CONV_K) as trans_b matmul
    #      straight into transposed (D_CONV, T) layout + GELU ----
    # TODO(synk): real HuBERT uses a 7-layer conv stack (group norm, stride 320)
    # and exact erf GELU; a single stride-16 conv + tanh GELU stands in here.
    conv_w_t = slab_ref[OFF_CONV_W:OFF_CONV_W + D_CONV, :CONV_K]   # (32, 16)
    raw = jax.lax.dot_general(conv_w_t, x, (((1,), (1,)), ((), ())),
                              preferred_element_type=f32)          # (32, 128)
    wsum = jnp.sum(conv_w_t, axis=1, keepdims=True)                # (32, 1)
    feat = inv_std * raw + (vec(B_CONV_B, D_CONV) - (inv_std * m) * wsum)
    feat = jax.nn.gelu(feat, approximate=True)

    # ---- feature projection: LayerNorm + Linear ----
    h = layernorm_t(feat, B_FP_LN_G, B_FP_LN_B)
    fp_w_t = slab_ref[OFF_FP_W:OFF_FP_W + D_MODEL, :D_CONV]        # (32, 32)
    h = jnp.dot(fp_w_t, h, preferred_element_type=f32) + vec(B_FP_B, D_MODEL)
    # TODO(synk): HuBERT positional convolution embedding omitted.
    h = layernorm_t(h, B_ENC_LN_G, B_ENC_LN_B)

    hidden = [h]                                                   # (D, T) each
    scale = 1.0 / float(D_HEAD) ** 0.5
    for layer in range(N_LAYERS):
        wbase = OFF_LAYER_W + layer * LAYER_W_ROWS
        bbase = OFF_LAYER_B + layer * LAYER_B_ROWS

        # ---- fused QKV projection: one (3D, D) x (D, T) matmul ----
        wqkv = slab_ref[wbase:wbase + 3 * D_MODEL, :D_MODEL]       # (96, 32)
        qkv = (jnp.dot(wqkv, h, preferred_element_type=f32)
               + vec(bbase + LB_QKV, 3 * D_MODEL))                 # (96, 128)

        heads = []
        for hh in range(N_HEADS):
            q = qkv[hh * D_HEAD:(hh + 1) * D_HEAD]                 # (dh, T)
            k = qkv[D_MODEL + hh * D_HEAD:D_MODEL + (hh + 1) * D_HEAD]
            v = qkv[2 * D_MODEL + hh * D_HEAD:2 * D_MODEL + (hh + 1) * D_HEAD]
            s = jax.lax.dot_general(q, k, (((0,), (0,)), ((), ())),
                                    preferred_element_type=f32) * scale  # (T, T)
            s = s - jnp.max(s, axis=-1, keepdims=True)
            p = jnp.exp(s)
            p = p * pl.reciprocal(jnp.sum(p, axis=-1, keepdims=True), approx=True)
            heads.append(jax.lax.dot_general(v, p, (((1,), (1,)), ((), ())),
                                             preferred_element_type=f32))  # (dh, T)
        o_all = jnp.concatenate(heads, axis=0)                     # (D, T)

        # ---- single output projection over concatenated heads ----
        wo = slab_ref[wbase + 3 * D_MODEL:wbase + 4 * D_MODEL, :D_MODEL]
        attn = (jnp.dot(wo, o_all, preferred_element_type=f32)
                + vec(bbase + LB_BO, D_MODEL))
        h = layernorm_t(h + attn, bbase + LB_LN1G, bbase + LB_LN1B)

        # ---- feed-forward ----
        fc1 = slab_ref[wbase + 4 * D_MODEL:wbase + 4 * D_MODEL + D_FF, :D_MODEL]
        ff = (jnp.dot(fc1, h, preferred_element_type=f32)
              + vec(bbase + LB_FC1B, D_FF))                        # (64, 128)
        ff = jax.nn.gelu(ff, approximate=True)
        fc2 = slab_ref[wbase + 4 * D_MODEL + D_FF:wbase + LAYER_W_ROWS, :D_FF]
        ff = (jnp.dot(fc2, ff, preferred_element_type=f32)
              + vec(bbase + LB_FC2B, D_MODEL))
        h = layernorm_t(h + ff, bbase + LB_LN2G, bbase + LB_LN2B)
        hidden.append(h)

    hs = hidden[SEGMENTATION_LAYER]                                # (D, T)
    hs_ref[...] = hs                                               # lane-dense store

    # ---- frame_similarity = hs.T @ hs  (== hidden_states @ hidden_states.T) ----
    sim_ref[...] = jax.lax.dot_general(hs, hs, (((0,), (0,)), ((), ())),
                                       preferred_element_type=f32)  # (T, T)

    # ---- uniform segment mean-pooling via precomputed pool matrix ----
    # TODO(synk): mincut_torch is a sequential normalized-cut DP with a
    # data-dependent number of segments; replaced by uniform segmentation.
    pool = slab_ref[OFF_POOL:OFF_POOL + N_SEGMENTS, :T_FRAMES]     # (S, T)
    seg = jax.lax.dot_general(pool, hs, (((1,), (1,)), ((), ())),
                              preferred_element_type=f32)          # (S, D)

    # ---- units = cdist(seg, quantizer1).argmin(1); the |seg|^2 term does not
    #      affect the argmin so score = |q_k|^2 - 2 q_k.seg_s, shaped (K, S) ----
    q1 = slab_ref[OFF_Q1:OFF_Q1 + N_CLUSTERS, :D_MODEL]            # (K, D)
    qs = jax.lax.dot_general(q1, seg, (((1,), (1,)), ((), ())),
                             preferred_element_type=f32)           # (K, S)
    score = jnp.sum(q1 * q1, axis=1, keepdims=True) - 2.0 * qs     # (K, S)
    min_v = jnp.min(score, axis=0, keepdims=True)                  # (1, S)
    rows = jax.lax.broadcasted_iota(jnp.int32, score.shape, 0)
    # first occurrence of the minimum, like torch.argmin; lane-friendly (1, S)
    idx_ref[...] = jnp.min(jnp.where(score == min_v, rows, jnp.int32(N_CLUSTERS)),
                           axis=0, keepdims=True)


# --------------------------------- wrapper ------------------------------------
def hubert_forward(input_values, params):
    b = input_values.shape[0]
    # im2col view of the waveform: frames on rows, kernel taps on lanes.
    patches = input_values.astype(jnp.float32).reshape(b, T_FRAMES, CONV_K)

    hs_t, frame_similarity, idx = pl.pallas_call(
        _fused_hubert_kernel,
        grid=(b,),
        in_specs=[
            pl.BlockSpec((None, T_FRAMES, CONV_K), lambda i: (i, 0, 0)),
            pl.BlockSpec((SLAB_ROWS, SLAB_LANES), lambda i: (0, 0)),  # resident
        ],
        out_specs=(
            pl.BlockSpec((None, D_MODEL, T_FRAMES), lambda i: (i, 0, 0)),
            pl.BlockSpec((None, T_FRAMES, T_FRAMES), lambda i: (i, 0, 0)),
            pl.BlockSpec((None, 1, N_SEGMENTS), lambda i: (i, 0, 0)),
        ),
        out_shape=(
            jax.ShapeDtypeStruct((b, D_MODEL, T_FRAMES), jnp.float32),
            jax.ShapeDtypeStruct((b, T_FRAMES, T_FRAMES), jnp.float32),
            jax.ShapeDtypeStruct((b, 1, N_SEGMENTS), jnp.int32),
        ),
        compiler_params=pltpu.CompilerParams(
            dimension_semantics=("parallel",)),
    )(patches, params["slab"])

    hidden_states = jnp.transpose(hs_t, (0, 2, 1))                 # (B, T, D)

    # Tiny integer bookkeeping stays in XLA.
    units = params["quantizer2"][idx[:, 0, :]]                     # (B, S)
    duplicated_units = jnp.repeat(units, SEG_LEN, axis=-1)         # static repeat
    starts = jnp.arange(N_SEGMENTS, dtype=jnp.int32) * SEG_LEN
    frame_boundary = jnp.broadcast_to(
        jnp.stack([starts, starts + SEG_LEN], axis=1), (b, N_SEGMENTS, 2))
    boundary = frame_boundary.astype(jnp.float32) * FRAME_SEC
    durations = frame_boundary[..., 1] - frame_boundary[..., 0]

    return {
        "units": units,
        "duplicated_units": duplicated_units,
        "boundary": boundary,
        "frame_boundary": frame_boundary,
        "hidden_states": hidden_states,
        "frame_similarity": frame_similarity,
        "durations": durations,
    }


# ---------------------------- parameter creation -----------------------------
def init_params(key):
    keys = iter(jax.random.split(key, 32))

    def w(shape, scale=0.02):
        return np.asarray(scale * jax.random.normal(next(keys), shape,
                                                    dtype=jnp.float32))

    slab = np.zeros((SLAB_ROWS, SLAB_LANES), np.float32)

    # weights, stored transposed (out_dim, in_dim)
    slab[OFF_CONV_W:OFF_CONV_W + D_CONV, :CONV_K] = w((D_CONV, CONV_K))
    slab[OFF_FP_W:OFF_FP_W + D_MODEL, :D_CONV] = w((D_MODEL, D_CONV))
    for layer in range(N_LAYERS):
        base = OFF_LAYER_W + layer * LAYER_W_ROWS
        slab[base:base + 3 * D_MODEL, :D_MODEL] = w((3 * D_MODEL, D_MODEL))  # Wq|Wk|Wv
        slab[base + 3 * D_MODEL:base + 4 * D_MODEL, :D_MODEL] = w((D_MODEL, D_MODEL))
        slab[base + 4 * D_MODEL:base + 4 * D_MODEL + D_FF, :D_MODEL] = w((D_FF, D_MODEL))
        slab[base + 4 * D_MODEL + D_FF:base + LAYER_W_ROWS, :D_FF] = w((D_MODEL, D_FF))
    slab[OFF_Q1:OFF_Q1 + N_CLUSTERS, :D_MODEL] = w((N_CLUSTERS, D_MODEL), scale=1.0)

    # uniform-segmentation mean-pooling matrix (S, T)
    for s in range(N_SEGMENTS):
        slab[OFF_POOL + s, s * SEG_LEN:(s + 1) * SEG_LEN] = 1.0 / SEG_LEN

    # bias / LN vectors, pre-broadcast across all 128 lanes
    def put(row, v):
        slab[row:row + np.size(v), :] = np.asarray(v, np.float32).reshape(-1, 1)

    put(B_CONV_B, w((D_CONV,)))
    put(B_FP_LN_G, np.ones(D_CONV)); put(B_FP_LN_B, np.zeros(D_CONV))
    put(B_FP_B, w((D_MODEL,)))
    put(B_ENC_LN_G, np.ones(D_MODEL)); put(B_ENC_LN_B, np.zeros(D_MODEL))
    for layer in range(N_LAYERS):
        bb = OFF_LAYER_B + layer * LAYER_B_ROWS
        put(bb + LB_QKV, w((3 * D_MODEL,)))
        put(bb + LB_BO, w((D_MODEL,)))
        put(bb + LB_LN1G, np.ones(D_MODEL)); put(bb + LB_LN1B, np.zeros(D_MODEL))
        put(bb + LB_FC1B, w((D_FF,)))
        put(bb + LB_FC2B, w((D_MODEL,)))
        put(bb + LB_LN2G, np.ones(D_MODEL)); put(bb + LB_LN2B, np.zeros(D_MODEL))

    quantizer2 = jax.random.permutation(
        next(keys), jnp.arange(N_CLUSTERS, dtype=jnp.int32))
    return {"slab": jnp.asarray(slab), "quantizer2": quantizer2}


# ----------------------------------- main ------------------------------------
if __name__ == "__main__":
    key = jax.random.PRNGKey(0)
    k_params, k_wave = jax.random.split(key)
    params = init_params(k_params)
    input_values = jax.random.normal(k_wave, (BATCH, N_WAVE), dtype=jnp.float32)

    forward = jax.jit(functools.partial(hubert_forward, params=params))
    out = jax.block_until_ready(forward(input_values))

    # light sanity checks on shapes / dtypes / values
    assert out["hidden_states"].shape == (BATCH, T_FRAMES, D_MODEL)
    assert out["frame_similarity"].shape == (BATCH, T_FRAMES, T_FRAMES)
    assert out["units"].shape == (BATCH, N_SEGMENTS)
    assert out["units"].dtype == jnp.int32
    assert out["duplicated_units"].shape == (BATCH, T_FRAMES)
    assert out["frame_boundary"].shape == (BATCH, N_SEGMENTS, 2)
    assert out["durations"].shape == (BATCH, N_SEGMENTS)
    assert bool(jnp.all(jnp.isfinite(out["hidden_states"])))
    assert bool(jnp.all(jnp.isfinite(out["frame_similarity"])))
    assert bool(jnp.all(out["units"] >= 0)) and bool(jnp.all(out["units"] < N_CLUSTERS))
    assert bool(jnp.all(out["durations"] == SEG_LEN))

    print("KERNEL_OK")
</pallas_src>

<mosaic_0001>
module attributes {stable_mosaic.version = 11 : i64} {
  func.func @_fused_hubert_kernel(%arg0: i32, %arg1: memref<1x128x16xf32, #tpu.memory_space<vmem>>, %arg2: memref<1440x128xf32, #tpu.memory_space<vmem>>, %arg3: memref<1x32x128xf32, #tpu.memory_space<vmem>>, %arg4: memref<1x128x128xf32, #tpu.memory_space<vmem>>, %arg5: memref<1x1x16xi32, #tpu.memory_space<vmem>>) attributes {dimension_semantics = [#tpu.dimension_semantics<parallel>], iteration_bounds = array<i64: 2>, scalar_prefetch = 0 : i64, scratch_operands = 0 : i64, tpu.core_type = #tpu.core_type<tc>, window_params = [{transform_indices = @transform_0, window_bounds = array<i64: 1, 128, 16>}, {pipeline_mode = #tpu.pipeline_mode<synchronous>, transform_indices = @transform_1, window_bounds = array<i64: 1440, 128>}, {transform_indices = @transform_2, window_bounds = array<i64: 1, 32, 128>}, {transform_indices = @transform_3, window_bounds = array<i64: 1, 128, 128>}, {transform_indices = @transform_4, window_bounds = array<i64: 1, 1, 16>}]} {
    %c0 = arith.constant 0 : index
    %c0_0 = arith.constant 0 : index
    %c0_1 = arith.constant 0 : index
    %0 = vector.load %arg1[%c0, %c0_0, %c0_1] : memref<1x128x16xf32, #tpu.memory_space<vmem>>, vector<1x128x16xf32>
    %1 = vector.shape_cast %0 : vector<1x128x16xf32> to vector<128x16xf32>
    %cst = arith.constant dense<0.000000e+00> : vector<128xf32>
    %2 = vector.multi_reduction <add>, %1, %cst [1] : vector<128x16xf32> to vector<128xf32>
    %3 = vector.shape_cast %2 : vector<128xf32> to vector<128x1xf32>
    %cst_2 = arith.constant 1.600000e+01 : f32
    %4 = vector.broadcast %cst_2 : f32 to vector<128x1xf32>
    %5 = arith.divf %3, %4 : vector<128x1xf32>
    %cst_3 = arith.constant dense<0.000000e+00> : vector<1xf32>
    %6 = vector.multi_reduction <add>, %5, %cst_3 [0] : vector<128x1xf32> to vector<1xf32>
    %7 = vector.shape_cast %6 : vector<1xf32> to vector<1x1xf32>
    %cst_4 = arith.constant 1.280000e+02 : f32
    %8 = vector.broadcast %cst_4 : f32 to vector<1x1xf32>
    %9 = arith.divf %7, %8 : vector<1x1xf32>
    %10 = arith.mulf %1, %1 : vector<128x16xf32>
    %cst_5 = arith.constant dense<0.000000e+00> : vector<128xf32>
    %11 = vector.multi_reduction <add>, %10, %cst_5 [1] : vector<128x16xf32> to vector<128xf32>
    %12 = vector.shape_cast %11 : vector<128xf32> to vector<128x1xf32>
    %cst_6 = arith.constant 1.600000e+01 : f32
    %13 = vector.broadcast %cst_6 : f32 to vector<128x1xf32>
    %14 = arith.divf %12, %13 : vector<128x1xf32>
    %cst_7 = arith.constant dense<0.000000e+00> : vector<1xf32>
    %15 = vector.multi_reduction <add>, %14, %cst_7 [0] : vector<128x1xf32> to vector<1xf32>
    %16 = vector.shape_cast %15 : vector<1xf32> to vector<1x1xf32>
    %cst_8 = arith.constant 1.280000e+02 : f32
    %17 = vector.broadcast %cst_8 : f32 to vector<1x1xf32>
    %18 = arith.divf %16, %17 : vector<1x1xf32>
    %19 = arith.mulf %9, %9 : vector<1x1xf32>
    %20 = arith.subf %18, %19 : vector<1x1xf32>
    %cst_9 = arith.constant 1.000000e-07 : f32
    %21 = vector.broadcast %cst_9 : f32 to vector<1x1xf32>
    %22 = arith.addf %20, %21 : vector<1x1xf32>
    %23 = math.rsqrt %22 : vector<1x1xf32>
    %c0_10 = arith.constant 0 : index
    %c0_11 = arith.constant 0 : index
    %24 = vector.load %arg2[%c0_10, %c0_11] : memref<1440x128xf32, #tpu.memory_space<vmem>>, vector<32x16xf32>
    %cst_12 = arith.constant dense<0.000000e+00> : vector<32x128xf32>
    %25 = tpu.matmul %24, %1, %cst_12 {dimension_numbers = #tpu.dot_dimension_numbers<[1], [1], [0], [0], [0, 0, 1, 0], [], []>} : vector<32x16xf32>, vector<128x16xf32>, vector<32x128xf32> -> vector<32x128xf32>
    %cst_13 = arith.constant dense<0.000000e+00> : vector<32xf32>
    %26 = vector.multi_reduction <add>, %24, %cst_13 [1] : vector<32x16xf32> to vector<32xf32>
    %27 = vector.shape_cast %26 : vector<32xf32> to vector<32x1xf32>
    %28 = vector.broadcast %23 : vector<1x1xf32> to vector<32x128xf32>
    %29 = arith.mulf %28, %25 : vector<32x128xf32>
    %c544 = arith.constant 544 : index
    %c0_14 = arith.constant 0 : index
    %30 = vector.load %arg2[%c544, %c0_14] : memref<1440x128xf32, #tpu.memory_space<vmem>>, vector<32x128xf32>
    %31 = arith.mulf %23, %9 : vector<1x1xf32>
    %32 = vector.broadcast %31 : vector<1x1xf32> to vector<32x1xf32>
    %33 = arith.mulf %32, %27 : vector<32x1xf32>
    %34 = vector.broadcast %33 : vector<32x1xf32> to vector<32x128xf32>
    %35 = arith.subf %30, %34 : vector<32x128xf32>
    %36 = arith.addf %29, %35 : vector<32x128xf32>
    %37 = arith.mulf %36, %36 : vector<32x128xf32>
    %38 = arith.mulf %36, %37 : vector<32x128xf32>
    %cst_15 = arith.constant 4.471500e-02 : f32
    %39 = vector.broadcast %cst_15 : f32 to vector<32x128xf32>
    %40 = arith.mulf %39, %38 : vector<32x128xf32>
    %41 = arith.addf %36, %40 : vector<32x128xf32>
    %cst_16 = arith.constant 0.797884583 : f32
    %42 = vector.broadcast %cst_16 : f32 to vector<32x128xf32>
    %43 = arith.mulf %42, %41 : vector<32x128xf32>
    %44 = math.tanh %43 : vector<32x128xf32>
    %cst_17 = arith.constant 1.000000e+00 : f32
    %45 = vector.broadcast %cst_17 : f32 to vector<32x128xf32>
    %46 = arith.addf %45, %44 : vector<32x128xf32>
    %cst_18 = arith.constant 5.000000e-01 : f32
    %47 = vector.broadcast %cst_18 : f32 to vector<32x128xf32>
    %48 = arith.mulf %47, %46 : vector<32x128xf32>
    %49 = arith.mulf %36, %48 : vector<32x128xf32>
    %cst_19 = arith.constant dense<0.000000e+00> : vector<128xf32>
    %50 = vector.multi_reduction <add>, %49, %cst_19 [0] : vector<32x128xf32> to vector<128xf32>
    %51 = vector.shape_cast %50 : vector<128xf32> to vector<1x128xf32>
    %cst_20 = arith.constant 3.200000e+01 : f32
    %52 = vector.broadcast %cst_20 : f32 to vector<1x128xf32>
    %53 = arith.divf %51, %52 : vector<1x128xf32>
    %54 = vector.broadcast %53 : vector<1x128xf32> to vector<32x128xf32>
    %55 = arith.subf %49, %54 : vector<32x128xf32>
    %56 = arith.mulf %55, %55 : vector<32x128xf32>
    %cst_21 = arith.constant dense<0.000000e+00> : vector<128xf32>
    %57 = vector.multi_reduction <add>, %56, %cst_21 [0] : vector<32x128xf32> to vector<128xf32>
    %58 = vector.shape_cast %57 : vector<128xf32> to vector<1x128xf32>
    %cst_22 = arith.constant 3.200000e+01 : f32
    %59 = vector.broadcast %cst_22 : f32 to vector<1x128xf32>
    %60 = arith.divf %58, %59 : vector<1x128xf32>
    %cst_23 = arith.constant 9.99999974E-6 : f32
    %61 = vector.broadcast %cst_23 : f32 to vector<1x128xf32>
    %62 = arith.addf %60, %61 : vector<1x128xf32>
    %63 = math.rsqrt %62 : vector<1x128xf32>
    %64 = vector.broadcast %63 : vector<1x128xf32> to vector<32x128xf32>
    %65 = arith.mulf %55, %64 : vector<32x128xf32>
    %c576 = arith.constant 576 : index
    %c0_24 = arith.constant 0 : index
    %66 = vector.load %arg2[%c576, %c0_24] : memref<1440x128xf32, #tpu.memory_space<vmem>>, vector<32x128xf32>
    %67 = arith.mulf %65, %66 : vector<32x128xf32>
    %c608 = arith.constant 608 : index
    %c0_25 = arith.constant 0 : index
    %68 = vector.load %arg2[%c608, %c0_25] : memref<1440x128xf32, #tpu.memory_space<vmem>>, vector<32x128xf32>
    %69 = arith.addf %67, %68 : vector<32x128xf32>
    %c32 = arith.constant 32 : index
    %c0_26 = arith.constant 0 : index
    %70 = vector.load %arg2[%c32, %c0_26] : memref<1440x128xf32, #tpu.memory_space<vmem>>, vector<32x32xf32>
    %cst_27 = arith.constant dense<0.000000e+00> : vector<32x128xf32>
    %71 = tpu.matmul %70, %69, %cst_27 {dimension_numbers = #tpu.dot_dimension_numbers<[1], [0], [0], [1], [0, 0, 1, 1], [], []>} : vector<32x32xf32>, vector<32x128xf32>, vector<32x128xf32> -> vector<32x128xf32>
    %c640 = arith.constant 640 : index
    %c0_28 = arith.constant 0 : index
    %72 = vector.load %arg2[%c640, %c0_28] : memref<1440x128xf32, #tpu.memory_space<vmem>>, vector<32x128xf32>
    %73 = arith.addf %71, %72 : vector<32x128xf32>
    %cst_29 = arith.constant dense<0.000000e+00> : vector<128xf32>
    %74 = vector.multi_reduction <add>, %73, %cst_29 [0] : vector<32x128xf32> to vector<128xf32>
    %75 = vector.shape_cast %74 : vector<128xf32> to vector<1x128xf32>
    %cst_30 = arith.constant 3.200000e+01 : f32
    %76 = vector.broadcast %cst_30 : f32 to vector<1x128xf32>
    %77 = arith.divf %75, %76 : vector<1x128xf32>
    %78 = vector.broadcast %77 : vector<1x128xf32> to vector<32x128xf32>
    %79 = arith.subf %73, %78 : vector<32x128xf32>
    %80 = arith.mulf %79, %79 : vector<32x128xf32>
    %cst_31 = arith.constant dense<0.000000e+00> : vector<128xf32>
    %81 = vector.multi_reduction <add>, %80, %cst_31 [0] : vector<32x128xf32> to vector<128xf32>
    %82 = vector.shape_cast %81 : vector<128xf32> to vector<1x128xf32>
    %cst_32 = arith.constant 3.200000e+01 : f32
    %83 = vector.broadcast %cst_32 : f32 to vector<1x128xf32>
    %84 = arith.divf %82, %83 : vector<1x128xf32>
    %cst_33 = arith.constant 9.99999974E-6 : f32
    %85 = vector.broadcast %cst_33 : f32 to vector<1x128xf32>
    %86 = arith.addf %84, %85 : vector<1x128xf32>
    %87 = math.rsqrt %86 : vector<1x128xf32>
    %88 = vector.broadcast %87 : vector<1x128xf32> to vector<32x128xf32>
    %89 = arith.mulf %79, %88 : vector<32x128xf32>
    %c672 = arith.constant 672 : index
    %c0_34 = arith.constant 0 : index
    %90 = vector.load %arg2[%c672, %c0_34] : memref<1440x128xf32, #tpu.memory_space<vmem>>, vector<32x128xf32>
    %91 = arith.mulf %89, %90 : vector<32x128xf32>
    %c704 = arith.constant 704 : index
    %c0_35 = arith.constant 0 : index
    %92 = vector.load %arg2[%c704, %c0_35] : memref<1440x128xf32, #tpu.memory_space<vmem>>, vector<32x128xf32>
    %93 = arith.addf %91, %92 : vector<32x128xf32>
    %c64 = arith.constant 64 : index
    %c0_36 = arith.constant 0 : index
    %94 = vector.load %arg2[%c64, %c0_36] : memref<1440x128xf32, #tpu.memory_space<vmem>>, vector<96x32xf32>
    %cst_37 = arith.constant dense<0.000000e+00> : vector<96x128xf32>
    %95 = tpu.matmul %94, %93, %cst_37 {dimension_numbers = #tpu.dot_dimension_numbers<[1], [0], [0], [1], [0, 0, 1, 1], [], []>} : vector<96x32xf32>, vector<32x128xf32>, vector<96x128xf32> -> vector<96x128xf32>
    %c736 = arith.constant 736 : index
    %c0_38 = arith.constant 0 : index
    %96 = vector.load %arg2[%c736, %c0_38] : memref<1440x128xf32, #tpu.memory_space<vmem>>, vector<96x128xf32>
    %97 = arith.addf %95, %96 : vector<96x128xf32>
    %98 = vector.extract_strided_slice %97 {offsets = [0, 0], sizes = [16, 128], strides = [1, 1]} : vector<96x128xf32> to vector<16x128xf32>
    %99 = vector.extract_strided_slice %97 {offsets = [32, 0], sizes = [16, 128], strides = [1, 1]} : vector<96x128xf32> to vector<16x128xf32>
    %100 = vector.extract_strided_slice %97 {offsets = [64, 0], sizes = [16, 128], strides = [1, 1]} : vector<96x128xf32> to vector<16x128xf32>
    %cst_39 = arith.constant dense<0.000000e+00> : vector<128x128xf32>
    %101 = tpu.matmul %98, %99, %cst_39 {dimension_numbers = #tpu.dot_dimension_numbers<[0], [0], [1], [1], [0, 1, 1, 1], [], []>} : vector<16x128xf32>, vector<16x128xf32>, vector<128x128xf32> -> vector<128x128xf32>
    %cst_40 = arith.constant 2.500000e-01 : f32
    %102 = vector.broadcast %cst_40 : f32 to vector<128x128xf32>
    %103 = arith.mulf %101, %102 : vector<128x128xf32>
    %cst_41 = arith.constant dense<0xFF800000> : vector<128xf32>
    %104 = vector.multi_reduction <maximumf>, %103, %cst_41 [1] : vector<128x128xf32> to vector<128xf32>
    %105 = vector.shape_cast %104 : vector<128xf32> to vector<128x1xf32>
    %106 = vector.broadcast %105 : vector<128x1xf32> to vector<128x128xf32>
    %107 = arith.subf %103, %106 : vector<128x128xf32>
    %108 = math.exp %107 : vector<128x128xf32>
    %cst_42 = arith.constant dense<0.000000e+00> : vector<128xf32>
    %109 = vector.multi_reduction <add>, %108, %cst_42 [1] : vector<128x128xf32> to vector<128xf32>
    %110 = vector.shape_cast %109 : vector<128xf32> to vector<128x1xf32>
    %111 = tpu.reciprocal %110 {approx = true} : vector<128x1xf32> -> vector<128x1xf32>
    %112 = vector.broadcast %111 : vector<128x1xf32> to vector<128x128xf32>
    %113 = arith.mulf %108, %112 : vector<128x128xf32>
    %cst_43 = arith.constant dense<0.000000e+00> : vector<16x128xf32>
    %114 = tpu.matmul %100, %113, %cst_43 {dimension_numbers = #tpu.dot_dimension_numbers<[1], [1], [0], [0], [0, 0, 1, 0], [], []>} : vector<16x128xf32>, vector<128x128xf32>, vector<16x128xf32> -> vector<16x128xf32>
    %115 = vector.extract_strided_slice %97 {offsets = [16, 0], sizes = [16, 128], strides = [1, 1]} : vector<96x128xf32> to vector<16x128xf32>
    %116 = vector.extract_strided_slice %97 {offsets = [48, 0], sizes = [16, 128], strides = [1, 1]} : vector<96x128xf32> to vector<16x128xf32>
    %117 = vector.extract_strided_slice %97 {offsets = [80, 0], sizes = [16, 128], strides = [1, 1]} : vector<96x128xf32> to vector<16x128xf32>
    %cst_44 = arith.constant dense<0.000000e+00> : vector<128x128xf32>
    %118 = tpu.matmul %115, %116, %cst_44 {dimension_numbers = #tpu.dot_dimension_numbers<[0], [0], [1], [1], [0, 1, 1, 1], [], []>} : vector<16x128xf32>, vector<16x128xf32>, vector<128x128xf32> -> vector<128x128xf32>
    %cst_45 = arith.constant 2.500000e-01 : f32
    %119 = vector.broadcast %cst_45 : f32 to vector<128x128xf32>
    %120 = arith.mulf %118, %119 : vector<128x128xf32>
    %cst_46 = arith.constant dense<0xFF800000> : vector<128xf32>
    %121 = vector.multi_reduction <maximumf>, %120, %cst_46 [1] : vector<128x128xf32> to vector<128xf32>
    %122 = vector.shape_cast %121 : vector<128xf32> to vector<128x1xf32>
    %123 = vector.broadcast %122 : vector<128x1xf32> to vector<128x128xf32>
    %124 = arith.subf %120, %123 : vector<128x128xf32>
    %125 = math.exp %124 : vector<128x128xf32>
    %cst_47 = arith.constant dense<0.000000e+00> : vector<128xf32>
    %126 = vector.multi_reduction <add>, %125, %cst_47 [1] : vector<128x128xf32> to vector<128xf32>
    %127 = vector.shape_cast %126 : vector<128xf32> to vector<128x1xf32>
    %128 = tpu.reciprocal %127 {approx = true} : vector<128x1xf32> -> vector<128x1xf32>
    %129 = vector.broadcast %128 : vector<128x1xf32> to vector<128x128xf32>
    %130 = arith.mulf %125, %129 : vector<128x128xf32>
    %cst_48 = arith.constant dense<0.000000e+00> : vector<16x128xf32>
    %131 = tpu.matmul %117, %130, %cst_48 {dimension_numbers = #tpu.dot_dimension_numbers<[1], [1], [0], [0], [0, 0, 1, 0], [], []>} : vector<16x128xf32>, vector<128x128xf32>, vector<16x128xf32> -> vector<16x128xf32>
    %132 = tpu.concatenate %114, %131 in 0 : vector<16x128xf32>, vector<16x128xf32> -> vector<32x128xf32>
    %c160 = arith.constant 160 : index
    %c0_49 = arith.constant 0 : index
    %133 = vector.load %arg2[%c160, %c0_49] : memref<1440x128xf32, #tpu.memory_space<vmem>>, vector<32x32xf32>
    %cst_50 = arith.constant dense<0.000000e+00> : vector<32x128xf32>
    %134 = tpu.matmul %133, %132, %cst_50 {dimension_numbers = #tpu.dot_dimension_numbers<[1], [0], [0], [1], [0, 0, 1, 1], [], []>} : vector<32x32xf32>, vector<32x128xf32>, vector<32x128xf32> -> vector<32x128xf32>
    %c832 = arith.constant 832 : index
    %c0_51 = arith.constant 0 : index
    %135 = vector.load %arg2[%c832, %c0_51] : memref<1440x128xf32, #tpu.memory_space<vmem>>, vector<32x128xf32>
    %136 = arith.addf %134, %135 : vector<32x128xf32>
    %137 = arith.addf %93, %136 : vector<32x128xf32>
    %cst_52 = arith.constant dense<0.000000e+00> : vector<128xf32>
    %138 = vector.multi_reduction <add>, %137, %cst_52 [0] : vector<32x128xf32> to vector<128xf32>
    %139 = vector.shape_cast %138 : vector<128xf32> to vector<1x128xf32>
    %cst_53 = arith.constant 3.200000e+01 : f32
    %140 = vector.broadcast %cst_53 : f32 to vector<1x128xf32>
    %141 = arith.divf %139, %140 : vector<1x128xf32>
    %142 = vector.broadcast %141 : vector<1x128xf32> to vector<32x128xf32>
    %143 = arith.subf %137, %142 : vector<32x128xf32>
    %144 = arith.mulf %143, %143 : vector<32x128xf32>
    %cst_54 = arith.constant dense<0.000000e+00> : vector<128xf32>
    %145 = vector.multi_reduction <add>, %144, %cst_54 [0] : vector<32x128xf32> to vector<128xf32>
    %146 = vector.shape_cast %145 : vector<128xf32> to vector<1x128xf32>
    %cst_55 = arith.constant 3.200000e+01 : f32
    %147 = vector.broadcast %cst_55 : f32 to vector<1x128xf32>
    %148 = arith.divf %146, %147 : vector<1x128xf32>
    %cst_56 = arith.constant 9.99999974E-6 : f32
    %149 = vector.broadcast %cst_56 : f32 to vector<1x128xf32>
    %150 = arith.addf %148, %149 : vector<1x128xf32>
    %151 = math.rsqrt %150 : vector<1x128xf32>
    %152 = vector.broadcast %151 : vector<1x128xf32> to vector<32x128xf32>
    %153 = arith.mulf %143, %152 : vector<32x128xf32>
    %c864 = arith.constant 864 : index
    %c0_57 = arith.constant 0 : index
    %154 = vector.load %arg2[%c864, %c0_57] : memref<1440x128xf32, #tpu.memory_space<vmem>>, vector<32x128xf32>
    %155 = arith.mulf %153, %154 : vector<32x128xf32>
    %c896 = arith.constant 896 : index
    %c0_58 = arith.constant 0 : index
    %156 = vector.load %arg2[%c896, %c0_58] : memref<1440x128xf32, #tpu.memory_space<vmem>>, vector<32x128xf32>
    %157 = arith.addf %155, %156 : vector<32x128xf32>
    %c192 = arith.constant 192 : index
    %c0_59 = arith.constant 0 : index
    %158 = vector.load %arg2[%c192, %c0_59] : memref<1440x128xf32, #tpu.memory_space<vmem>>, vector<64x32xf32>
    %cst_60 = arith.constant dense<0.000000e+00> : vector<64x128xf32>
    %159 = tpu.matmul %158, %157, %cst_60 {dimension_numbers = #tpu.dot_dimension_numbers<[1], [0], [0], [1], [0, 0, 1, 1], [], []>} : vector<64x32xf32>, vector<32x128xf32>, vector<64x128xf32> -> vector<64x128xf32>
    %c928 = arith.constant 928 : index
    %c0_61 = arith.constant 0 : index
    %160 = vector.load %arg2[%c928, %c0_61] : memref<1440x128xf32, #tpu.memory_space<vmem>>, vector<64x128xf32>
    %161 = arith.addf %159, %160 : vector<64x128xf32>
    %162 = arith.mulf %161, %161 : vector<64x128xf32>
    %163 = arith.mulf %161, %162 : vector<64x128xf32>
    %cst_62 = arith.constant 4.471500e-02 : f32
    %164 = vector.broadcast %cst_62 : f32 to vector<64x128xf32>
    %165 = arith.mulf %164, %163 : vector<64x128xf32>
    %166 = arith.addf %161, %165 : vector<64x128xf32>
    %cst_63 = arith.constant 0.797884583 : f32
    %167 = vector.broadcast %cst_63 : f32 to vector<64x128xf32>
    %168 = arith.mulf %167, %166 : vector<64x128xf32>
    %169 = math.tanh %168 : vector<64x128xf32>
    %cst_64 = arith.constant 1.000000e+00 : f32
    %170 = vector.broadcast %cst_64 : f32 to vector<64x128xf32>
    %171 = arith.addf %170, %169 : vector<64x128xf32>
    %cst_65 = arith.constant 5.000000e-01 : f32
    %172 = vector.broadcast %cst_65 : f32 to vector<64x128xf32>
    %173 = arith.mulf %172, %171 : vector<64x128xf32>
    %174 = arith.mulf %161, %173 : vector<64x128xf32>
    %c256 = arith.constant 256 : index
    %c0_66 = arith.constant 0 : index
    %175 = vector.load %arg2[%c256, %c0_66] : memref<1440x128xf32, #tpu.memory_space<vmem>>, vector<32x64xf32>
    %cst_67 = arith.constant dense<0.000000e+00> : vector<32x128xf32>
    %176 = tpu.matmul %175, %174, %cst_67 {dimension_numbers = #tpu.dot_dimension_numbers<[1], [0], [0], [1], [0, 0, 1, 1], [], []>} : vector<32x64xf32>, vector<64x128xf32>, vector<32x128xf32> -> vector<32x128xf32>
    %c992 = arith.constant 992 : index
    %c0_68 = arith.constant 0 : index
    %177 = vector.load %arg2[%c992, %c0_68] : memref<1440x128xf32, #tpu.memory_space<vmem>>, vector<32x128xf32>
    %178 = arith.addf %176, %177 : vector<32x128xf32>
    %179 = arith.addf %157, %178 : vector<32x128xf32>
    %cst_69 = arith.constant dense<0.000000e+00> : vector<128xf32>
    %180 = vector.multi_reduction <add>, %179, %cst_69 [0] : vector<32x128xf32> to vector<128xf32>
    %181 = vector.shape_cast %180 : vector<128xf32> to vector<1x128xf32>
    %cst_70 = arith.constant 3.200000e+01 : f32
    %182 = vector.broadcast %cst_70 : f32 to vector<1x128xf32>
    %183 = arith.divf %181, %182 : vector<1x128xf32>
    %184 = vector.broadcast %183 : vector<1x128xf32> to vector<32x128xf32>
    %185 = arith.subf %179, %184 : vector<32x128xf32>
    %186 = arith.mulf %185, %185 : vector<32x128xf32>
    %cst_71 = arith.constant dense<0.000000e+00> : vector<128xf32>
    %187 = vector.multi_reduction <add>, %186, %cst_71 [0] : vector<32x128xf32> to vector<128xf32>
    %188 = vector.shape_cast %187 : vector<128xf32> to vector<1x128xf32>
    %cst_72 = arith.constant 3.200000e+01 : f32
    %189 = vector.broadcast %cst_72 : f32 to vector<1x128xf32>
    %190 = arith.divf %188, %189 : vector<1x128xf32>
    %cst_73 = arith.constant 9.99999974E-6 : f32
    %191 = vector.broadcast %cst_73 : f32 to vector<1x128xf32>
    %192 = arith.addf %190, %191 : vector<1x128xf32>
    %193 = math.rsqrt %192 : vector<1x128xf32>
    %194 = vector.broadcast %193 : vector<1x128xf32> to vector<32x128xf32>
    %195 = arith.mulf %185, %194 : vector<32x128xf32>
    %c1024 = arith.constant 1024 : index
    %c0_74 = arith.constant 0 : index
    %196 = vector.load %arg2[%c1024, %c0_74] : memref<1440x128xf32, #tpu.memory_space<vmem>>, vector<32x128xf32>
    %197 = arith.mulf %195, %196 : vector<32x128xf32>
    %c1056 = arith.constant 1056 : index
    %c0_75 = arith.constant 0 : index
    %198 = vector.load %arg2[%c1056, %c0_75] : memref<1440x128xf32, #tpu.memory_space<vmem>>, vector<32x128xf32>
    %199 = arith.addf %197, %198 : vector<32x128xf32>
    %c288 = arith.constant 288 : index
    %c0_76 = arith.constant 0 : index
    %200 = vector.load %arg2[%c288, %c0_76] : memref<1440x128xf32, #tpu.memory_space<vmem>>, vector<96x32xf32>
    %cst_77 = arith.constant dense<0.000000e+00> : vector<96x128xf32>
    %201 = tpu.matmul %200, %199, %cst_77 {dimension_numbers = #tpu.dot_dimension_numbers<[1], [0], [0], [1], [0, 0, 1, 1], [], []>} : vector<96x32xf32>, vector<32x128xf32>, vector<96x128xf32> -> vector<96x128xf32>
    %c1088 = arith.constant 1088 : index
    %c0_78 = arith.constant 0 : index
    %202 = vector.load %arg2[%c1088, %c0_78] : memref<1440x128xf32, #tpu.memory_space<vmem>>, vector<96x128xf32>
    %203 = arith.addf %201, %202 : vector<96x128xf32>
    %204 = vector.extract_strided_slice %203 {offsets = [0, 0], sizes = [16, 128], strides = [1, 1]} : vector<96x128xf32> to vector<16x128xf32>
    %205 = vector.extract_strided_slice %203 {offsets = [32, 0], sizes = [16, 128], strides = [1, 1]} : vector<96x128xf32> to vector<16x128xf32>
    %206 = vector.extract_strided_slice %203 {offsets = [64, 0], sizes = [16, 128], strides = [1, 1]} : vector<96x128xf32> to vector<16x128xf32>
    %cst_79 = arith.constant dense<0.000000e+00> : vector<128x128xf32>
    %207 = tpu.matmul %204, %205, %cst_79 {dimension_numbers = #tpu.dot_dimension_numbers<[0], [0], [1], [1], [0, 1, 1, 1], [], []>} : vector<16x128xf32>, vector<16x128xf32>, vector<128x128xf32> -> vector<128x128xf32>
    %cst_80 = arith.constant 2.500000e-01 : f32
    %208 = vector.broadcast %cst_80 : f32 to vector<128x128xf32>
    %209 = arith.mulf %207, %208 : vector<128x128xf32>
    %cst_81 = arith.constant dense<0xFF800000> : vector<128xf32>
    %210 = vector.multi_reduction <maximumf>, %209, %cst_81 [1] : vector<128x128xf32> to vector<128xf32>
    %211 = vector.shape_cast %210 : vector<128xf32> to vector<128x1xf32>
    %212 = vector.broadcast %211 : vector<128x1xf32> to vector<128x128xf32>
    %213 = arith.subf %209, %212 : vector<128x128xf32>
    %214 = math.exp %213 : vector<128x128xf32>
    %cst_82 = arith.constant dense<0.000000e+00> : vector<128xf32>
    %215 = vector.multi_reduction <add>, %214, %cst_82 [1] : vector<128x128xf32> to vector<128xf32>
    %216 = vector.shape_cast %215 : vector<128xf32> to vector<128x1xf32>
    %217 = tpu.reciprocal %216 {approx = true} : vector<128x1xf32> -> vector<128x1xf32>
    %218 = vector.broadcast %217 : vector<128x1xf32> to vector<128x128xf32>
    %219 = arith.mulf %214, %218 : vector<128x128xf32>
    %cst_83 = arith.constant dense<0.000000e+00> : vector<16x128xf32>
    %220 = tpu.matmul %206, %219, %cst_83 {dimension_numbers = #tpu.dot_dimension_numbers<[1], [1], [0], [0], [0, 0, 1, 0], [], []>} : vector<16x128xf32>, vector<128x128xf32>, vector<16x128xf32> -> vector<16x128xf32>
    %221 = vector.extract_strided_slice %203 {offsets = [16, 0], sizes = [16, 128], strides = [1, 1]} : vector<96x128xf32> to vector<16x128xf32>
    %222 = vector.extract_strided_slice %203 {offsets = [48, 0], sizes = [16, 128], strides = [1, 1]} : vector<96x128xf32> to vector<16x128xf32>
    %223 = vector.extract_strided_slice %203 {offsets = [80, 0], sizes = [16, 128], strides = [1, 1]} : vector<96x128xf32> to vector<16x128xf32>
    %cst_84 = arith.constant dense<0.000000e+00> : vector<128x128xf32>
    %224 = tpu.matmul %221, %222, %cst_84 {dimension_numbers = #tpu.dot_dimension_numbers<[0], [0], [1], [1], [0, 1, 1, 1], [], []>} : vector<16x128xf32>, vector<16x128xf32>, vector<128x128xf32> -> vector<128x128xf32>
    %cst_85 = arith.constant 2.500000e-01 : f32
    %225 = vector.broadcast %cst_85 : f32 to vector<128x128xf32>
    %226 = arith.mulf %224, %225 : vector<128x128xf32>
    %cst_86 = arith.constant dense<0xFF800000> : vector<128xf32>
    %227 = vector.multi_reduction <maximumf>, %226, %cst_86 [1] : vector<128x128xf32> to vector<128xf32>
    %228 = vector.shape_cast %227 : vector<128xf32> to vector<128x1xf32>
    %229 = vector.broadcast %228 : vector<128x1xf32> to vector<128x128xf32>
    %230 = arith.subf %226, %229 : vector<128x128xf32>
    %231 = math.exp %230 : vector<128x128xf32>
    %cst_87 = arith.constant dense<0.000000e+00> : vector<128xf32>
    %232 = vector.multi_reduction <add>, %231, %cst_87 [1] : vector<128x128xf32> to vector<128xf32>
    %233 = vector.shape_cast %232 : vector<128xf32> to vector<128x1xf32>
    %234 = tpu.reciprocal %233 {approx = true} : vector<128x1xf32> -> vector<128x1xf32>
    %235 = vector.broadcast %234 : vector<128x1xf32> to vector<128x128xf32>
    %236 = arith.mulf %231, %235 : vector<128x128xf32>
    %cst_88 = arith.constant dense<0.000000e+00> : vector<16x128xf32>
    %237 = tpu.matmul %223, %236, %cst_88 {dimension_numbers = #tpu.dot_dimension_numbers<[1], [1], [0], [0], [0, 0, 1, 0], [], []>} : vector<16x128xf32>, vector<128x128xf32>, vector<16x128xf32> -> vector<16x128xf32>
    %238 = tpu.concatenate %220, %237 in 0 : vector<16x128xf32>, vector<16x128xf32> -> vector<32x128xf32>
    %c384 = arith.constant 384 : index
    %c0_89 = arith.constant 0 : index
    %239 = vector.load %arg2[%c384, %c0_89] : memref<1440x128xf32, #tpu.memory_space<vmem>>, vector<32x32xf32>
    %cst_90 = arith.constant dense<0.000000e+00> : vector<32x128xf32>
    %240 = tpu.matmul %239, %238, %cst_90 {dimension_numbers = #tpu.dot_dimension_numbers<[1], [0], [0], [1], [0, 0, 1, 1], [], []>} : vector<32x32xf32>, vector<32x128xf32>, vector<32x128xf32> -> vector<32x128xf32>
    %c1184 = arith.constant 1184 : index
    %c0_91 = arith.constant 0 : index
    %241 = vector.load %arg2[%c1184, %c0_91] : memref<1440x128xf32, #tpu.memory_space<vmem>>, vector<32x128xf32>
    %242 = arith.addf %240, %241 : vector<32x128xf32>
    %243 = arith.addf %199, %242 : vector<32x128xf32>
    %cst_92 = arith.constant dense<0.000000e+00> : vector<128xf32>
    %244 = vector.multi_reduction <add>, %243, %cst_92 [0] : vector<32x128xf32> to vector<128xf32>
    %245 = vector.shape_cast %244 : vector<128xf32> to vector<1x128xf32>
    %cst_93 = arith.constant 3.200000e+01 : f32
    %246 = vector.broadcast %cst_93 : f32 to vector<1x128xf32>
    %247 = arith.divf %245, %246 : vector<1x128xf32>
    %248 = vector.broadcast %247 : vector<1x128xf32> to vector<32x128xf32>
    %249 = arith.subf %243, %248 : vector<32x128xf32>
    %250 = arith.mulf %249, %249 : vector<32x128xf32>
    %cst_94 = arith.constant dense<0.000000e+00> : vector<128xf32>
    %251 = vector.multi_reduction <add>, %250, %cst_94 [0] : vector<32x128xf32> to vector<128xf32>
    %252 = vector.shape_cast %251 : vector<128xf32> to vector<1x128xf32>
    %cst_95 = arith.constant 3.200000e+01 : f32
    %253 = vector.broadcast %cst_95 : f32 to vector<1x128xf32>
    %254 = arith.divf %252, %253 : vector<1x128xf32>
    %cst_96 = arith.constant 9.99999974E-6 : f32
    %255 = vector.broadcast %cst_96 : f32 to vector<1x128xf32>
    %256 = arith.addf %254, %255 : vector<1x128xf32>
    %257 = math.rsqrt %256 : vector<1x128xf32>
    %258 = vector.broadcast %257 : vector<1x128xf32> to vector<32x128xf32>
    %259 = arith.mulf %249, %258 : vector<32x128xf32>
    %c1216 = arith.constant 1216 : index
    %c0_97 = arith.constant 0 : index
    %260 = vector.load %arg2[%c1216, %c0_97] : memref<1440x128xf32, #tpu.memory_space<vmem>>, vector<32x128xf32>
    %261 = arith.mulf %259, %260 : vector<32x128xf32>
    %c1248 = arith.constant 1248 : index
    %c0_98 = arith.constant 0 : index
    %262 = vector.load %arg2[%c1248, %c0_98] : memref<1440x128xf32, #tpu.memory_space<vmem>>, vector<32x128xf32>
    %263 = arith.addf %261, %262 : vector<32x128xf32>
    %c416 = arith.constant 416 : index
    %c0_99 = arith.constant 0 : index
    %264 = vector.load %arg2[%c416, %c0_99] : memref<1440x128xf32, #tpu.memory_space<vmem>>, vector<64x32xf32>
    %cst_100 = arith.constant dense<0.000000e+00> : vector<64x128xf32>
    %265 = tpu.matmul %264, %263, %cst_100 {dimension_numbers = #tpu.dot_dimension_numbers<[1], [0], [0], [1], [0, 0, 1, 1], [], []>} : vector<64x32xf32>, vector<32x128xf32>, vector<64x128xf32> -> vector<64x128xf32>
    %c1280 = arith.constant 1280 : index
    %c0_101 = arith.constant 0 : index
    %266 = vector.load %arg2[%c1280, %c0_101] : memref<1440x128xf32, #tpu.memory_space<vmem>>, vector<64x128xf32>
    %267 = arith.addf %265, %266 : vector<64x128xf32>
    %268 = arith.mulf %267, %267 : vector<64x128xf32>
    %269 = arith.mulf %267, %268 : vector<64x128xf32>
    %cst_102 = arith.constant 4.471500e-02 : f32
    %270 = vector.broadcast %cst_102 : f32 to vector<64x128xf32>
    %271 = arith.mulf %270, %269 : vector<64x128xf32>
    %272 = arith.addf %267, %271 : vector<64x128xf32>
    %cst_103 = arith.constant 0.797884583 : f32
    %273 = vector.broadcast %cst_103 : f32 to vector<64x128xf32>
    %274 = arith.mulf %273, %272 : vector<64x128xf32>
    %275 = math.tanh %274 : vector<64x128xf32>
    %cst_104 = arith.constant 1.000000e+00 : f32
    %276 = vector.broadcast %cst_104 : f32 to vector<64x128xf32>
    %277 = arith.addf %276, %275 : vector<64x128xf32>
    %cst_105 = arith.constant 5.000000e-01 : f32
    %278 = vector.broadcast %cst_105 : f32 to vector<64x128xf32>
    %279 = arith.mulf %278, %277 : vector<64x128xf32>
    %280 = arith.mulf %267, %279 : vector<64x128xf32>
    %c480 = arith.constant 480 : index
    %c0_106 = arith.constant 0 : index
    %281 = vector.load %arg2[%c480, %c0_106] : memref<1440x128xf32, #tpu.memory_space<vmem>>, vector<32x64xf32>
    %cst_107 = arith.constant dense<0.000000e+00> : vector<32x128xf32>
    %282 = tpu.matmul %281, %280, %cst_107 {dimension_numbers = #tpu.dot_dimension_numbers<[1], [0], [0], [1], [0, 0, 1, 1], [], []>} : vector<32x64xf32>, vector<64x128xf32>, vector<32x128xf32> -> vector<32x128xf32>
    %c1344 = arith.constant 1344 : index
    %c0_108 = arith.constant 0 : index
    %283 = vector.load %arg2[%c1344, %c0_108] : memref<1440x128xf32, #tpu.memory_space<vmem>>, vector<32x128xf32>
    %284 = arith.addf %282, %283 : vector<32x128xf32>
    %285 = arith.addf %263, %284 : vector<32x128xf32>
    %cst_109 = arith.constant dense<0.000000e+00> : vector<128xf32>
    %286 = vector.multi_reduction <add>, %285, %cst_109 [0] : vector<32x128xf32> to vector<128xf32>
    %287 = vector.shape_cast %286 : vector<128xf32> to vector<1x128xf32>
    %cst_110 = arith.constant 3.200000e+01 : f32
    %288 = vector.broadcast %cst_110 : f32 to vector<1x128xf32>
    %289 = arith.divf %287, %288 : vector<1x128xf32>
    %290 = vector.broadcast %289 : vector<1x128xf32> to vector<32x128xf32>
    %291 = arith.subf %285, %290 : vector<32x128xf32>
    %292 = arith.mulf %291, %291 : vector<32x128xf32>
    %cst_111 = arith.constant dense<0.000000e+00> : vector<128xf32>
    %293 = vector.multi_reduction <add>, %292, %cst_111 [0] : vector<32x128xf32> to vector<128xf32>
    %294 = vector.shape_cast %293 : vector<128xf32> to vector<1x128xf32>
    %cst_112 = arith.constant 3.200000e+01 : f32
    %295 = vector.broadcast %cst_112 : f32 to vector<1x128xf32>
    %296 = arith.divf %294, %295 : vector<1x128xf32>
    %cst_113 = arith.constant 9.99999974E-6 : f32
    %297 = vector.broadcast %cst_113 : f32 to vector<1x128xf32>
    %298 = arith.addf %296, %297 : vector<1x128xf32>
    %299 = math.rsqrt %298 : vector<1x128xf32>
    %300 = vector.broadcast %299 : vector<1x128xf32> to vector<32x128xf32>
    %301 = arith.mulf %291, %300 : vector<32x128xf32>
    %c1376 = arith.constant 1376 : index
    %c0_114 = arith.constant 0 : index
    %302 = vector.load %arg2[%c1376, %c0_114] : memref<1440x128xf32, #tpu.memory_space<vmem>>, vector<32x128xf32>
    %303 = arith.mulf %301, %302 : vector<32x128xf32>
    %c1408 = arith.constant 1408 : index
    %c0_115 = arith.constant 0 : index
    %304 = vector.load %arg2[%c1408, %c0_115] : memref<1440x128xf32, #tpu.memory_space<vmem>>, vector<32x128xf32>
    %305 = arith.addf %303, %304 : vector<32x128xf32>
    %c0_116 = arith.constant 0 : index
    %c0_117 = arith.constant 0 : index
    %c0_118 = arith.constant 0 : index
    %306 = vector.load %arg3[%c0_116, %c0_117, %c0_118] : memref<1x32x128xf32, #tpu.memory_space<vmem>>, vector<1x32x128xf32>
    %307 = vector.shape_cast %306 : vector<1x32x128xf32> to vector<32x128xf32>
    %308 = vector.shape_cast %305 : vector<32x128xf32> to vector<1x32x128xf32>
    tpu.vector_store %arg3[%c0_116, %c0_117, %c0_118], %308 {strides = array<i32>} : memref<1x32x128xf32, #tpu.memory_space<vmem>>, vector<1x32x128xf32>,
    %cst_119 = arith.constant dense<0.000000e+00> : vector<128x128xf32>
    %309 = tpu.matmul %305, %305, %cst_119 {dimension_numbers = #tpu.dot_dimension_numbers<[0], [0], [1], [1], [0, 1, 1, 1], [], []>} : vector<32x128xf32>, vector<32x128xf32>, vector<128x128xf32> -> vector<128x128xf32>
    %c0_120 = arith.constant 0 : index
    %c0_121 = arith.constant 0 : index
    %c0_122 = arith.constant 0 : index
    %310 = vector.load %arg4[%c0_120, %c0_121, %c0_122] : memref<1x128x128xf32, #tpu.memory_space<vmem>>, vector<1x128x128xf32>
    %311 = vector.shape_cast %310 : vector<1x128x128xf32> to vector<128x128xf32>
    %312 = vector.shape_cast %309 : vector<128x128xf32> to vector<1x128x128xf32>
    tpu.vector_store %arg4[%c0_120, %c0_121, %c0_122], %312 {strides = array<i32>} : memref<1x128x128xf32, #tpu.memory_space<vmem>>, vector<1x128x128xf32>,
    %c528 = arith.constant 528 : index
    %c0_123 = arith.constant 0 : index
    %313 = vector.load %arg2[%c528, %c0_123] : memref<1440x128xf32, #tpu.memory_space<vmem>>, vector<16x128xf32>
    %cst_124 = arith.constant dense<0.000000e+00> : vector<16x32xf32>
    %314 = tpu.matmul %313, %305, %cst_124 {dimension_numbers = #tpu.dot_dimension_numbers<[1], [1], [0], [0], [0, 0, 1, 0], [], []>} : vector<16x128xf32>, vector<32x128xf32>, vector<16x32xf32> -> vector<16x32xf32>
    %c512 = arith.constant 512 : index
    %c0_125 = arith.constant 0 : index
    %315 = vector.load %arg2[%c512, %c0_125] : memref<1440x128xf32, #tpu.memory_space<vmem>>, vector<16x32xf32>
    %cst_126 = arith.constant dense<0.000000e+00> : vector<16x16xf32>
    %316 = tpu.matmul %315, %314, %cst_126 {dimension_numbers = #tpu.dot_dimension_numbers<[1], [1], [0], [0], [0, 0, 1, 0], [], []>} : vector<16x32xf32>, vector<16x32xf32>, vector<16x16xf32> -> vector<16x16xf32>
    %317 = arith.mulf %315, %315 : vector<16x32xf32>
    %cst_127 = arith.constant dense<0.000000e+00> : vector<16xf32>
    %318 = vector.multi_reduction <add>, %317, %cst_127 [1] : vector<16x32xf32> to vector<16xf32>
    %319 = vector.shape_cast %318 : vector<16xf32> to vector<16x1xf32>
    %cst_128 = arith.constant 2.000000e+00 : f32
    %320 = vector.broadcast %cst_128 : f32 to vector<16x16xf32>
    %321 = arith.mulf %320, %316 : vector<16x16xf32>
    %322 = vector.broadcast %319 : vector<16x1xf32> to vector<16x16xf32>
    %323 = arith.subf %322, %321 : vector<16x16xf32>
    %cst_129 = arith.constant dense<0x7F800000> : vector<16xf32>
    %324 = vector.multi_reduction <minimumf>, %323, %cst_129 [0] : vector<16x16xf32> to vector<16xf32>
    %325 = vector.shape_cast %324 : vector<16xf32> to vector<1x16xf32>
    %326 = tpu.iota {dimensions = array<i32: 0>} : vector<16x16xi32>
    %327 = vector.broadcast %325 : vector<1x16xf32> to vector<16x16xf32>
    %328 = arith.cmpf oeq, %323, %327 : vector<16x16xf32>
    %c16_i32 = arith.constant 16 : i32
    %329 = vector.broadcast %c16_i32 : i32 to vector<16x16xi32>
    %330 = arith.select %328, %326, %329 : vector<16x16xi1>, vector<16x16xi32>
    %cst_130 = arith.constant dense<2147483647> : vector<16xi32>
    %331 = vector.multi_reduction <minsi>, %330, %cst_130 [0] : vector<16x16xi32> to vector<16xi32>
    %332 = vector.shape_cast %331 : vector<16xi32> to vector<1x16xi32>
    %c0_131 = arith.constant 0 : index
    %c0_132 = arith.constant 0 : index
    %c0_133 = arith.constant 0 : index
    %333 = vector.load %arg5[%c0_131, %c0_132, %c0_133] : memref<1x1x16xi32, #tpu.memory_space<vmem>>, vector<1x1x16xi32>
    %334 = vector.shape_cast %333 : vector<1x1x16xi32> to vector<1x16xi32>
    %335 = vector.shape_cast %332 : vector<1x16xi32> to vector<1x1x16xi32>
    tpu.vector_store %arg5[%c0_131, %c0_132, %c0_133], %335 {strides = array<i32>} : memref<1x1x16xi32, #tpu.memory_space<vmem>>, vector<1x1x16xi32>,
    return
  }
  func.func @transform_0(%arg0: i32) -> (i32, i32, i32) {
    %c0_i32 = arith.constant 0 : i32
    %c0_i32_0 = arith.constant 0 : i32
    %c0_i32_1 = arith.constant 0 : i32
    return %arg0, %c0_i32, %c0_i32_0 : i32, i32, i32
  }
  func.func @transform_1(%arg0: i32) -> (i32, i32) {
    %c0_i32 = arith.constant 0 : i32
    %c0_i32_0 = arith.constant 0 : i32
    %c0_i32_1 = arith.constant 0 : i32
    return %c0_i32, %c0_i32_0 : i32, i32
  }
  func.func @transform_2(%arg0: i32) -> (i32, i32, i32) {
    %c0_i32 = arith.constant 0 : i32
    %c0_i32_0 = arith.constant 0 : i32
    %c0_i32_1 = arith.constant 0 : i32
    return %arg0, %c0_i32, %c0_i32_0 : i32, i32, i32
  }
  func.func @transform_3(%arg0: i32) -> (i32, i32, i32) {
    %c0_i32 = arith.constant 0 : i32
    %c0_i32_0 = arith.constant 0 : i32
    %c0_i32_1 = arith.constant 0 : i32
    return %arg0, %c0_i32, %c0_i32_0 : i32, i32, i32
  }
  func.func @transform_4(%arg0: i32) -> (i32, i32, i32) {
    %c0_i32 = arith.constant 0 : i32
    %c0_i32_0 = arith.constant 0 : i32
    %c0_i32_1 = arith.constant 0 : i32
    return %arg0, %c0_i32, %c0_i32_0 : i32, i32, i32
  }
}

</mosaic_0001>

<llo_original>
// kernel: hubert_forward.1
$region0: #{hubert_forward.1}
  #allocation0 [shape = 'u32[]', space=smem, size = 0x4, offset = 0x4, fixed_abs, tag = 'smem constant byte address 0x4 - core index']
  #allocation1 [shape = 'u32[144,128]{1,0:T(1,128)}', space=vmem, size = 0x12000, scoped, tag = 'internal scratch']
  %s0 = inlined_call_operand.vmem [shape: f32[2,128,16], index: 0, kind: input, shape index: {}]
  %s1 = inlined_call_operand.hbm [shape: f32[1440,128], index: 1, kind: input, shape index: {}]
  %s2 = inlined_call_operand.hbm [shape: f32[2,32,128], index: 2, kind: output, shape index: {0}]
  %s3 = inlined_call_operand.hbm [shape: f32[2,128,128], index: 3, kind: output, shape index: {1}]
  %s4 = inlined_call_operand.vmem [shape: s32[2,1,16], index: 4, kind: output, shape index: {2}]
  %5 = xla_tuple %s2, %s3, %s4
  %s6 = sld [smem:[#allocation0]]
  $region61: #{hubert_forward.1} parent=0
    _
  %s8 = ssub.s32 1, %s6
  %s9 = scalar_select 0, %s8, %s6
  $region1: #{hubert_forward.1} parent=0
    #allocation2 [shape = 'u8[737280]{0}', space=vmem, size = 0xb4000, scoped, tag = 'input window, operand 1, single buffered']
    #allocation3 [shape = 's32[2]{0}', space=sflag, size = 0x8, scoped, tag = 'scoped memory for hubert_forward.1']
    #allocation4 [shape = 's32[2]{0}', space=sflag, size = 0x8, scoped, tag = 'scoped memory for hubert_forward.1']
    #allocation5 [shape = 'u8[32768]{0}', space=vmem, size = 0x8000, scoped, tag = 'output window, operand 0']
    #allocation6 [shape = 'u8[131072]{0}', space=vmem, size = 0x20000, scoped, tag = 'output window, operand 1']
    #allocation7 [shape = 's32[2]{0}', space=sflag, size = 0x8, scoped, tag = 'scoped memory for hubert_forward.1']
    %10 = vsyncpa [#allocation3], 0
    %11 = vsyncpa [#allocation4], 0
    %s12 = scalar_lea.sflag [#allocation4], 1
    %13 = vsyncpa %s12, 0
    %14 = vsyncpa [#allocation7], 0
    %s15 = scalar_lea.sflag [#allocation7], 1
    %16 = vsyncpa %s15, 0
    loop: start=0, step=1, limit=4
    $region2: #{hubert_forward.1} parent=1 // loop_pre_header
      _
    $region3: #{hubert_forward.1} parent=1 // loop_header
      %s18 = sphi 0, %s22
      %p19 = scmp.ge.s32.totalorder %s18, 4
      %s28 = sphi 0, %s30
      %s31 = sphi 0, %s28
      %s32 = sphi 0, %s31
      %s48 = sphi 0, %s32
      %s52 = sphi 0, %s52
      %s54 = sphi 0, %s52
      %s55 = sphi 0, %s54
      %s69 = sphi 0, %s55
      %s75 = sphi 0, %s77
      %s78 = sphi 0, %s75
      %s79 = sphi 0, %s78
      %s95 = sphi 0, %s79
      %s101 = sphi 0, %s103
      %s104 = sphi 0, %s101
      %s105 = sphi 0, %s104
      %s121 = sphi 0, %s105
      %s127 = sphi 0, %s129
      %s130 = sphi 0, %s127
      %s131 = sphi 0, %s130
      %s147 = sphi 0, %s131
    $region4: #{hubert_forward.1} parent=1 // loop_header_branch
      %21 = sbr.rel (%p19) target = $region8
    $region5: #{hubert_forward.1} parent=1 // loop_body
      %s23 = ssub.s32 %s18, 1
      %s24 = ssub.s32 %s18, 2
      %s25 = sadd.s32 %s18, 1
      %s26 = ssub.s32 %s18, %s25
      %p27 = scmp.eq.s32.totalorder %s26, 0
      %s29 = sadd.s32 %s28, 1
      %s30 = scalar_select %p27, %s28, %s29
      %p33 = pneg %p27
      %p34 = scmp.eq.s32.totalorder %s18, 1
      %p35 = por %p33, %p34
      %p36 = scmp.ne.s32.totalorder %s28, %s31
      %p37 = scmp.eq.s32.totalorder %s18, 0
      %p38 = por %p36, %p37
      %p39 = scmp.ne.s32.totalorder %s28, %s31
      %p40 = scmp.eq.s32.totalorder %s23, 1
      %p41 = por %p39, %p40
      %p42 = scmp.ne.s32.totalorder %s31, %s32
      %p43 = scmp.eq.s32.totalorder %s23, 0
      %p44 = por %p42, %p43
      %p45 = scmp.ne.s32.totalorder %s31, %s32
      %p46 = scmp.eq.s32.totalorder %s24, 1
      %p47 = por %p45, %p46
      %p49 = scmp.ne.s32.totalorder %s32, %s48
      %p50 = scmp.eq.s32.totalorder %s24, 0
      %p51 = por %p49, %p50
      %s53 = sadd.s32 %s52, 1
      %p56 = scmp.eq.s32.totalorder %s18, 1
      %p57 = scmp.ne.s32.totalorder %s52, %s54
      %p58 = scmp.eq.s32.totalorder %s18, 0
      %p59 = por %p57, %p58
      %p60 = scmp.ne.s32.totalorder %s52, %s54
      %p61 = scmp.eq.s32.totalorder %s23, 1
      %p62 = por %p60, %p61
      %p63 = scmp.ne.s32.totalorder %s54, %s55
      %p64 = scmp.eq.s32.totalorder %s23, 0
      %p65 = por %p63, %p64
      %p66 = scmp.ne.s32.totalorder %s54, %s55
      %p67 = scmp.eq.s32.totalorder %s24, 1
      %p68 = por %p66, %p67
      %p70 = scmp.ne.s32.totalorder %s55, %s69
      %p71 = scmp.eq.s32.totalorder %s24, 0
      %p72 = por %p70, %p71
      %s73 = ssub.s32 %s18, %s25
      %p74 = scmp.eq.s32.totalorder %s73, 0
      %s76 = sadd.s32 %s75, 1
      %s77 = scalar_select %p74, %s75, %s76
      %p80 = pneg %p74
      %p81 = scmp.eq.s32.totalorder %s18, 1
      %p82 = por %p80, %p81
      %p83 = scmp.ne.s32.totalorder %s75, %s78
      %p84 = scmp.eq.s32.totalorder %s18, 0
      %p85 = por %p83, %p84
      %p86 = scmp.ne.s32.totalorder %s75, %s78
      %p87 = scmp.eq.s32.totalorder %s23, 1
      %p88 = por %p86, %p87
      %p89 = scmp.ne.s32.totalorder %s78, %s79
      %p90 = scmp.eq.s32.totalorder %s23, 0
      %p91 = por %p89, %p90
      %p92 = scmp.ne.s32.totalorder %s78, %s79
      %p93 = scmp.eq.s32.totalorder %s24, 1
      %p94 = por %p92, %p93
      %p96 = scmp.ne.s32.totalorder %s79, %s95
      %p97 = scmp.eq.s32.totalorder %s24, 0
      %p98 = por %p96, %p97
      %s99 = ssub.s32 %s18, %s25
      %p100 = scmp.eq.s32.totalorder %s99, 0
      %s102 = sadd.s32 %s101, 1
      %s103 = scalar_select %p100, %s101, %s102
      %p106 = pneg %p100
      %p107 = scmp.eq.s32.totalorder %s18, 1
      %p108 = por %p106, %p107
      %p109 = scmp.ne.s32.totalorder %s101, %s104
      %p110 = scmp.eq.s32.totalorder %s18, 0
      %p111 = por %p109, %p110
      %p112 = scmp.ne.s32.totalorder %s101, %s104
      %p113 = scmp.eq.s32.totalorder %s23, 1
      %p114 = por %p112, %p113
      %p115 = scmp.ne.s32.totalorder %s104, %s105
      %p116 = scmp.eq.s32.totalorder %s23, 0
      %p117 = por %p115, %p116
      %p118 = scmp.ne.s32.totalorder %s104, %s105
      %p119 = scmp.eq.s32.totalorder %s24, 1
      %p120 = por %p118, %p119
      %p122 = scmp.ne.s32.totalorder %s105, %s121
      %p123 = scmp.eq.s32.totalorder %s24, 0
      %p124 = por %p122, %p123
      %s125 = ssub.s32 %s18, %s25
      %p126 = scmp.eq.s32.totalorder %s125, 0
      %s128 = sadd.s32 %s127, 1
      %s129 = scalar_select %p126, %s127, %s128
      %p132 = pneg %p126
      %p133 = scmp.eq.s32.totalorder %s18, 1
      %p134 = por %p132, %p133
      %p135 = scmp.ne.s32.totalorder %s127, %s130
      %p136 = scmp.eq.s32.totalorder %s18, 0
      %p137 = por %p135, %p136
      %p138 = scmp.ne.s32.totalorder %s127, %s130
      %p139 = scmp.eq.s32.totalorder %s23, 1
      %p140 = por %p138, %p139
      %p141 = scmp.ne.s32.totalorder %s130, %s131
      %p142 = scmp.eq.s32.totalorder %s23, 0
      %p143 = por %p141, %p142
      %p144 = scmp.ne.s32.totalorder %s130, %s131
      %p145 = scmp.eq.s32.totalorder %s24, 1
      %p146 = por %p144, %p145
      %p148 = scmp.ne.s32.totalorder %s131, %s147
      %p149 = scmp.eq.s32.totalorder %s24, 0
      %p150 = por %p148, %p149
      %p151 = scmp.le.s32.totalorder 1, %s18
      %p152 = scmp.lt.s32.totalorder %s18, 3
      %p153 = pnand %p151, %p152
      %p154 = pneg %p153
      // Predicated region
      $region9: #{hubert_forward.1} parent=5 // pred_check
        _
      $region10: #{hubert_forward.1} parent=5 // pred_check_branch
        %156 = sbr.rel (%p153) target = $region12
      $region11: #{hubert_forward.1} parent=5 // pred_region
        %s157 = ssub.s32 %s18, 1
        // Predicated region
        $region13: #{hubert_forward.1} parent=11 // pred_check
          %p158 = pneg %p65
        $region14: #{hubert_forward.1} parent=11 // pred_check_branch
          %160 = sbr.rel (%p158) target = $region16
        $region15: #{hubert_forward.1} parent=11 // pred_region
          %s162 = ssub.s32 23040, 23040
          %163 = vsyncadd [#allocation3], %s162
          %s164 = sshll.u32 [#allocation2], 4
          %s165 = int_to_ptr.vmem [resolvable:$true] %s164
          %170 = dma.hbm_to_vmem [thread:$0]  %s1, 23040, %s165, [#allocation3], 128, 128, 8
        $region16: #{hubert_forward.1} parent=11 // pred_fallthru
          _
      $region12: #{hubert_forward.1} parent=5 // pred_fallthru
        _
      %p171 = scmp.lt.s32.totalorder %s18, 2
      // Predicated region
      $region17: #{hubert_forward.1} parent=5 // pred_check
        %p172 = pneg %p171
      $region18: #{hubert_forward.1} parent=5 // pred_check_branch
        %174 = sbr.rel (%p172) target = $region20
      $region19: #{hubert_forward.1} parent=5 // pred_region
        // Predicated region
        $region21: #{hubert_forward.1} parent=19 // pred_check
          %p175 = pneg %p38
        $region22: #{hubert_forward.1} parent=19 // pred_check_branch
          %177 = sbr.rel (%p175) target = $region24
        $region23: #{hubert_forward.1} parent=19 // pred_region
          %p178 = scmp.lt.s32.totalorder %s18, 1
          %s179 = scalar_select %p178, %s18, 1
          %s180 = smul.addr %s179, 16
          %s181 = smul.addr %s180, 8
          %s182 = scalar_lea.vmem %s0, %s181
        $region24: #{hubert_forward.1} parent=19 // pred_fallthru
          _
      $region20: #{hubert_forward.1} parent=5 // pred_fallthru
        _
      %p183 = scmp.le.s32.totalorder 1, %s18
      %p184 = scmp.lt.s32.totalorder %s18, 3
      %p185 = pnand %p183, %p184
      %p186 = pneg %p185
      // Predicated region
      $region25: #{hubert_forward.1} parent=5 // pred_check
        _
      $region26: #{hubert_forward.1} parent=5 // pred_check_branch
        %188 = sbr.rel (%p185) target = $region28
      $region27: #{hubert_forward.1} parent=5 // pred_region
        %s189 = ssub.s32 %s18, 1
        // Predicated region
        $region29: #{hubert_forward.1} parent=27 // pred_check
          %p190 = pneg %p65
        $region30: #{hubert_forward.1} parent=27 // pred_check_branch
          %192 = sbr.rel (%p190) target = $region32
        $region31: #{hubert_forward.1} parent=27 // pred_region
          %193 = dma.done [#allocation3], 23040
        $region32: #{hubert_forward.1} parent=27 // pred_fallthru
          _
        %p194 = scmp.lt.s32.totalorder %s23, 1
        %s195 = scalar_select %p194, %s23, 1
        %s196 = smul.addr %s195, 16
        %s197 = smul.addr %s196, 8
        %s198 = scalar_lea.vmem %s0, %s197
        %p199 = pneg %p44
        %p200 = pneg %p41
        %p201 = pneg %p65
        %p202 = pneg %p62
        %p203 = pneg %p91
        %p204 = pneg %p88
        %s205 = sand.u32 %s78, 1
        %s206 = scalar_lea.sflag [#allocation4], %s205
        %s207 = sand.u32 %s78, 1
        %s208 = smul.addr %s207, 32
        %s209 = scalar_lea.vmem [#allocation5], %s208
        %p210 = pneg %p117
        %p211 = pneg %p114
        %s212 = sand.u32 %s104, 1
        %s213 = scalar_lea.sflag [#allocation7], %s212
        %s214 = sand.u32 %s104, 1
        %s215 = smul.addr %s214, 128
        %s216 = scalar_lea.vmem [#allocation6], %s215
        %p217 = pneg %p143
        %p218 = pneg %p140
        %p219 = scmp.lt.s32.totalorder %s23, 1
        %s220 = scalar_select %p219, %s23, 1
        %s221 = scalar_lea.vmem %s4, %s220
        %p222 = scmp.lt.s32.totalorder %s23, 1
        %s223 = scalar_select %p222, %s23, 1
        %s224 = smul.addr %s223, 16
        %s225 = smul.addr %s224, 8
        %s226 = scalar_lea.vmem %s0, %s225
        %p227 = scmp.lt.s32.totalorder %s23, 1
        %s228 = scalar_select %p227, %s23, 1
        %s229 = scalar_lea.vmem %s4, %s228
        %v230 = vld [vmem:[%s226] sm:$0xff]
        %v231 = vld [vmem:[%s226 + $0x8] sm:$0xff]
        %v232 = vld [vmem:[%s226 + $0x10] sm:$0xff]
        %v233 = vld [vmem:[%s226 + $0x18] sm:$0xff]
        %v234 = vld [vmem:[%s226 + $0x20] sm:$0xff]
        %v235 = vld [vmem:[%s226 + $0x28] sm:$0xff]
        %v236 = vld [vmem:[%s226 + $0x30] sm:$0xff]
        %v237 = vld [vmem:[%s226 + $0x38] sm:$0xff]
        %v238 = vld [vmem:[%s226 + $0x40] sm:$0xff]
        %v239 = vld [vmem:[%s226 + $0x48] sm:$0xff]
        %v240 = vld [vmem:[%s226 + $0x50] sm:$0xff]
        %v241 = vld [vmem:[%s226 + $0x58] sm:$0xff]
        %v242 = vld [vmem:[%s226 + $0x60] sm:$0xff]
        %v243 = vld [vmem:[%s226 + $0x68] sm:$0xff]
        %v244 = vld [vmem:[%s226 + $0x70] sm:$0xff]
        %v245 = vld [vmem:[%s226 + $0x78] sm:$0xff]
        %vm246 = vcmask 130048
        %v247 = vsel %vm246, %v230, 0.0
        %248 = vadd.xlane.f32.xlu0 %v247
        %v249 = vpop.xlane.xlu0 %248
        %v250 = vsel %vm246, %v231, 0.0
        %251 = vadd.xlane.f32.xlu0 %v250
        %v252 = vpop.xlane.xlu0 %251
        %v253 = vsel %vm246, %v232, 0.0
        %254 = vadd.xlane.f32.xlu0 %v253
        %v255 = vpop.xlane.xlu0 %254
        %v256 = vsel %vm246, %v233, 0.0
        %257 = vadd.xlane.f32.xlu0 %v256
        %v258 = vpop.xlane.xlu0 %257
        %v259 = vsel %vm246, %v234, 0.0
        %260 = vadd.xlane.f32.xlu0 %v259
        %v261 = vpop.xlane.xlu0 %260
        %v262 = vsel %vm246, %v235, 0.0
        %263 = vadd.xlane.f32.xlu0 %v262
        %v264 = vpop.xlane.xlu0 %263
        %v265 = vsel %vm246, %v236, 0.0
        %266 = vadd.xlane.f32.xlu0 %v265
        %v267 = vpop.xlane.xlu0 %266
        %v268 = vsel %vm246, %v237, 0.0
        %269 = vadd.xlane.f32.xlu0 %v268
        %v270 = vpop.xlane.xlu0 %269
        %v271 = vsel %vm246, %v238, 0.0
        %272 = vadd.xlane.f32.xlu0 %v271
        %v273 = vpop.xlane.xlu0 %272
        %v274 = vsel %vm246, %v239, 0.0
        %275 = vadd.xlane.f32.xlu0 %v274
        %v276 = vpop.xlane.xlu0 %275
        %v277 = vsel %vm246, %v240, 0.0
        %278 = vadd.xlane.f32.xlu0 %v277
        %v279 = vpop.xlane.xlu0 %278
        %v280 = vsel %vm246, %v241, 0.0
        %281 = vadd.xlane.f32.xlu0 %v280
        %v282 = vpop.xlane.xlu0 %281
        %v283 = vsel %vm246, %v242, 0.0
        %284 = vadd.xlane.f32.xlu0 %v283
        %v285 = vpop.xlane.xlu0 %284
        %v286 = vsel %vm246, %v243, 0.0
        %287 = vadd.xlane.f32.xlu0 %v286
        %v288 = vpop.xlane.xlu0 %287
        %v289 = vsel %vm246, %v244, 0.0
        %290 = vadd.xlane.f32.xlu0 %v289
        %v291 = vpop.xlane.xlu0 %290
        %v292 = vsel %vm246, %v245, 0.0
        %293 = vadd.xlane.f32.xlu0 %v292
        %v294 = vpop.xlane.xlu0 %293
        %v295 = vrcp.pop 16.0
        %v296 = vmul.f32 %v249, %v295
        %v297 = vmul.f32 %v252, %v295
        %v298 = vmul.f32 %v255, %v295
        %v299 = vmul.f32 %v258, %v295
        %v300 = vmul.f32 %v261, %v295
        %v301 = vmul.f32 %v264, %v295
        %v302 = vmul.f32 %v267, %v295
        %v303 = vmul.f32 %v270, %v295
        %v304 = vmul.f32 %v273, %v295
        %v305 = vmul.f32 %v276, %v295
        %v306 = vmul.f32 %v279, %v295
        %v307 = vmul.f32 %v282, %v295
        %v308 = vmul.f32 %v285, %v295
        %v309 = vmul.f32 %v288, %v295
        %v310 = vmul.f32 %v291, %v295
        %v311 = vmul.f32 %v294, %v295
        %v312 = vadd.f32 %v296, %v297
        %v313 = vadd.f32 %v312, %v298
        %v314 = vadd.f32 %v313, %v299
        %v315 = vadd.f32 %v314, %v300
        %v316 = vadd.f32 %v315, %v301
        %v317 = vadd.f32 %v316, %v302
        %v318 = vadd.f32 %v317, %v303
        %v319 = vadd.f32 %v318, %v304
        %v320 = vadd.f32 %v319, %v305
        %v321 = vadd.f32 %v320, %v306
        %v322 = vadd.f32 %v321, %v307
        %v323 = vadd.f32 %v322, %v308
        %v324 = vadd.f32 %v323, %v309
        %v325 = vadd.f32 %v324, %v310
        %v326 = vadd.f32 %v325, %v311
        %v327 = vrot.slane %v326, 4
        %v328 = vadd.f32 %v326, %v327
        %v329 = vrot.slane %v328, 2
        %v330 = vadd.f32 %v328, %v329
        %v331 = vrot.slane %v330, 1
        %v332 = vadd.f32 %v330, %v331
        %v333 = vrcp.pop 128.0
        %v334 = vmul.f32 %v332, %v333
        %v335 = vmul.f32 %v230, %v230
        %v336 = vmul.f32 %v231, %v231
        %v337 = vmul.f32 %v232, %v232
        %v338 = vmul.f32 %v233, %v233
        %v339 = vmul.f32 %v234, %v234
        %v340 = vmul.f32 %v235, %v235
        %v341 = vmul.f32 %v236, %v236
        %v342 = vmul.f32 %v237, %v237
        %v343 = vmul.f32 %v238, %v238
        %v344 = vmul.f32 %v239, %v239
        %v345 = vmul.f32 %v240, %v240
        %v346 = vmul.f32 %v241, %v241
        %v347 = vmul.f32 %v242, %v242
        %v348 = vmul.f32 %v243, %v243
        %v349 = vmul.f32 %v244, %v244
        %v350 = vmul.f32 %v245, %v245
        %v351 = vsel %vm246, %v335, 0.0
        %352 = vadd.xlane.f32.xlu0 %v351
        %v353 = vpop.xlane.xlu0 %352
        %v354 = vsel %vm246, %v336, 0.0
        %355 = vadd.xlane.f32.xlu0 %v354
        %v356 = vpop.xlane.xlu0 %355
        %v357 = vsel %vm246, %v337, 0.0
        %358 = vadd.xlane.f32.xlu0 %v357
        %v359 = vpop.xlane.xlu0 %358
        %v360 = vsel %vm246, %v338, 0.0
        %361 = vadd.xlane.f32.xlu0 %v360
        %v362 = vpop.xlane.xlu0 %361
        %v363 = vsel %vm246, %v339, 0.0
        %364 = vadd.xlane.f32.xlu0 %v363
        %v365 = vpop.xlane.xlu0 %364
        %v366 = vsel %vm246, %v340, 0.0
        %367 = vadd.xlane.f32.xlu0 %v366
        %v368 = vpop.xlane.xlu0 %367
        %v369 = vsel %vm246, %v341, 0.0
        %370 = vadd.xlane.f32.xlu0 %v369
        %v371 = vpop.xlane.xlu0 %370
        %v372 = vsel %vm246, %v342, 0.0
        %373 = vadd.xlane.f32.xlu0 %v372
        %v374 = vpop.xlane.xlu0 %373
        %v375 = vsel %vm246, %v343, 0.0
        %376 = vadd.xlane.f32.xlu0 %v375
        %v377 = vpop.xlane.xlu0 %376
        %v378 = vsel %vm246, %v344, 0.0
        %379 = vadd.xlane.f32.xlu0 %v378
        %v380 = vpop.xlane.xlu0 %379
        %v381 = vsel %vm246, %v345, 0.0
        %382 = vadd.xlane.f32.xlu0 %v381
        %v383 = vpop.xlane.xlu0 %382
        %v384 = vsel %vm246, %v346, 0.0
        %385 = vadd.xlane.f32.xlu0 %v384
        %v386 = vpop.xlane.xlu0 %385
        %v387 = vsel %vm246, %v347, 0.0
        %388 = vadd.xlane.f32.xlu0 %v387
        %v389 = vpop.xlane.xlu0 %388
        %v390 = vsel %vm246, %v348, 0.0
        %391 = vadd.xlane.f32.xlu0 %v390
        %v392 = vpop.xlane.xlu0 %391
        %v393 = vsel %vm246, %v349, 0.0
        %394 = vadd.xlane.f32.xlu0 %v393
        %v395 = vpop.xlane.xlu0 %394
        %v396 = vsel %vm246, %v350, 0.0
        %397 = vadd.xlane.f32.xlu0 %v396
        %v398 = vpop.xlane.xlu0 %397
        %v399 = vmul.f32 %v353, %v295
        %v400 = vmul.f32 %v356, %v295
        %v401 = vmul.f32 %v359, %v295
        %v402 = vmul.f32 %v362, %v295
        %v403 = vmul.f32 %v365, %v295
        %v404 = vmul.f32 %v368, %v295
        %v405 = vmul.f32 %v371, %v295
        %v406 = vmul.f32 %v374, %v295
        %v407 = vmul.f32 %v377, %v295
        %v408 = vmul.f32 %v380, %v295
        %v409 = vmul.f32 %v383, %v295
        %v410 = vmul.f32 %v386, %v295
        %v411 = vmul.f32 %v389, %v295
        %v412 = vmul.f32 %v392, %v295
        %v413 = vmul.f32 %v395, %v295
        %v414 = vmul.f32 %v398, %v295
        %v415 = vadd.f32 %v399, %v400
        %v416 = vadd.f32 %v415, %v401
        %v417 = vadd.f32 %v416, %v402
        %v418 = vadd.f32 %v417, %v403
        %v419 = vadd.f32 %v418, %v404
        %v420 = vadd.f32 %v419, %v405
        %v421 = vadd.f32 %v420, %v406
        %v422 = vadd.f32 %v421, %v407
        %v423 = vadd.f32 %v422, %v408
        %v424 = vadd.f32 %v423, %v409
        %v425 = vadd.f32 %v424, %v410
        %v426 = vadd.f32 %v425, %v411
        %v427 = vadd.f32 %v426, %v412
        %v428 = vadd.f32 %v427, %v413
        %v429 = vadd.f32 %v428, %v414
        %v430 = vrot.slane %v429, 4
        %v431 = vadd.f32 %v429, %v430
        %v432 = vrot.slane %v431, 2
        %v433 = vadd.f32 %v431, %v432
        %v434 = vrot.slane %v433, 1
        %v435 = vadd.f32 %v433, %v434
        %v436 = vmul.f32 %v435, %v333
        %v437 = vmul.f32 %v334, %v334
        %v438 = vsub.f32 %v436, %v437
        %v439 = vadd.f32 %v438, 1e-07
        %v440 = vrsqrt.pop %v439
        %v441 = vld [vmem:[#allocation2] sm:$0xff]
        %v442 = vld [vmem:[#allocation2 + $0x8] sm:$0xff]
        %v443 = vld [vmem:[#allocation2 + $0x10] sm:$0xff]
        %v444 = vld [vmem:[#allocation2 + $0x18] sm:$0xff]
        %v446 = vsel %vm246, %v441, 0
        %v449 = vsel %vm246, %v442, 0
        %v452 = vsel %vm246, %v443, 0
        %v455 = vsel %vm246, %v444, 0
        %v458 = vsel %vm246, %v230, 0
        %v461 = vsel %vm246, %v231, 0
        %v464 = vsel %vm246, %v232, 0
        %v467 = vsel %vm246, %v233, 0
        %v470 = vsel %vm246, %v234, 0
        %v473 = vsel %vm246, %v235, 0
        %v476 = vsel %vm246, %v236, 0
        %v479 = vsel %vm246, %v237, 0
        %v482 = vsel %vm246, %v238, 0
        %v485 = vsel %vm246, %v239, 0
        %v488 = vsel %vm246, %v240, 0
        %v491 = vsel %vm246, %v241, 0
        %v494 = vsel %vm246, %v242, 0
        %v497 = vsel %vm246, %v243, 0
        %v500 = vsel %vm246, %v244, 0
        %v503 = vsel %vm246, %v245, 0
        %505 = vmatprep.subr.mxu0 0.0
        %506 = vmatpush1.xpose.msra.mxu0 %v458
        %507 = vmatprep.subr.mxu0 0.0
        %508 = vmatpush1.xpose.msra.mxu0 %v461
        %509 = vmatprep.subr.mxu0 0.0
        %510 = vmatpush1.xpose.msra.mxu0 %v464
        %511 = vmatprep.subr.mxu0 0.0
        %512 = vmatpush1.xpose.msra.mxu0 %v467
        %513 = vmatprep.subr.mxu0 0.0
        %514 = vmatpush1.xpose.msra.mxu0 %v470
        %515 = vmatprep.subr.mxu0 0.0
        %516 = vmatpush1.xpose.msra.mxu0 %v473
        %517 = vmatprep.subr.mxu0 0.0
        %518 = vmatpush1.xpose.msra.mxu0 %v476
        %519 = vmatprep.subr.mxu0 0.0
        %520 = vmatpush1.xpose.msra.mxu0 %v479
        %521 = vmatprep.subr.mxu0 0.0
        %522 = vmatpush1.xpose.msra.mxu0 %v482
        %523 = vmatprep.subr.mxu0 0.0
        %524 = vmatpush1.xpose.msra.mxu0 %v485
        %525 = vmatprep.subr.mxu0 0.0
        %526 = vmatpush1.xpose.msra.mxu0 %v488
        %527 = vmatprep.subr.mxu0 0.0
        %528 = vmatpush1.xpose.msra.mxu0 %v491
        %529 = vmatprep.subr.mxu0 0.0
        %530 = vmatpush1.xpose.msra.mxu0 %v494
        %531 = vmatprep.subr.mxu0 0.0
        %532 = vmatpush1.xpose.msra.mxu0 %v497
        %533 = vmatprep.subr.mxu0 0.0
        %534 = vmatpush1.xpose.msra.mxu0 %v500
        %535 = vmatprep.subr.mxu0 0.0
        %536 = vmatpush1.xpose.msra.mxu0 %v503
        %537 = vmatprep.subr.mxu0 0.0
        %538 = vmatpush1.xpose.msra.mxu0 0.0
        %539 = vmatprep.subr.mxu0 0.0
        %540 = vmatpush1.xpose.msra.mxu0 0.0
        %541 = vmatprep.subr.mxu0 0.0
        %542 = vmatpush1.xpose.msra.mxu0 0.0
        %543 = vmatprep.subr.mxu0 0.0
        %544 = vmatpush1.xpose.msra.mxu0 0.0
        %545 = vmatprep.subr.mxu0 0.0
        %546 = vmatpush1.xpose.msra.mxu0 0.0
        %547 = vmatprep.subr.mxu0 0.0
        %548 = vmatpush1.xpose.msra.mxu0 0.0
        %549 = vmatprep.subr.mxu0 0.0
        %550 = vmatpush1.xpose.msra.mxu0 0.0
        %551 = vmatprep.subr.mxu0 0.0
        %552 = vmatpush1.xpose.msra.mxu0 0.0
        %553 = vmatprep.subr.mxu0 0.0
        %554 = vmatpush1.xpose.msra.mxu0 0.0
        %555 = vmatprep.subr.mxu0 0.0
        %556 = vmatpush1.xpose.msra.mxu0 0.0
        %557 = vmatprep.subr.mxu0 0.0
        %558 = vmatpush1.xpose.msra.mxu0 0.0
        %559 = vmatprep.subr.mxu0 0.0
        %560 = vmatpush1.xpose.msra.mxu0 0.0
        %561 = vmatprep.subr.mxu0 0.0
        %562 = vmatpush1.xpose.msra.mxu0 0.0
        %563 = vmatprep.subr.mxu0 0.0
        %564 = vmatpush1.xpose.msra.mxu0 0.0
        %565 = vmatprep.subr.mxu0 0.0
        %566 = vmatpush1.xpose.msra.mxu0 0.0
        %567 = vmatprep.subr.mxu0 0.0
        %568 = vmatpush1.xpose.msra.mxu0 0.0
        %569 = vmatprep.mubr.f32.mxu0 0.0
        %570 = vmatmul.mubr.f32.gmra.mrb[0].mxu0 %v446
        %v571 = vpop.f32.mrb[0].mxu0
        %v572 = vadd.f32 0.0, %v571
        %v573 = vpop.f32.mrb[0].mxu0
        %574 = vmatprep.mubr.f32.mxu0 0.0
        %575 = vmatmul.mubr.f32.gmra.mrb[0].mxu0 %v449
        %v576 = vpop.f32.mrb[0].mxu0
        %v577 = vadd.f32 0.0, %v576
        %v578 = vpop.f32.mrb[0].mxu0
        %579 = vmatprep.mubr.f32.mxu0 0.0
        %580 = vmatmul.mubr.f32.gmra.mrb[0].mxu0 %v452
        %v581 = vpop.f32.mrb[0].mxu0
        %v582 = vadd.f32 0.0, %v581
        %v583 = vpop.f32.mrb[0].mxu0
        %584 = vmatprep.mubr.f32.mxu0 0.0
        %585 = vmatmul.mubr.f32.gmra.mrb[0].mxu0 %v455
        %v586 = vpop.f32.mrb[0].mxu0
        %v587 = vadd.f32 0.0, %v586
        %v588 = vpop.f32.mrb[0].mxu0
        %589 = vdwg.mxu0
        %v590 = vsel %vm246, %v441, 0.0
        %591 = vadd.xlane.f32.xlu0 %v590
        %v592 = vpop.xlane.xlu0 %591
        %v593 = vsel %vm246, %v442, 0.0
        %594 = vadd.xlane.f32.xlu0 %v593
        %v595 = vpop.xlane.xlu0 %594
        %v596 = vsel %vm246, %v443, 0.0
        %597 = vadd.xlane.f32.xlu0 %v596
        %v598 = vpop.xlane.xlu0 %597
        %v599 = vsel %vm246, %v444, 0.0
        %600 = vadd.xlane.f32.xlu0 %v599
        %v601 = vpop.xlane.xlu0 %600
        %v602 = vmul.f32 %v440, %v572
        %v603 = vmul.f32 %v440, %v577
        %v604 = vmul.f32 %v440, %v582
        %v605 = vmul.f32 %v440, %v587
        %v606 = vld [vmem:[#allocation2 + $0x220] sm:$0xff]
        %v607 = vld [vmem:[#allocation2 + $0x228] sm:$0xff]
        %v608 = vld [vmem:[#allocation2 + $0x230] sm:$0xff]
        %v609 = vld [vmem:[#allocation2 + $0x238] sm:$0xff]
        %v610 = vmul.f32 %v440, %v334
        %v611 = vmul.f32 %v610, %v592
        %v612 = vmul.f32 %v610, %v595
        %v613 = vmul.f32 %v610, %v598
        %v614 = vmul.f32 %v610, %v601
        %v615 = vsub.f32 %v606, %v611
        %v616 = vsub.f32 %v607, %v612
        %v617 = vsub.f32 %v608, %v613
        %v618 = vsub.f32 %v609, %v614
        %v619 = vadd.f32 %v602, %v615
        %v620 = vadd.f32 %v603, %v616
        %v621 = vadd.f32 %v604, %v617
        %v622 = vadd.f32 %v605, %v618
        %v623 = vmul.f32 %v619, %v619
        %v624 = vmul.f32 %v620, %v620
        %v625 = vmul.f32 %v621, %v621
        %v626 = vmul.f32 %v622, %v622
        %v627 = vmul.f32 %v619, %v623
        %v628 = vmul.f32 %v620, %v624
        %v629 = vmul.f32 %v621, %v625
        %v630 = vmul.f32 %v622, %v626
        %v631 = vmul.f32 %v627, 0.044715
        %v632 = vmul.f32 %v628, 0.044715
        %v633 = vmul.f32 %v629, 0.044715
        %v634 = vmul.f32 %v630, 0.044715
        %v635 = vadd.f32 %v619, %v631
        %v636 = vadd.f32 %v620, %v632
        %v637 = vadd.f32 %v621, %v633
        %v638 = vadd.f32 %v622, %v634
        %v639 = vmul.f32 %v635, 0.7978846
        %v640 = vmul.f32 %v636, 0.7978846
        %v641 = vmul.f32 %v637, 0.7978846
        %v642 = vmul.f32 %v638, 0.7978846
        %v643 = vtanh.pop %v639
        %v644 = vtanh.pop %v640
        %v645 = vtanh.pop %v641
        %v646 = vtanh.pop %v642
        %v647 = vadd.f32 %v643, 1.0
        %v648 = vadd.f32 %v644, 1.0
        %v649 = vadd.f32 %v645, 1.0
        %v650 = vadd.f32 %v646, 1.0
        %v651 = vmul.f32 %v647, 0.5
        %v652 = vmul.f32 %v648, 0.5
        %v653 = vmul.f32 %v649, 0.5
        %v654 = vmul.f32 %v650, 0.5
        %v655 = vmul.f32 %v619, %v651
        %v656 = vmul.f32 %v620, %v652
        %v657 = vmul.f32 %v621, %v653
        %v658 = vmul.f32 %v622, %v654
        %v659 = vadd.f32 %v655, %v656
        %v660 = vadd.f32 %v659, %v657
        %v661 = vadd.f32 %v660, %v658
        %v662 = vrot.slane %v661, 4
        %v663 = vadd.f32 %v661, %v662
        %v664 = vrot.slane %v663, 2
        %v665 = vadd.f32 %v663, %v664
        %v666 = vrot.slane %v665, 1
        %v667 = vadd.f32 %v665, %v666
        %v668 = vrcp.pop 32.0
        %v669 = vmul.f32 %v667, %v668
        %v670 = vsub.f32 %v655, %v669
        %v671 = vsub.f32 %v656, %v669
        %v672 = vsub.f32 %v657, %v669
        %v673 = vsub.f32 %v658, %v669
        %v674 = vmul.f32 %v670, %v670
        %v675 = vmul.f32 %v671, %v671
        %v676 = vmul.f32 %v672, %v672
        %v677 = vmul.f32 %v673, %v673
        %v678 = vadd.f32 %v674, %v675
        %v679 = vadd.f32 %v678, %v676
        %v680 = vadd.f32 %v679, %v677
        %v681 = vrot.slane %v680, 4
        %v682 = vadd.f32 %v680, %v681
        %v683 = vrot.slane %v682, 2
        %v684 = vadd.f32 %v682, %v683
        %v685 = vrot.slane %v684, 1
        %v686 = vadd.f32 %v684, %v685
        %v687 = vmul.f32 %v686, %v668
        %v688 = vadd.f32 %v687, 1e-05
        %v689 = vrsqrt.pop %v688
        %v690 = vmul.f32 %v670, %v689
        %v691 = vmul.f32 %v671, %v689
        %v692 = vmul.f32 %v672, %v689
        %v693 = vmul.f32 %v673, %v689
        %v694 = vld [vmem:[#allocation2 + $0x240] sm:$0xff]
        %v695 = vld [vmem:[#allocation2 + $0x248] sm:$0xff]
        %v696 = vld [vmem:[#allocation2 + $0x250] sm:$0xff]
        %v697 = vld [vmem:[#allocation2 + $0x258] sm:$0xff]
        %v698 = vmul.f32 %v690, %v694
        %v699 = vmul.f32 %v691, %v695
        %v700 = vmul.f32 %v692, %v696
        %v701 = vmul.f32 %v693, %v697
        %v702 = vld [vmem:[#allocation2 + $0x260] sm:$0xff]
        %v703 = vld [vmem:[#allocation2 + $0x268] sm:$0xff]
        %v704 = vld [vmem:[#allocation2 + $0x270] sm:$0xff]
        %v705 = vld [vmem:[#allocation2 + $0x278] sm:$0xff]
        %v706 = vadd.f32 %v698, %v702
        %v707 = vadd.f32 %v699, %v703
        %v708 = vadd.f32 %v700, %v704
        %v709 = vadd.f32 %v701, %v705
        %v710 = vld [vmem:[#allocation2 + $0x20] sm:$0xff]
        %v711 = vld [vmem:[#allocation2 + $0x28] sm:$0xff]
        %v712 = vld [vmem:[#allocation2 + $0x30] sm:$0xff]
        %v713 = vld [vmem:[#allocation2 + $0x38] sm:$0xff]
        %v714 = vld [vmem:[#allocation2 + $0x280] sm:$0xff]
        %v715 = vld [vmem:[#allocation2 + $0x288] sm:$0xff]
        %v716 = vld [vmem:[#allocation2 + $0x290] sm:$0xff]
        %v717 = vld [vmem:[#allocation2 + $0x298] sm:$0xff]
        %vm718 = vcmask 261120
        %v720 = vsel %vm718, %v710, 0
        %v723 = vsel %vm718, %v711, 0
        %v726 = vsel %vm718, %v712, 0
        %v729 = vsel %vm718, %v713, 0
        %731 = vmatprep.subr.mxu0 0.0
        %732 = vmatpush1.msra.mxu0 %v706
        %733 = vmatprep.subr.mxu0 0.0
        %734 = vmatpush1.msra.mxu0 %v707
        %735 = vmatprep.subr.mxu0 0.0
        %736 = vmatpush1.msra.mxu0 %v708
        %737 = vmatprep.subr.mxu0 0.0
        %738 = vmatpush1.msra.mxu0 %v709
        %739 = vmatprep.subr.mxu0 0.0
        %740 = vmatpush1.msra.mxu0 0.0
        %741 = vmatprep.subr.mxu0 0.0
        %742 = vmatpush1.msra.mxu0 0.0
        %743 = vmatprep.subr.mxu0 0.0
        %744 = vmatpush1.msra.mxu0 0.0
        %745 = vmatprep.subr.mxu0 0.0
        %746 = vmatpush1.msra.mxu0 0.0
        %747 = vmatprep.subr.mxu0 0.0
        %748 = vmatpush1.msra.mxu0 0.0
        %749 = vmatprep.subr.mxu0 0.0
        %750 = vmatpush1.msra.mxu0 0.0
        %751 = vmatprep.subr.mxu0 0.0
        %752 = vmatpush1.msra.mxu0 0.0
        %753 = vmatprep.subr.mxu0 0.0
        %754 = vmatpush1.msra.mxu0 0.0
        %755 = vmatprep.subr.mxu0 0.0
        %756 = vmatpush1.msra.mxu0 0.0
        %757 = vmatprep.subr.mxu0 0.0
        %758 = vmatpush1.msra.mxu0 0.0
        %759 = vmatprep.subr.mxu0 0.0
        %760 = vmatpush1.msra.mxu0 0.0
        %761 = vmatprep.subr.mxu0 0.0
        %762 = vmatpush1.msra.mxu0 0.0
        %763 = vmatprep.subr.mxu0 0.0
        %764 = vmatpush1.msra.mxu0 0.0
        %765 = vmatprep.subr.mxu0 0.0
        %766 = vmatpush1.msra.mxu0 0.0
        %767 = vmatprep.subr.mxu0 0.0
        %768 = vmatpush1.msra.mxu0 0.0
        %769 = vmatprep.subr.mxu0 0.0
        %770 = vmatpush1.msra.mxu0 0.0
        %771 = vmatprep.subr.mxu0 0.0
        %772 = vmatpush1.msra.mxu0 0.0
        %773 = vmatprep.subr.mxu0 0.0
        %774 = vmatpush1.msra.mxu0 0.0
        %775 = vmatprep.subr.mxu0 0.0
        %776 = vmatpush1.msra.mxu0 0.0
        %777 = vmatprep.subr.mxu0 0.0
        %778 = vmatpush1.msra.mxu0 0.0
        %779 = vmatprep.subr.mxu0 0.0
        %780 = vmatpush1.msra.mxu0 0.0
        %781 = vmatprep.subr.mxu0 0.0
        %782 = vmatpush1.msra.mxu0 0.0
        %783 = vmatprep.subr.mxu0 0.0
        %784 = vmatpush1.msra.mxu0 0.0
        %785 = vmatprep.subr.mxu0 0.0
        %786 = vmatpush1.msra.mxu0 0.0
        %787 = vmatprep.subr.mxu0 0.0
        %788 = vmatpush1.msra.mxu0 0.0
        %789 = vmatprep.subr.mxu0 0.0
        %790 = vmatpush1.msra.mxu0 0.0
        %791 = vmatprep.subr.mxu0 0.0
        %792 = vmatpush1.msra.mxu0 0.0
        %793 = vmatprep.subr.mxu0 0.0
        %794 = vmatpush1.msra.mxu0 0.0
        %795 = vmatprep.mubr.f32.mxu0 0.0
        %796 = vmatmul.mubr.f32.gmra.mrb[0].mxu0 %v720
        %v797 = vpop.f32.mrb[0].mxu0
        %v798 = vadd.f32 %v714, %v797
        %v799 = vpop.f32.mrb[0].mxu0
        %800 = vmatprep.mubr.f32.mxu0 0.0
        %801 = vmatmul.mubr.f32.gmra.mrb[0].mxu0 %v723
        %v802 = vpop.f32.mrb[0].mxu0
        %v803 = vadd.f32 %v715, %v802
        %v804 = vpop.f32.mrb[0].mxu0
        %805 = vmatprep.mubr.f32.mxu0 0.0
        %806 = vmatmul.mubr.f32.gmra.mrb[0].mxu0 %v726
        %v807 = vpop.f32.mrb[0].mxu0
        %v808 = vadd.f32 %v716, %v807
        %v809 = vpop.f32.mrb[0].mxu0
        %810 = vmatprep.mubr.f32.mxu0 0.0
        %811 = vmatmul.mubr.f32.gmra.mrb[0].mxu0 %v729
        %v812 = vpop.f32.mrb[0].mxu0
        %v813 = vadd.f32 %v717, %v812
        %v814 = vpop.f32.mrb[0].mxu0
        %815 = vdwg.mxu0
        %v816 = vadd.f32 %v798, %v803
        %v817 = vadd.f32 %v816, %v808
        %v818 = vadd.f32 %v817, %v813
        %v819 = vrot.slane %v818, 4
        %v820 = vadd.f32 %v818, %v819
        %v821 = vrot.slane %v820, 2
        %v822 = vadd.f32 %v820, %v821
        %v823 = vrot.slane %v822, 1
        %v824 = vadd.f32 %v822, %v823
        %v825 = vmul.f32 %v824, %v668
        %v826 = vsub.f32 %v798, %v825
        %v827 = vsub.f32 %v803, %v825
        %v828 = vsub.f32 %v808, %v825
        %v829 = vsub.f32 %v813, %v825
        %v830 = vmul.f32 %v826, %v826
        %v831 = vmul.f32 %v827, %v827
        %v832 = vmul.f32 %v828, %v828
        %v833 = vmul.f32 %v829, %v829
        %v834 = vadd.f32 %v830, %v831
        %v835 = vadd.f32 %v834, %v832
        %v836 = vadd.f32 %v835, %v833
        %v837 = vrot.slane %v836, 4
        %v838 = vadd.f32 %v836, %v837
        %v839 = vrot.slane %v838, 2
        %v840 = vadd.f32 %v838, %v839
        %v841 = vrot.slane %v840, 1
        %v842 = vadd.f32 %v840, %v841
        %v843 = vmul.f32 %v842, %v668
        %v844 = vadd.f32 %v843, 1e-05
        %v845 = vrsqrt.pop %v844
        %v846 = vmul.f32 %v826, %v845
        %v847 = vmul.f32 %v827, %v845
        %v848 = vmul.f32 %v828, %v845
        %v849 = vmul.f32 %v829, %v845
        %v850 = vld [vmem:[#allocation2 + $0x2a0] sm:$0xff]
        %v851 = vld [vmem:[#allocation2 + $0x2a8] sm:$0xff]
        %v852 = vld [vmem:[#allocation2 + $0x2b0] sm:$0xff]
        %v853 = vld [vmem:[#allocation2 + $0x2b8] sm:$0xff]
        %v854 = vmul.f32 %v846, %v850
        %v855 = vmul.f32 %v847, %v851
        %v856 = vmul.f32 %v848, %v852
        %v857 = vmul.f32 %v849, %v853
        %v858 = vld [vmem:[#allocation2 + $0x2c0] sm:$0xff]
        %v859 = vld [vmem:[#allocation2 + $0x2c8] sm:$0xff]
        %v860 = vld [vmem:[#allocation2 + $0x2d0] sm:$0xff]
        %v861 = vld [vmem:[#allocation2 + $0x2d8] sm:$0xff]
        %v862 = vadd.f32 %v854, %v858
        %v863 = vadd.f32 %v855, %v859
        %v864 = vadd.f32 %v856, %v860
        %v865 = vadd.f32 %v857, %v861
        %v866 = vld [vmem:[#allocation2 + $0x40] sm:$0xff]
        %v867 = vld [vmem:[#allocation2 + $0x48] sm:$0xff]
        %v868 = vld [vmem:[#allocation2 + $0x50] sm:$0xff]
        %v869 = vld [vmem:[#allocation2 + $0x58] sm:$0xff]
        %v870 = vld [vmem:[#allocation2 + $0x60] sm:$0xff]
        %v871 = vld [vmem:[#allocation2 + $0x68] sm:$0xff]
        %v872 = vld [vmem:[#allocation2 + $0x70] sm:$0xff]
        %v873 = vld [vmem:[#allocation2 + $0x78] sm:$0xff]
        %v874 = vld [vmem:[#allocation2 + $0x80] sm:$0xff]
        %v875 = vld [vmem:[#allocation2 + $0x88] sm:$0xff]
        %v876 = vld [vmem:[#allocation2 + $0x90] sm:$0xff]
        %v877 = vld [vmem:[#allocation2 + $0x98] sm:$0xff]
        %v878 = vld [vmem:[#allocation2 + $0x2e0] sm:$0xff]
        %v879 = vld [vmem:[#allocation2 + $0x2e8] sm:$0xff]
        %v880 = vld [vmem:[#allocation2 + $0x2f0] sm:$0xff]
        %v881 = vld [vmem:[#allocation2 + $0x2f8] sm:$0xff]
        %v882 = vld [vmem:[#allocation2 + $0x300] sm:$0xff]
        %v883 = vld [vmem:[#allocation2 + $0x308] sm:$0xff]
        %v884 = vld [vmem:[#allocation2 + $0x310] sm:$0xff]
        %v885 = vld [vmem:[#allocation2 + $0x318] sm:$0xff]
        %v886 = vld [vmem:[#allocation2 + $0x320] sm:$0xff]
        %v887 = vld [vmem:[#allocation2 + $0x328] sm:$0xff]
        %v888 = vld [vmem:[#allocation2 + $0x330] sm:$0xff]
        %v889 = vld [vmem:[#allocation2 + $0x338] sm:$0xff]
        %v891 = vsel %vm718, %v866, 0
        %v894 = vsel %vm718, %v867, 0
        %v897 = vsel %vm718, %v868, 0
        %v900 = vsel %vm718, %v869, 0
        %v903 = vsel %vm718, %v870, 0
        %v906 = vsel %vm718, %v871, 0
        %v909 = vsel %vm718, %v872, 0
        %v912 = vsel %vm718, %v873, 0
        %v915 = vsel %vm718, %v874, 0
        %v918 = vsel %vm718, %v875, 0
        %v921 = vsel %vm718, %v876, 0
        %v924 = vsel %vm718, %v877, 0
        %926 = vmatprep.subr.mxu0 0.0
        %927 = vmatpush1.msra.mxu0 %v862
        %928 = vmatprep.subr.mxu0 0.0
        %929 = vmatpush1.msra.mxu0 %v863
        %930 = vmatprep.subr.mxu0 0.0
        %931 = vmatpush1.msra.mxu0 %v864
        %932 = vmatprep.subr.mxu0 0.0
        %933 = vmatpush1.msra.mxu0 %v865
        %934 = vmatprep.subr.mxu0 0.0
        %935 = vmatpush1.msra.mxu0 0.0
        %936 = vmatprep.subr.mxu0 0.0
        %937 = vmatpush1.msra.mxu0 0.0
        %938 = vmatprep.subr.mxu0 0.0
        %939 = vmatpush1.msra.mxu0 0.0
        %940 = vmatprep.subr.mxu0 0.0
        %941 = vmatpush1.msra.mxu0 0.0
        %942 = vmatprep.subr.mxu0 0.0
        %943 = vmatpush1.msra.mxu0 0.0
        %944 = vmatprep.subr.mxu0 0.0
        %945 = vmatpush1.msra.mxu0 0.0
        %946 = vmatprep.subr.mxu0 0.0
        %947 = vmatpush1.msra.mxu0 0.0
        %948 = vmatprep.subr.mxu0 0.0
        %949 = vmatpush1.msra.mxu0 0.0
        %950 = vmatprep.subr.mxu0 0.0
        %951 = vmatpush1.msra.mxu0 0.0
        %952 = vmatprep.subr.mxu0 0.0
        %953 = vmatpush1.msra.mxu0 0.0
        %954 = vmatprep.subr.mxu0 0.0
        %955 = vmatpush1.msra.mxu0 0.0
        %956 = vmatprep.subr.mxu0 0.0
        %957 = vmatpush1.msra.mxu0 0.0
        %958 = vmatprep.subr.mxu0 0.0
        %959 = vmatpush1.msra.mxu0 0.0
        %960 = vmatprep.subr.mxu0 0.0
        %961 = vmatpush1.msra.mxu0 0.0
        %962 = vmatprep.subr.mxu0 0.0
        %963 = vmatpush1.msra.mxu0 0.0
        %964 = vmatprep.subr.mxu0 0.0
        %965 = vmatpush1.msra.mxu0 0.0
        %966 = vmatprep.subr.mxu0 0.0
        %967 = vmatpush1.msra.mxu0 0.0
        %968 = vmatprep.subr.mxu0 0.0
        %969 = vmatpush1.msra.mxu0 0.0
        %970 = vmatprep.subr.mxu0 0.0
        %971 = vmatpush1.msra.mxu0 0.0
        %972 = vmatprep.subr.mxu0 0.0
        %973 = vmatpush1.msra.mxu0 0.0
        %974 = vmatprep.subr.mxu0 0.0
        %975 = vmatpush1.msra.mxu0 0.0
        %976 = vmatprep.subr.mxu0 0.0
        %977 = vmatpush1.msra.mxu0 0.0
        %978 = vmatprep.subr.mxu0 0.0
        %979 = vmatpush1.msra.mxu0 0.0
        %980 = vmatprep.subr.mxu0 0.0
        %981 = vmatpush1.msra.mxu0 0.0
        %982 = vmatprep.subr.mxu0 0.0
        %983 = vmatpush1.msra.mxu0 0.0
        %984 = vmatprep.subr.mxu0 0.0
        %985 = vmatpush1.msra.mxu0 0.0
        %986 = vmatprep.subr.mxu0 0.0
        %987 = vmatpush1.msra.mxu0 0.0
        %988 = vmatprep.subr.mxu0 0.0
        %989 = vmatpush1.msra.mxu0 0.0
        %990 = vmatprep.mubr.f32.mxu0 0.0
        %991 = vmatmul.mubr.f32.gmra.mrb[0].mxu0 %v891
        %v992 = vpop.f32.mrb[0].mxu0
        %v993 = vadd.f32 %v878, %v992
        %v994 = vpop.f32.mrb[0].mxu0
        %995 = vmatprep.mubr.f32.mxu0 0.0
        %996 = vmatmul.mubr.f32.gmra.mrb[0].mxu0 %v894
        %v997 = vpop.f32.mrb[0].mxu0
        %v998 = vadd.f32 %v879, %v997
        %v999 = vpop.f32.mrb[0].mxu0
        %1000 = vmatprep.mubr.f32.mxu0 0.0
        %1001 = vmatmul.mubr.f32.gmra.mrb[0].mxu0 %v897
        %v1002 = vpop.f32.mrb[0].mxu0
        %v1003 = vadd.f32 %v880, %v1002
        %v1004 = vpop.f32.mrb[0].mxu0
        %1005 = vmatprep.mubr.f32.mxu0 0.0
        %1006 = vmatmul.mubr.f32.gmra.mrb[0].mxu0 %v900
        %v1007 = vpop.f32.mrb[0].mxu0
        %v1008 = vadd.f32 %v881, %v1007
        %v1009 = vpop.f32.mrb[0].mxu0
        %1010 = vmatprep.mubr.f32.mxu0 0.0
        %1011 = vmatmul.mubr.f32.gmra.mrb[0].mxu0 %v903
        %v1012 = vpop.f32.mrb[0].mxu0
        %v1013 = vadd.f32 %v882, %v1012
        %v1014 = vpop.f32.mrb[0].mxu0
        %1015 = vmatprep.mubr.f32.mxu0 0.0
        %1016 = vmatmul.mubr.f32.gmra.mrb[0].mxu0 %v906
        %v1017 = vpop.f32.mrb[0].mxu0
        %v1018 = vadd.f32 %v883, %v1017
        %v1019 = vpop.f32.mrb[0].mxu0
        %1020 = vmatprep.mubr.f32.mxu0 0.0
        %1021 = vmatmul.mubr.f32.gmra.mrb[0].mxu0 %v909
        %v1022 = vpop.f32.mrb[0].mxu0
        %v1023 = vadd.f32 %v884, %v1022
        %v1024 = vpop.f32.mrb[0].mxu0
        %1025 = vmatprep.mubr.f32.mxu0 0.0
        %1026 = vmatmul.mubr.f32.gmra.mrb[0].mxu0 %v912
        %v1027 = vpop.f32.mrb[0].mxu0
        %v1028 = vadd.f32 %v885, %v1027
        %v1029 = vpop.f32.mrb[0].mxu0
        %1030 = vmatprep.mubr.f32.mxu0 0.0
        %1031 = vmatmul.mubr.f32.gmra.mrb[0].mxu0 %v915
        %v1032 = vpop.f32.mrb[0].mxu0
        %v1033 = vadd.f32 %v886, %v1032
        %v1034 = vpop.f32.mrb[0].mxu0
        %1035 = vmatprep.mubr.f32.mxu0 0.0
        %1036 = vmatmul.mubr.f32.gmra.mrb[0].mxu0 %v918
        %v1037 = vpop.f32.mrb[0].mxu0
        %v1038 = vadd.f32 %v887, %v1037
        %v1039 = vpop.f32.mrb[0].mxu0
        %1040 = vmatprep.mubr.f32.mxu0 0.0
        %1041 = vmatmul.mubr.f32.gmra.mrb[0].mxu0 %v921
        %v1042 = vpop.f32.mrb[0].mxu0
        %v1043 = vadd.f32 %v888, %v1042
        %v1044 = vpop.f32.mrb[0].mxu0
        %1045 = vmatprep.mubr.f32.mxu0 0.0
        %1046 = vmatmul.mubr.f32.gmra.mrb[0].mxu0 %v924
        %v1047 = vpop.f32.mrb[0].mxu0
        %v1048 = vadd.f32 %v889, %v1047
        %v1049 = vpop.f32.mrb[0].mxu0
        %1050 = vdwg.mxu0
        %1051 = vxpose.xlu0.b32.start [1/16] %v993, 128
        %1052 = vxpose.xlu0.b32.cont [2/16] %v998, 128
        %1053 = vxpose.xlu0.b32.cont [3/16] 0.0, 128
        %1054 = vxpose.xlu0.b32.cont [4/16] 0.0, 128
        %1055 = vxpose.xlu0.b32.cont [5/16] 0.0, 128
        %1056 = vxpose.xlu0.b32.cont [6/16] 0.0, 128
        %1057 = vxpose.xlu0.b32.cont [7/16] 0.0, 128
        %1058 = vxpose.xlu0.b32.cont [8/16] 0.0, 128
        %1059 = vxpose.xlu0.b32.cont [9/16] 0.0, 128
        %1060 = vxpose.xlu0.b32.cont [10/16] 0.0, 128
        %1061 = vxpose.xlu0.b32.cont [11/16] 0.0, 128
        %1062 = vxpose.xlu0.b32.cont [12/16] 0.0, 128
        %1063 = vxpose.xlu0.b32.cont [13/16] 0.0, 128
        %1064 = vxpose.xlu0.b32.cont [14/16] 0.0, 128
        %1065 = vxpose.xlu0.b32.cont [15/16] 0.0, 128
        %1066 = vxpose.xlu0.b32.end [16/16] 0.0, 128
        %v1067 = vpop.trf.xlu0
        %v1068 = vpop.trf.xlu0
        %v1069 = vpop.trf.xlu0
        %v1070 = vpop.trf.xlu0
        %v1071 = vpop.trf.xlu0
        %v1072 = vpop.trf.xlu0
        %v1073 = vpop.trf.xlu0
        %v1074 = vpop.trf.xlu0
        %v1075 = vpop.trf.xlu0
        %v1076 = vpop.trf.xlu0
        %v1077 = vpop.trf.xlu0
        %v1078 = vpop.trf.xlu0
        %v1079 = vpop.trf.xlu0
        %v1080 = vpop.trf.xlu0
        %v1081 = vpop.trf.xlu0
        %v1082 = vpop.trf.xlu0
        %v1084 = vsel %vm246, %v1067, 0
        %v1087 = vsel %vm246, %v1068, 0
        %v1090 = vsel %vm246, %v1069, 0
        %v1093 = vsel %vm246, %v1070, 0
        %v1096 = vsel %vm246, %v1071, 0
        %v1099 = vsel %vm246, %v1072, 0
        %v1102 = vsel %vm246, %v1073, 0
        %v1105 = vsel %vm246, %v1074, 0
        %v1108 = vsel %vm246, %v1075, 0
        %v1111 = vsel %vm246, %v1076, 0
        %v1114 = vsel %vm246, %v1077, 0
        %v1117 = vsel %vm246, %v1078, 0
        %v1120 = vsel %vm246, %v1079, 0
        %v1123 = vsel %vm246, %v1080, 0
        %v1126 = vsel %vm246, %v1081, 0
        %v1129 = vsel %vm246, %v1082, 0
        %1131 = vmatprep.subr.mxu0 0.0
        %1132 = vmatpush1.msra.mxu0 %v1013
        %1133 = vmatprep.subr.mxu0 0.0
        %1134 = vmatpush1.msra.mxu0 %v1018
        %1135 = vmatprep.subr.mxu0 0.0
        %1136 = vmatpush1.msra.mxu0 0.0
        %1137 = vmatprep.subr.mxu0 0.0
        %1138 = vmatpush1.msra.mxu0 0.0
        %1139 = vmatprep.subr.mxu0 0.0
        %1140 = vmatpush1.msra.mxu0 0.0
        %1141 = vmatprep.subr.mxu0 0.0
        %1142 = vmatpush1.msra.mxu0 0.0
        %1143 = vmatprep.subr.mxu0 0.0
        %1144 = vmatpush1.msra.mxu0 0.0
        %1145 = vmatprep.subr.mxu0 0.0
        %1146 = vmatpush1.msra.mxu0 0.0
        %1147 = vmatprep.subr.mxu0 0.0
        %1148 = vmatpush1.msra.mxu0 0.0
        %1149 = vmatprep.subr.mxu0 0.0
        %1150 = vmatpush1.msra.mxu0 0.0
        %1151 = vmatprep.subr.mxu0 0.0
        %1152 = vmatpush1.msra.mxu0 0.0
        %1153 = vmatprep.subr.mxu0 0.0
        %1154 = vmatpush1.msra.mxu0 0.0
        %1155 = vmatprep.subr.mxu0 0.0
        %1156 = vmatpush1.msra.mxu0 0.0
        %1157 = vmatprep.subr.mxu0 0.0
        %1158 = vmatpush1.msra.mxu0 0.0
        %1159 = vmatprep.subr.mxu0 0.0
        %1160 = vmatpush1.msra.mxu0 0.0
        %1161 = vmatprep.subr.mxu0 0.0
        %1162 = vmatpush1.msra.mxu0 0.0
        %1163 = vmatprep.subr.mxu0 0.0
        %1164 = vmatpush1.msra.mxu0 0.0
        %1165 = vmatprep.subr.mxu0 0.0
        %1166 = vmatpush1.msra.mxu0 0.0
        %1167 = vmatprep.subr.mxu0 0.0
        %1168 = vmatpush1.msra.mxu0 0.0
        %1169 = vmatprep.subr.mxu0 0.0
        %1170 = vmatpush1.msra.mxu0 0.0
        %1171 = vmatprep.subr.mxu0 0.0
        %1172 = vmatpush1.msra.mxu0 0.0
        %1173 = vmatprep.subr.mxu0 0.0
        %1174 = vmatpush1.msra.mxu0 0.0
        %1175 = vmatprep.subr.mxu0 0.0
        %1176 = vmatpush1.msra.mxu0 0.0
        %1177 = vmatprep.subr.mxu0 0.0
        %1178 = vmatpush1.msra.mxu0 0.0
        %1179 = vmatprep.subr.mxu0 0.0
        %1180 = vmatpush1.msra.mxu0 0.0
        %1181 = vmatprep.subr.mxu0 0.0
        %1182 = vmatpush1.msra.mxu0 0.0
        %1183 = vmatprep.subr.mxu0 0.0
        %1184 = vmatpush1.msra.mxu0 0.0
        %1185 = vmatprep.subr.mxu0 0.0
        %1186 = vmatpush1.msra.mxu0 0.0
        %1187 = vmatprep.subr.mxu0 0.0
        %1188 = vmatpush1.msra.mxu0 0.0
        %1189 = vmatprep.subr.mxu0 0.0
        %1190 = vmatpush1.msra.mxu0 0.0
        %1191 = vmatprep.subr.mxu0 0.0
        %1192 = vmatpush1.msra.mxu0 0.0
        %1193 = vmatprep.subr.mxu0 0.0
        %1194 = vmatpush1.msra.mxu0 0.0
        %1195 = vmatprep.mubr.f32.mxu0 0.0
        %1196 = vmatmul.mubr.f32.gmra.mrb[0].mxu0 %v1084
        %v1197 = vpop.f32.mrb[0].mxu0
        %v1198 = vadd.f32 0.0, %v1197
        %v1199 = vpop.f32.mrb[0].mxu0
        %1200 = vmatprep.mubr.f32.mxu0 0.0
        %1201 = vmatmul.mubr.f32.gmra.mrb[0].mxu0 %v1087
        %v1202 = vpop.f32.mrb[0].mxu0
        %v1203 = vadd.f32 0.0, %v1202
        %v1204 = vpop.f32.mrb[0].mxu0
        %1205 = vmatprep.mubr.f32.mxu0 0.0
        %1206 = vmatmul.mubr.f32.gmra.mrb[0].mxu0 %v1090
        %v1207 = vpop.f32.mrb[0].mxu0
        %v1208 = vadd.f32 0.0, %v1207
        %v1209 = vpop.f32.mrb[0].mxu0
        %1210 = vmatprep.mubr.f32.mxu0 0.0
        %1211 = vmatmul.mubr.f32.gmra.mrb[0].mxu0 %v1093
        %v1212 = vpop.f32.mrb[0].mxu0
        %v1213 = vadd.f32 0.0, %v1212
        %v1214 = vpop.f32.mrb[0].mxu0
        %1215 = vmatprep.mubr.f32.mxu0 0.0
        %1216 = vmatmul.mubr.f32.gmra.mrb[0].mxu0 %v1096
        %v1217 = vpop.f32.mrb[0].mxu0
        %v1218 = vadd.f32 0.0, %v1217
        %v1219 = vpop.f32.mrb[0].mxu0
        %1220 = vmatprep.mubr.f32.mxu0 0.0
        %1221 = vmatmul.mubr.f32.gmra.mrb[0].mxu0 %v1099
        %v1222 = vpop.f32.mrb[0].mxu0
        %v1223 = vadd.f32 0.0, %v1222
        %v1224 = vpop.f32.mrb[0].mxu0
        %1225 = vmatprep.mubr.f32.mxu0 0.0
        %1226 = vmatmul.mubr.f32.gmra.mrb[0].mxu0 %v1102
        %v1227 = vpop.f32.mrb[0].mxu0
        %v1228 = vadd.f32 0.0, %v1227
        %v1229 = vpop.f32.mrb[0].mxu0
        %1230 = vmatprep.mubr.f32.mxu0 0.0
        %1231 = vmatmul.mubr.f32.gmra.mrb[0].mxu0 %v1105
        %v1232 = vpop.f32.mrb[0].mxu0
        %v1233 = vadd.f32 0.0, %v1232
        %v1234 = vpop.f32.mrb[0].mxu0
        %1235 = vmatprep.mubr.f32.mxu0 0.0
        %1236 = vmatmul.mubr.f32.gmra.mrb[0].mxu0 %v1108
        %v1237 = vpop.f32.mrb[0].mxu0
        %v1238 = vadd.f32 0.0, %v1237
        %v1239 = vpop.f32.mrb[0].mxu0
        %1240 = vmatprep.mubr.f32.mxu0 0.0
        %1241 = vmatmul.mubr.f32.gmra.mrb[0].mxu0 %v1111
        %v1242 = vpop.f32.mrb[0].mxu0
        %v1243 = vadd.f32 0.0, %v1242
        %v1244 = vpop.f32.mrb[0].mxu0
        %1245 = vmatprep.mubr.f32.mxu0 0.0
        %1246 = vmatmul.mubr.f32.gmra.mrb[0].mxu0 %v1114
        %v1247 = vpop.f32.mrb[0].mxu0
        %v1248 = vadd.f32 0.0, %v1247
        %v1249 = vpop.f32.mrb[0].mxu0
        %1250 = vmatprep.mubr.f32.mxu0 0.0
        %1251 = vmatmul.mubr.f32.gmra.mrb[0].mxu0 %v1117
        %v1252 = vpop.f32.mrb[0].mxu0
        %v1253 = vadd.f32 0.0, %v1252
        %v1254 = vpop.f32.mrb[0].mxu0
        %1255 = vmatprep.mubr.f32.mxu0 0.0
        %1256 = vmatmul.mubr.f32.gmra.mrb[0].mxu0 %v1120
        %v1257 = vpop.f32.mrb[0].mxu0
        %v1258 = vadd.f32 0.0, %v1257
        %v1259 = vpop.f32.mrb[0].mxu0
        %1260 = vmatprep.mubr.f32.mxu0 0.0
        %1261 = vmatmul.mubr.f32.gmra.mrb[0].mxu0 %v1123
        %v1262 = vpop.f32.mrb[0].mxu0
        %v1263 = vadd.f32 0.0, %v1262
        %v1264 = vpop.f32.mrb[0].mxu0
        %1265 = vmatprep.mubr.f32.mxu0 0.0
        %1266 = vmatmul.mubr.f32.gmra.mrb[0].mxu0 %v1126
        %v1267 = vpop.f32.mrb[0].mxu0
        %v1268 = vadd.f32 0.0, %v1267
        %v1269 = vpop.f32.mrb[0].mxu0
        %1270 = vmatprep.mubr.f32.mxu0 0.0
        %1271 = vmatmul.mubr.f32.gmra.mrb[0].mxu0 %v1129
        %v1272 = vpop.f32.mrb[0].mxu0
        %v1273 = vadd.f32 0.0, %v1272
        %v1274 = vpop.f32.mrb[0].mxu0
        %1275 = vdwg.mxu0
        %v1276 = vmul.f32 %v1198, 0.25
        %v1277 = vmul.f32 %v1203, 0.25
        %v1278 = vmul.f32 %v1208, 0.25
        %v1279 = vmul.f32 %v1213, 0.25
        %v1280 = vmul.f32 %v1218, 0.25
        %v1281 = vmul.f32 %v1223, 0.25
        %v1282 = vmul.f32 %v1228, 0.25
        %v1283 = vmul.f32 %v1233, 0.25
        %v1284 = vmul.f32 %v1238, 0.25
        %v1285 = vmul.f32 %v1243, 0.25
        %v1286 = vmul.f32 %v1248, 0.25
        %v1287 = vmul.f32 %v1253, 0.25
        %v1288 = vmul.f32 %v1258, 0.25
        %v1289 = vmul.f32 %v1263, 0.25
        %v1290 = vmul.f32 %v1268, 0.25
        %v1291 = vmul.f32 %v1273, 0.25
        %1292 = vmax.xlane.f32.xlu0 %v1276
        %v1293 = vpop.xlane.xlu0 %1292
        %1294 = vmax.xlane.f32.xlu0 %v1277
        %v1295 = vpop.xlane.xlu0 %1294
        %1296 = vmax.xlane.f32.xlu0 %v1278
        %v1297 = vpop.xlane.xlu0 %1296
        %1298 = vmax.xlane.f32.xlu0 %v1279
        %v1299 = vpop.xlane.xlu0 %1298
        %1300 = vmax.xlane.f32.xlu0 %v1280
        %v1301 = vpop.xlane.xlu0 %1300
        %1302 = vmax.xlane.f32.xlu0 %v1281
        %v1303 = vpop.xlane.xlu0 %1302
        %1304 = vmax.xlane.f32.xlu0 %v1282
        %v1305 = vpop.xlane.xlu0 %1304
        %1306 = vmax.xlane.f32.xlu0 %v1283
        %v1307 = vpop.xlane.xlu0 %1306
        %1308 = vmax.xlane.f32.xlu0 %v1284
        %v1309 = vpop.xlane.xlu0 %1308
        %1310 = vmax.xlane.f32.xlu0 %v1285
        %v1311 = vpop.xlane.xlu0 %1310
        %1312 = vmax.xlane.f32.xlu0 %v1286
        %v1313 = vpop.xlane.xlu0 %1312
        %1314 = vmax.xlane.f32.xlu0 %v1287
        %v1315 = vpop.xlane.xlu0 %1314
        %1316 = vmax.xlane.f32.xlu0 %v1288
        %v1317 = vpop.xlane.xlu0 %1316
        %1318 = vmax.xlane.f32.xlu0 %v1289
        %v1319 = vpop.xlane.xlu0 %1318
        %1320 = vmax.xlane.f32.xlu0 %v1290
        %v1321 = vpop.xlane.xlu0 %1320
        %1322 = vmax.xlane.f32.xlu0 %v1291
        %v1323 = vpop.xlane.xlu0 %1322
        %v1324 = vsub.f32 %v1276, %v1293
        %v1325 = vsub.f32 %v1277, %v1295
        %v1326 = vsub.f32 %v1278, %v1297
        %v1327 = vsub.f32 %v1279, %v1299
        %v1328 = vsub.f32 %v1280, %v1301
        %v1329 = vsub.f32 %v1281, %v1303
        %v1330 = vsub.f32 %v1282, %v1305
        %v1331 = vsub.f32 %v1283, %v1307
        %v1332 = vsub.f32 %v1284, %v1309
        %v1333 = vsub.f32 %v1285, %v1311
        %v1334 = vsub.f32 %v1286, %v1313
        %v1335 = vsub.f32 %v1287, %v1315
        %v1336 = vsub.f32 %v1288, %v1317
        %v1337 = vsub.f32 %v1289, %v1319
        %v1338 = vsub.f32 %v1290, %v1321
        %v1339 = vsub.f32 %v1291, %v1323
        %v1340 = vmul.f32 %v1324, 1.442695
        %v1341 = vpow.pop %v1340
        %v1342 = vmul.f32 %v1325, 1.442695
        %v1343 = vpow.pop %v1342
        %v1344 = vmul.f32 %v1326, 1.442695
        %v1345 = vpow.pop %v1344
        %v1346 = vmul.f32 %v1327, 1.442695
        %v1347 = vpow.pop %v1346
        %v1348 = vmul.f32 %v1328, 1.442695
        %v1349 = vpow.pop %v1348
        %v1350 = vmul.f32 %v1329, 1.442695
        %v1351 = vpow.pop %v1350
        %v1352 = vmul.f32 %v1330, 1.442695
        %v1353 = vpow.pop %v1352
        %v1354 = vmul.f32 %v1331, 1.442695
        %v1355 = vpow.pop %v1354
        %v1356 = vmul.f32 %v1332, 1.442695
        %v1357 = vpow.pop %v1356
        %v1358 = vmul.f32 %v1333, 1.442695
        %v1359 = vpow.pop %v1358
        %v1360 = vmul.f32 %v1334, 1.442695
        %v1361 = vpow.pop %v1360
        %v1362 = vmul.f32 %v1335, 1.442695
        %v1363 = vpow.pop %v1362
        %v1364 = vmul.f32 %v1336, 1.442695
        %v1365 = vpow.pop %v1364
        %v1366 = vmul.f32 %v1337, 1.442695
        %v1367 = vpow.pop %v1366
        %v1368 = vmul.f32 %v1338, 1.442695
        %v1369 = vpow.pop %v1368
        %v1370 = vmul.f32 %v1339, 1.442695
        %v1371 = vpow.pop %v1370
        %1372 = vadd.xlane.f32.xlu0 %v1341
        %v1373 = vpop.xlane.xlu0 %1372
        %1374 = vadd.xlane.f32.xlu0 %v1343
        %v1375 = vpop.xlane.xlu0 %1374
        %1376 = vadd.xlane.f32.xlu0 %v1345
        %v1377 = vpop.xlane.xlu0 %1376
        %1378 = vadd.xlane.f32.xlu0 %v1347
        %v1379 = vpop.xlane.xlu0 %1378
        %1380 = vadd.xlane.f32.xlu0 %v1349
        %v1381 = vpop.xlane.xlu0 %1380
        %1382 = vadd.xlane.f32.xlu0 %v1351
        %v1383 = vpop.xlane.xlu0 %1382
        %1384 = vadd.xlane.f32.xlu0 %v1353
        %v1385 = vpop.xlane.xlu0 %1384
        %1386 = vadd.xlane.f32.xlu0 %v1355
        %v1387 = vpop.xlane.xlu0 %1386
        %1388 = vadd.xlane.f32.xlu0 %v1357
        %v1389 = vpop.xlane.xlu0 %1388
        %1390 = vadd.xlane.f32.xlu0 %v1359
        %v1391 = vpop.xlane.xlu0 %1390
        %1392 = vadd.xlane.f32.xlu0 %v1361
        %v1393 = vpop.xlane.xlu0 %1392
        %1394 = vadd.xlane.f32.xlu0 %v1363
        %v1395 = vpop.xlane.xlu0 %1394
        %1396 = vadd.xlane.f32.xlu0 %v1365
        %v1397 = vpop.xlane.xlu0 %1396
        %1398 = vadd.xlane.f32.xlu0 %v1367
        %v1399 = vpop.xlane.xlu0 %1398
        %1400 = vadd.xlane.f32.xlu0 %v1369
        %v1401 = vpop.xlane.xlu0 %1400
        %1402 = vadd.xlane.f32.xlu0 %v1371
        %v1403 = vpop.xlane.xlu0 %1402
        %v1404 = vrcp.pop %v1373
        %v1405 = vrcp.pop %v1375
        %v1406 = vrcp.pop %v1377
        %v1407 = vrcp.pop %v1379
        %v1408 = vrcp.pop %v1381
        %v1409 = vrcp.pop %v1383
        %v1410 = vrcp.pop %v1385
        %v1411 = vrcp.pop %v1387
        %v1412 = vrcp.pop %v1389
        %v1413 = vrcp.pop %v1391
        %v1414 = vrcp.pop %v1393
        %v1415 = vrcp.pop %v1395
        %v1416 = vrcp.pop %v1397
        %v1417 = vrcp.pop %v1399
        %v1418 = vrcp.pop %v1401
        %v1419 = vrcp.pop %v1403
        %v1420 = vmul.f32 %v1341, %v1404
        %v1421 = vmul.f32 %v1343, %v1405
        %v1422 = vmul.f32 %v1345, %v1406
        %v1423 = vmul.f32 %v1347, %v1407
        %v1424 = vmul.f32 %v1349, %v1408
        %v1425 = vmul.f32 %v1351, %v1409
        %v1426 = vmul.f32 %v1353, %v1410
        %v1427 = vmul.f32 %v1355, %v1411
        %v1428 = vmul.f32 %v1357, %v1412
        %v1429 = vmul.f32 %v1359, %v1413
        %v1430 = vmul.f32 %v1361, %v1414
        %v1431 = vmul.f32 %v1363, %v1415
        %v1432 = vmul.f32 %v1365, %v1416
        %v1433 = vmul.f32 %v1367, %v1417
        %v1434 = vmul.f32 %v1369, %v1418
        %v1435 = vmul.f32 %v1371, %v1419
        %1436 = vmatprep.subr.mxu0 0.0
        %1437 = vmatpush1.xpose.msra.mxu0 %v1420
        %1438 = vmatprep.subr.mxu0 0.0
        %1439 = vmatpush1.xpose.msra.mxu0 %v1421
        %1440 = vmatprep.subr.mxu0 0.0
        %1441 = vmatpush1.xpose.msra.mxu0 %v1422
        %1442 = vmatprep.subr.mxu0 0.0
        %1443 = vmatpush1.xpose.msra.mxu0 %v1423
        %1444 = vmatprep.subr.mxu0 0.0
        %1445 = vmatpush1.xpose.msra.mxu0 %v1424
        %1446 = vmatprep.subr.mxu0 0.0
        %1447 = vmatpush1.xpose.msra.mxu0 %v1425
        %1448 = vmatprep.subr.mxu0 0.0
        %1449 = vmatpush1.xpose.msra.mxu0 %v1426
        %1450 = vmatprep.subr.mxu0 0.0
        %1451 = vmatpush1.xpose.msra.mxu0 %v1427
        %1452 = vmatprep.subr.mxu0 0.0
        %1453 = vmatpush1.xpose.msra.mxu0 %v1428
        %1454 = vmatprep.subr.mxu0 0.0
        %1455 = vmatpush1.xpose.msra.mxu0 %v1429
        %1456 = vmatprep.subr.mxu0 0.0
        %1457 = vmatpush1.xpose.msra.mxu0 %v1430
        %1458 = vmatprep.subr.mxu0 0.0
        %1459 = vmatpush1.xpose.msra.mxu0 %v1431
        %1460 = vmatprep.subr.mxu0 0.0
        %1461 = vmatpush1.xpose.msra.mxu0 %v1432
        %1462 = vmatprep.subr.mxu0 0.0
        %1463 = vmatpush1.xpose.msra.mxu0 %v1433
        %1464 = vmatprep.subr.mxu0 0.0
        %1465 = vmatpush1.xpose.msra.mxu0 %v1434
        %1466 = vmatprep.subr.mxu0 0.0
        %1467 = vmatpush1.xpose.msra.mxu0 %v1435
        %1468 = vmatprep.subr.mxu0 0.0
        %1469 = vmatpush1.xpose.msra.mxu0 0.0
        %1470 = vmatprep.subr.mxu0 0.0
        %1471 = vmatpush1.xpose.msra.mxu0 0.0
        %1472 = vmatprep.subr.mxu0 0.0
        %1473 = vmatpush1.xpose.msra.mxu0 0.0
        %1474 = vmatprep.subr.mxu0 0.0
        %1475 = vmatpush1.xpose.msra.mxu0 0.0
        %1476 = vmatprep.subr.mxu0 0.0
        %1477 = vmatpush1.xpose.msra.mxu0 0.0
        %1478 = vmatprep.subr.mxu0 0.0
        %1479 = vmatpush1.xpose.msra.mxu0 0.0
        %1480 = vmatprep.subr.mxu0 0.0
        %1481 = vmatpush1.xpose.msra.mxu0 0.0
        %1482 = vmatprep.subr.mxu0 0.0
        %1483 = vmatpush1.xpose.msra.mxu0 0.0
        %1484 = vmatprep.subr.mxu0 0.0
        %1485 = vmatpush1.xpose.msra.mxu0 0.0
        %1486 = vmatprep.subr.mxu0 0.0
        %1487 = vmatpush1.xpose.msra.mxu0 0.0
        %1488 = vmatprep.subr.mxu0 0.0
        %1489 = vmatpush1.xpose.msra.mxu0 0.0
        %1490 = vmatprep.subr.mxu0 0.0
        %1491 = vmatpush1.xpose.msra.mxu0 0.0
        %1492 = vmatprep.subr.mxu0 0.0
        %1493 = vmatpush1.xpose.msra.mxu0 0.0
        %1494 = vmatprep.subr.mxu0 0.0
        %1495 = vmatpush1.xpose.msra.mxu0 0.0
        %1496 = vmatprep.subr.mxu0 0.0
        %1497 = vmatpush1.xpose.msra.mxu0 0.0
        %1498 = vmatprep.subr.mxu0 0.0
        %1499 = vmatpush1.xpose.msra.mxu0 0.0
        %1500 = vmatprep.mubr.f32.mxu0 0.0
        %1501 = vmatmul.mubr.f32.gmra.mrb[0].mxu0 %v1033
        %v1502 = vpop.f32.mrb[0].mxu0
        %v1503 = vadd.f32 0.0, %v1502
        %v1504 = vpop.f32.mrb[0].mxu0
        %1505 = vmatprep.mubr.f32.mxu0 0.0
        %1506 = vmatmul.mubr.f32.gmra.mrb[0].mxu0 %v1038
        %v1507 = vpop.f32.mrb[0].mxu0
        %v1508 = vadd.f32 0.0, %v1507
        %v1509 = vpop.f32.mrb[0].mxu0
        %1510 = vdwg.mxu0
        %1511 = vxpose.xlu0.b32.start [1/16] %v1003, 128
        %1512 = vxpose.xlu0.b32.cont [2/16] %v1008, 128
        %1513 = vxpose.xlu0.b32.cont [3/16] 0.0, 128
        %1514 = vxpose.xlu0.b32.cont [4/16] 0.0, 128
        %1515 = vxpose.xlu0.b32.cont [5/16] 0.0, 128
        %1516 = vxpose.xlu0.b32.cont [6/16] 0.0, 128
        %1517 = vxpose.xlu0.b32.cont [7/16] 0.0, 128
        %1518 = vxpose.xlu0.b32.cont [8/16] 0.0, 128
        %1519 = vxpose.xlu0.b32.cont [9/16] 0.0, 128
        %1520 = vxpose.xlu0.b32.cont [10/16] 0.0, 128
        %1521 = vxpose.xlu0.b32.cont [11/16] 0.0, 128
        %1522 = vxpose.xlu0.b32.cont [12/16] 0.0, 128
        %1523 = vxpose.xlu0.b32.cont [13/16] 0.0, 128
        %1524 = vxpose.xlu0.b32.cont [14/16] 0.0, 128
        %1525 = vxpose.xlu0.b32.cont [15/16] 0.0, 128
        %1526 = vxpose.xlu0.b32.end [16/16] 0.0, 128
        %v1527 = vpop.trf.xlu0
        %v1528 = vpop.trf.xlu0
        %v1529 = vpop.trf.xlu0
        %v1530 = vpop.trf.xlu0
        %v1531 = vpop.trf.xlu0
        %v1532 = vpop.trf.xlu0
        %v1533 = vpop.trf.xlu0
        %v1534 = vpop.trf.xlu0
        %v1535 = vpop.trf.xlu0
        %v1536 = vpop.trf.xlu0
        %v1537 = vpop.trf.xlu0
        %v1538 = vpop.trf.xlu0
        %v1539 = vpop.trf.xlu0
        %v1540 = vpop.trf.xlu0
        %v1541 = vpop.trf.xlu0
        %v1542 = vpop.trf.xlu0
        %v1544 = vsel %vm246, %v1527, 0
        %v1547 = vsel %vm246, %v1528, 0
        %v1550 = vsel %vm246, %v1529, 0
        %v1553 = vsel %vm246, %v1530, 0
        %v1556 = vsel %vm246, %v1531, 0
        %v1559 = vsel %vm246, %v1532, 0
        %v1562 = vsel %vm246, %v1533, 0
        %v1565 = vsel %vm246, %v1534, 0
        %v1568 = vsel %vm246, %v1535, 0
        %v1571 = vsel %vm246, %v1536, 0
        %v1574 = vsel %vm246, %v1537, 0
        %v1577 = vsel %vm246, %v1538, 0
        %v1580 = vsel %vm246, %v1539, 0
        %v1583 = vsel %vm246, %v1540, 0
        %v1586 = vsel %vm246, %v1541, 0
        %v1589 = vsel %vm246, %v1542, 0
        %1591 = vmatprep.subr.mxu0 0.0
        %1592 = vmatpush1.msra.mxu0 %v1023
        %1593 = vmatprep.subr.mxu0 0.0
        %1594 = vmatpush1.msra.mxu0 %v1028
        %1595 = vmatprep.subr.mxu0 0.0
        %1596 = vmatpush1.msra.mxu0 0.0
        %1597 = vmatprep.subr.mxu0 0.0
        %1598 = vmatpush1.msra.mxu0 0.0
        %1599 = vmatprep.subr.mxu0 0.0
        %1600 = vmatpush1.msra.mxu0 0.0
        %1601 = vmatprep.subr.mxu0 0.0
        %1602 = vmatpush1.msra.mxu0 0.0
        %1603 = vmatprep.subr.mxu0 0.0
        %1604 = vmatpush1.msra.mxu0 0.0
        %1605 = vmatprep.subr.mxu0 0.0
        %1606 = vmatpush1.msra.mxu0 0.0
        %1607 = vmatprep.subr.mxu0 0.0
        %1608 = vmatpush1.msra.mxu0 0.0
        %1609 = vmatprep.subr.mxu0 0.0
        %1610 = vmatpush1.msra.mxu0 0.0
        %1611 = vmatprep.subr.mxu0 0.0
        %1612 = vmatpush1.msra.mxu0 0.0
        %1613 = vmatprep.subr.mxu0 0.0
        %1614 = vmatpush1.msra.mxu0 0.0
        %1615 = vmatprep.subr.mxu0 0.0
        %1616 = vmatpush1.msra.mxu0 0.0
        %1617 = vmatprep.subr.mxu0 0.0
        %1618 = vmatpush1.msra.mxu0 0.0
        %1619 = vmatprep.subr.mxu0 0.0
        %1620 = vmatpush1.msra.mxu0 0.0
        %1621 = vmatprep.subr.mxu0 0.0
        %1622 = vmatpush1.msra.mxu0 0.0
        %1623 = vmatprep.subr.mxu0 0.0
        %1624 = vmatpush1.msra.mxu0 0.0
        %1625 = vmatprep.subr.mxu0 0.0
        %1626 = vmatpush1.msra.mxu0 0.0
        %1627 = vmatprep.subr.mxu0 0.0
        %1628 = vmatpush1.msra.mxu0 0.0
        %1629 = vmatprep.subr.mxu0 0.0
        %1630 = vmatpush1.msra.mxu0 0.0
        %1631 = vmatprep.subr.mxu0 0.0
        %1632 = vmatpush1.msra.mxu0 0.0
        %1633 = vmatprep.subr.mxu0 0.0
        %1634 = vmatpush1.msra.mxu0 0.0
        %1635 = vmatprep.subr.mxu0 0.0
        %1636 = vmatpush1.msra.mxu0 0.0
        %1637 = vmatprep.subr.mxu0 0.0
        %1638 = vmatpush1.msra.mxu0 0.0
        %1639 = vmatprep.subr.mxu0 0.0
        %1640 = vmatpush1.msra.mxu0 0.0
        %1641 = vmatprep.subr.mxu0 0.0
        %1642 = vmatpush1.msra.mxu0 0.0
        %1643 = vmatprep.subr.mxu0 0.0
        %1644 = vmatpush1.msra.mxu0 0.0
        %1645 = vmatprep.subr.mxu0 0.0
        %1646 = vmatpush1.msra.mxu0 0.0
        %1647 = vmatprep.subr.mxu0 0.0
        %1648 = vmatpush1.msra.mxu0 0.0
        %1649 = vmatprep.subr.mxu0 0.0
        %1650 = vmatpush1.msra.mxu0 0.0
        %1651 = vmatprep.subr.mxu0 0.0
        %1652 = vmatpush1.msra.mxu0 0.0
        %1653 = vmatprep.subr.mxu0 0.0
        %1654 = vmatpush1.msra.mxu0 0.0
        %1655 = vmatprep.mubr.f32.mxu0 0.0
        %1656 = vmatmul.mubr.f32.gmra.mrb[0].mxu0 %v1544
        %v1657 = vpop.f32.mrb[0].mxu0
        %v1658 = vadd.f32 0.0, %v1657
        %v1659 = vpop.f32.mrb[0].mxu0
        %1660 = vmatprep.mubr.f32.mxu0 0.0
        %1661 = vmatmul.mubr.f32.gmra.mrb[0].mxu0 %v1547
        %v1662 = vpop.f32.mrb[0].mxu0
        %v1663 = vadd.f32 0.0, %v1662
        %v1664 = vpop.f32.mrb[0].mxu0
        %1665 = vmatprep.mubr.f32.mxu0 0.0
        %1666 = vmatmul.mubr.f32.gmra.mrb[0].mxu0 %v1550
        %v1667 = vpop.f32.mrb[0].mxu0
        %v1668 = vadd.f32 0.0, %v1667
        %v1669 = vpop.f32.mrb[0].mxu0
        %1670 = vmatprep.mubr.f32.mxu0 0.0
        %1671 = vmatmul.mubr.f32.gmra.mrb[0].mxu0 %v1553
        %v1672 = vpop.f32.mrb[0].mxu0
        %v1673 = vadd.f32 0.0, %v1672
        %v1674 = vpop.f32.mrb[0].mxu0
        %1675 = vmatprep.mubr.f32.mxu0 0.0
        %1676 = vmatmul.mubr.f32.gmra.mrb[0].mxu0 %v1556
        %v1677 = vpop.f32.mrb[0].mxu0
        %v1678 = vadd.f32 0.0, %v1677
        %v1679 = vpop.f32.mrb[0].mxu0
        %1680 = vmatprep.mubr.f32.mxu0 0.0
        %1681 = vmatmul.mubr.f32.gmra.mrb[0].mxu0 %v1559
        %v1682 = vpop.f32.mrb[0].mxu0
        %v1683 = vadd.f32 0.0, %v1682
        %v1684 = vpop.f32.mrb[0].mxu0
        %1685 = vmatprep.mubr.f32.mxu0 0.0
        %1686 = vmatmul.mubr.f32.gmra.mrb[0].mxu0 %v1562
        %v1687 = vpop.f32.mrb[0].mxu0
        %v1688 = vadd.f32 0.0, %v1687
        %v1689 = vpop.f32.mrb[0].mxu0
        %1690 = vmatprep.mubr.f32.mxu0 0.0
        %1691 = vmatmul.mubr.f32.gmra.mrb[0].mxu0 %v1565
        %v1692 = vpop.f32.mrb[0].mxu0
        %v1693 = vadd.f32 0.0, %v1692
        %v1694 = vpop.f32.mrb[0].mxu0
        %1695 = vmatprep.mubr.f32.mxu0 0.0
        %1696 = vmatmul.mubr.f32.gmra.mrb[0].mxu0 %v1568
        %v1697 = vpop.f32.mrb[0].mxu0
        %v1698 = vadd.f32 0.0, %v1697
        %v1699 = vpop.f32.mrb[0].mxu0
        %1700 = vmatprep.mubr.f32.mxu0 0.0
        %1701 = vmatmul.mubr.f32.gmra.mrb[0].mxu0 %v1571
        %v1702 = vpop.f32.mrb[0].mxu0
        %v1703 = vadd.f32 0.0, %v1702
        %v1704 = vpop.f32.mrb[0].mxu0
        %1705 = vmatprep.mubr.f32.mxu0 0.0
        %1706 = vmatmul.mubr.f32.gmra.mrb[0].mxu0 %v1574
        %v1707 = vpop.f32.mrb[0].mxu0
        %v1708 = vadd.f32 0.0, %v1707
        %v1709 = vpop.f32.mrb[0].mxu0
        %1710 = vmatprep.mubr.f32.mxu0 0.0
        %1711 = vmatmul.mubr.f32.gmra.mrb[0].mxu0 %v1577
        %v1712 = vpop.f32.mrb[0].mxu0
        %v1713 = vadd.f32 0.0, %v1712
        %v1714 = vpop.f32.mrb[0].mxu0
        %1715 = vmatprep.mubr.f32.mxu0 0.0
        %1716 = vmatmul.mubr.f32.gmra.mrb[0].mxu0 %v1580
        %v1717 = vpop.f32.mrb[0].mxu0
        %v1718 = vadd.f32 0.0, %v1717
        %v1719 = vpop.f32.mrb[0].mxu0
        %1720 = vmatprep.mubr.f32.mxu0 0.0
        %1721 = vmatmul.mubr.f32.gmra.mrb[0].mxu0 %v1583
        %v1722 = vpop.f32.mrb[0].mxu0
        %v1723 = vadd.f32 0.0, %v1722
        %v1724 = vpop.f32.mrb[0].mxu0
        %1725 = vmatprep.mubr.f32.mxu0 0.0
        %1726 = vmatmul.mubr.f32.gmra.mrb[0].mxu0 %v1586
        %v1727 = vpop.f32.mrb[0].mxu0
        %v1728 = vadd.f32 0.0, %v1727
        %v1729 = vpop.f32.mrb[0].mxu0
        %1730 = vmatprep.mubr.f32.mxu0 0.0
        %1731 = vmatmul.mubr.f32.gmra.mrb[0].mxu0 %v1589
        %v1732 = vpop.f32.mrb[0].mxu0
        %v1733 = vadd.f32 0.0, %v1732
        %v1734 = vpop.f32.mrb[0].mxu0
        %1735 = vdwg.mxu0
        %v1736 = vmul.f32 %v1658, 0.25
        %v1737 = vmul.f32 %v1663, 0.25
        %v1738 = vmul.f32 %v1668, 0.25
        %v1739 = vmul.f32 %v1673, 0.25
        %v1740 = vmul.f32 %v1678, 0.25
        %v1741 = vmul.f32 %v1683, 0.25
        %v1742 = vmul.f32 %v1688, 0.25
        %v1743 = vmul.f32 %v1693, 0.25
        %v1744 = vmul.f32 %v1698, 0.25
        %v1745 = vmul.f32 %v1703, 0.25
        %v1746 = vmul.f32 %v1708, 0.25
        %v1747 = vmul.f32 %v1713, 0.25
        %v1748 = vmul.f32 %v1718, 0.25
        %v1749 = vmul.f32 %v1723, 0.25
        %v1750 = vmul.f32 %v1728, 0.25
        %v1751 = vmul.f32 %v1733, 0.25
        %1752 = vmax.xlane.f32.xlu0 %v1736
        %v1753 = vpop.xlane.xlu0 %1752
        %1754 = vmax.xlane.f32.xlu0 %v1737
        %v1755 = vpop.xlane.xlu0 %1754
        %1756 = vmax.xlane.f32.xlu0 %v1738
        %v1757 = vpop.xlane.xlu0 %1756
        %1758 = vmax.xlane.f32.xlu0 %v1739
        %v1759 = vpop.xlane.xlu0 %1758
        %1760 = vmax.xlane.f32.xlu0 %v1740
        %v1761 = vpop.xlane.xlu0 %1760
        %1762 = vmax.xlane.f32.xlu0 %v1741
        %v1763 = vpop.xlane.xlu0 %1762
        %1764 = vmax.xlane.f32.xlu0 %v1742
        %v1765 = vpop.xlane.xlu0 %1764
        %1766 = vmax.xlane.f32.xlu0 %v1743
        %v1767 = vpop.xlane.xlu0 %1766
        %1768 = vmax.xlane.f32.xlu0 %v1744
        %v1769 = vpop.xlane.xlu0 %1768
        %1770 = vmax.xlane.f32.xlu0 %v1745
        %v1771 = vpop.xlane.xlu0 %1770
        %1772 = vmax.xlane.f32.xlu0 %v1746
        %v1773 = vpop.xlane.xlu0 %1772
        %1774 = vmax.xlane.f32.xlu0 %v1747
        %v1775 = vpop.xlane.xlu0 %1774
        %1776 = vmax.xlane.f32.xlu0 %v1748
        %v1777 = vpop.xlane.xlu0 %1776
        %1778 = vmax.xlane.f32.xlu0 %v1749
        %v1779 = vpop.xlane.xlu0 %1778
        %1780 = vmax.xlane.f32.xlu0 %v1750
        %v1781 = vpop.xlane.xlu0 %1780
        %1782 = vmax.xlane.f32.xlu0 %v1751
        %v1783 = vpop.xlane.xlu0 %1782
        %v1784 = vsub.f32 %v1736, %v1753
        %v1785 = vsub.f32 %v1737, %v1755
        %v1786 = vsub.f32 %v1738, %v1757
        %v1787 = vsub.f32 %v1739, %v1759
        %v1788 = vsub.f32 %v1740, %v1761
        %v1789 = vsub.f32 %v1741, %v1763
        %v1790 = vsub.f32 %v1742, %v1765
        %v1791 = vsub.f32 %v1743, %v1767
        %v1792 = vsub.f32 %v1744, %v1769
        %v1793 = vsub.f32 %v1745, %v1771
        %v1794 = vsub.f32 %v1746, %v1773
        %v1795 = vsub.f32 %v1747, %v1775
        %v1796 = vsub.f32 %v1748, %v1777
        %v1797 = vsub.f32 %v1749, %v1779
        %v1798 = vsub.f32 %v1750, %v1781
        %v1799 = vsub.f32 %v1751, %v1783
        %v1800 = vmul.f32 %v1784, 1.442695
        %v1801 = vpow.pop %v1800
        %v1802 = vmul.f32 %v1785, 1.442695
        %v1803 = vpow.pop %v1802
        %v1804 = vmul.f32 %v1786, 1.442695
        %v1805 = vpow.pop %v1804
        %v1806 = vmul.f32 %v1787, 1.442695
        %v1807 = vpow.pop %v1806
        %v1808 = vmul.f32 %v1788, 1.442695
        %v1809 = vpow.pop %v1808
        %v1810 = vmul.f32 %v1789, 1.442695
        %v1811 = vpow.pop %v1810
        %v1812 = vmul.f32 %v1790, 1.442695
        %v1813 = vpow.pop %v1812
        %v1814 = vmul.f32 %v1791, 1.442695
        %v1815 = vpow.pop %v1814
        %v1816 = vmul.f32 %v1792, 1.442695
        %v1817 = vpow.pop %v1816
        %v1818 = vmul.f32 %v1793, 1.442695
        %v1819 = vpow.pop %v1818
        %v1820 = vmul.f32 %v1794, 1.442695
        %v1821 = vpow.pop %v1820
        %v1822 = vmul.f32 %v1795, 1.442695
        %v1823 = vpow.pop %v1822
        %v1824 = vmul.f32 %v1796, 1.442695
        %v1825 = vpow.pop %v1824
        %v1826 = vmul.f32 %v1797, 1.442695
        %v1827 = vpow.pop %v1826
        %v1828 = vmul.f32 %v1798, 1.442695
        %v1829 = vpow.pop %v1828
        %v1830 = vmul.f32 %v1799, 1.442695
        %v1831 = vpow.pop %v1830
        %1832 = vadd.xlane.f32.xlu0 %v1801
        %v1833 = vpop.xlane.xlu0 %1832
        %1834 = vadd.xlane.f32.xlu0 %v1803
        %v1835 = vpop.xlane.xlu0 %1834
        %1836 = vadd.xlane.f32.xlu0 %v1805
        %v1837 = vpop.xlane.xlu0 %1836
        %1838 = vadd.xlane.f32.xlu0 %v1807
        %v1839 = vpop.xlane.xlu0 %1838
        %1840 = vadd.xlane.f32.xlu0 %v1809
        %v1841 = vpop.xlane.xlu0 %1840
        %1842 = vadd.xlane.f32.xlu0 %v1811
        %v1843 = vpop.xlane.xlu0 %1842
        %1844 = vadd.xlane.f32.xlu0 %v1813
        %v1845 = vpop.xlane.xlu0 %1844
        %1846 = vadd.xlane.f32.xlu0 %v1815
        %v1847 = vpop.xlane.xlu0 %1846
        %1848 = vadd.xlane.f32.xlu0 %v1817
        %v1849 = vpop.xlane.xlu0 %1848
        %1850 = vadd.xlane.f32.xlu0 %v1819
        %v1851 = vpop.xlane.xlu0 %1850
        %1852 = vadd.xlane.f32.xlu0 %v1821
        %v1853 = vpop.xlane.xlu0 %1852
        %1854 = vadd.xlane.f32.xlu0 %v1823
        %v1855 = vpop.xlane.xlu0 %1854
        %1856 = vadd.xlane.f32.xlu0 %v1825
        %v1857 = vpop.xlane.xlu0 %1856
        %1858 = vadd.xlane.f32.xlu0 %v1827
        %v1859 = vpop.xlane.xlu0 %1858
        %1860 = vadd.xlane.f32.xlu0 %v1829
        %v1861 = vpop.xlane.xlu0 %1860
        %1862 = vadd.xlane.f32.xlu0 %v1831
        %v1863 = vpop.xlane.xlu0 %1862
        %v1864 = vrcp.pop %v1833
        %v1865 = vrcp.pop %v1835
        %v1866 = vrcp.pop %v1837
        %v1867 = vrcp.pop %v1839
        %v1868 = vrcp.pop %v1841
        %v1869 = vrcp.pop %v1843
        %v1870 = vrcp.pop %v1845
        %v1871 = vrcp.pop %v1847
        %v1872 = vrcp.pop %v1849
        %v1873 = vrcp.pop %v1851
        %v1874 = vrcp.pop %v1853
        %v1875 = vrcp.pop %v1855
        %v1876 = vrcp.pop %v1857
        %v1877 = vrcp.pop %v1859
        %v1878 = vrcp.pop %v1861
        %v1879 = vrcp.pop %v1863
        %v1880 = vmul.f32 %v1801, %v1864
        %v1881 = vmul.f32 %v1803, %v1865
        %v1882 = vmul.f32 %v1805, %v1866
        %v1883 = vmul.f32 %v1807, %v1867
        %v1884 = vmul.f32 %v1809, %v1868
        %v1885 = vmul.f32 %v1811, %v1869
        %v1886 = vmul.f32 %v1813, %v1870
        %v1887 = vmul.f32 %v1815, %v1871
        %v1888 = vmul.f32 %v1817, %v1872
        %v1889 = vmul.f32 %v1819, %v1873
        %v1890 = vmul.f32 %v1821, %v1874
        %v1891 = vmul.f32 %v1823, %v1875
        %v1892 = vmul.f32 %v1825, %v1876
        %v1893 = vmul.f32 %v1827, %v1877
        %v1894 = vmul.f32 %v1829, %v1878
        %v1895 = vmul.f32 %v1831, %v1879
        %1896 = vmatprep.subr.mxu0 0.0
        %1897 = vmatpush1.xpose.msra.mxu0 %v1880
        %1898 = vmatprep.subr.mxu0 0.0
        %1899 = vmatpush1.xpose.msra.mxu0 %v1881
        %1900 = vmatprep.subr.mxu0 0.0
        %1901 = vmatpush1.xpose.msra.mxu0 %v1882
        %1902 = vmatprep.subr.mxu0 0.0
        %1903 = vmatpush1.xpose.msra.mxu0 %v1883
        %1904 = vmatprep.subr.mxu0 0.0
        %1905 = vmatpush1.xpose.msra.mxu0 %v1884
        %1906 = vmatprep.subr.mxu0 0.0
        %1907 = vmatpush1.xpose.msra.mxu0 %v1885
        %1908 = vmatprep.subr.mxu0 0.0
        %1909 = vmatpush1.xpose.msra.mxu0 %v1886
        %1910 = vmatprep.subr.mxu0 0.0
        %1911 = vmatpush1.xpose.msra.mxu0 %v1887
        %1912 = vmatprep.subr.mxu0 0.0
        %1913 = vmatpush1.xpose.msra.mxu0 %v1888
        %1914 = vmatprep.subr.mxu0 0.0
        %1915 = vmatpush1.xpose.msra.mxu0 %v1889
        %1916 = vmatprep.subr.mxu0 0.0
        %1917 = vmatpush1.xpose.msra.mxu0 %v1890
        %1918 = vmatprep.subr.mxu0 0.0
        %1919 = vmatpush1.xpose.msra.mxu0 %v1891
        %1920 = vmatprep.subr.mxu0 0.0
        %1921 = vmatpush1.xpose.msra.mxu0 %v1892
        %1922 = vmatprep.subr.mxu0 0.0
        %1923 = vmatpush1.xpose.msra.mxu0 %v1893
        %1924 = vmatprep.subr.mxu0 0.0
        %1925 = vmatpush1.xpose.msra.mxu0 %v1894
        %1926 = vmatprep.subr.mxu0 0.0
        %1927 = vmatpush1.xpose.msra.mxu0 %v1895
        %1928 = vmatprep.subr.mxu0 0.0
        %1929 = vmatpush1.xpose.msra.mxu0 0.0
        %1930 = vmatprep.subr.mxu0 0.0
        %1931 = vmatpush1.xpose.msra.mxu0 0.0
        %1932 = vmatprep.subr.mxu0 0.0
        %1933 = vmatpush1.xpose.msra.mxu0 0.0
        %1934 = vmatprep.subr.mxu0 0.0
        %1935 = vmatpush1.xpose.msra.mxu0 0.0
        %1936 = vmatprep.subr.mxu0 0.0
        %1937 = vmatpush1.xpose.msra.mxu0 0.0
        %1938 = vmatprep.subr.mxu0 0.0
        %1939 = vmatpush1.xpose.msra.mxu0 0.0
        %1940 = vmatprep.subr.mxu0 0.0
        %1941 = vmatpush1.xpose.msra.mxu0 0.0
        %1942 = vmatprep.subr.mxu0 0.0
        %1943 = vmatpush1.xpose.msra.mxu0 0.0
        %1944 = vmatprep.subr.mxu0 0.0
        %1945 = vmatpush1.xpose.msra.mxu0 0.0
        %1946 = vmatprep.subr.mxu0 0.0
        %1947 = vmatpush1.xpose.msra.mxu0 0.0
        %1948 = vmatprep.subr.mxu0 0.0
        %1949 = vmatpush1.xpose.msra.mxu0 0.0
        %1950 = vmatprep.subr.mxu0 0.0
        %1951 = vmatpush1.xpose.msra.mxu0 0.0
        %1952 = vmatprep.subr.mxu0 0.0
        %1953 = vmatpush1.xpose.msra.mxu0 0.0
        %1954 = vmatprep.subr.mxu0 0.0
        %1955 = vmatpush1.xpose.msra.mxu0 0.0
        %1956 = vmatprep.subr.mxu0 0.0
        %1957 = vmatpush1.xpose.msra.mxu0 0.0
        %1958 = vmatprep.subr.mxu0 0.0
        %1959 = vmatpush1.xpose.msra.mxu0 0.0
        %1960 = vmatprep.mubr.f32.mxu0 0.0
        %1961 = vmatmul.mubr.f32.gmra.mrb[0].mxu0 %v1043
        %v1962 = vpop.f32.mrb[0].mxu0
        %v1963 = vadd.f32 0.0, %v1962
        %v1964 = vpop.f32.mrb[0].mxu0
        %1965 = vmatprep.mubr.f32.mxu0 0.0
        %1966 = vmatmul.mubr.f32.gmra.mrb[0].mxu0 %v1048
        %v1967 = vpop.f32.mrb[0].mxu0
        %v1968 = vadd.f32 0.0, %v1967
        %v1969 = vpop.f32.mrb[0].mxu0
        %1970 = vdwg.mxu0
        %v1971 = vld [vmem:[#allocation2 + $0xa0] sm:$0xff]
        %v1972 = vld [vmem:[#allocation2 + $0xa8] sm:$0xff]
        %v1973 = vld [vmem:[#allocation2 + $0xb0] sm:$0xff]
        %v1974 = vld [vmem:[#allocation2 + $0xb8] sm:$0xff]
        %v1975 = vld [vmem:[#allocation2 + $0x340] sm:$0xff]
        %v1976 = vld [vmem:[#allocation2 + $0x348] sm:$0xff]
        %v1977 = vld [vmem:[#allocation2 + $0x350] sm:$0xff]
        %v1978 = vld [vmem:[#allocation2 + $0x358] sm:$0xff]
        %v1980 = vsel %vm718, %v1971, 0
        %v1983 = vsel %vm718, %v1972, 0
        %v1986 = vsel %vm718, %v1973, 0
        %v1989 = vsel %vm718, %v1974, 0
        %1991 = vmatprep.subr.mxu0 0.0
        %1992 = vmatpush1.msra.mxu0 %v1503
        %1993 = vmatprep.subr.mxu0 0.0
        %1994 = vmatpush1.msra.mxu0 %v1508
        %1995 = vmatprep.subr.mxu0 0.0
        %1996 = vmatpush1.msra.mxu0 %v1963
        %1997 = vmatprep.subr.mxu0 0.0
        %1998 = vmatpush1.msra.mxu0 %v1968
        %1999 = vmatprep.subr.mxu0 0.0
        %2000 = vmatpush1.msra.mxu0 0.0
        %2001 = vmatprep.subr.mxu0 0.0
        %2002 = vmatpush1.msra.mxu0 0.0
        %2003 = vmatprep.subr.mxu0 0.0
        %2004 = vmatpush1.msra.mxu0 0.0
        %2005 = vmatprep.subr.mxu0 0.0
        %2006 = vmatpush1.msra.mxu0 0.0
        %2007 = vmatprep.subr.mxu0 0.0
        %2008 = vmatpush1.msra.mxu0 0.0
        %2009 = vmatprep.subr.mxu0 0.0
        %2010 = vmatpush1.msra.mxu0 0.0
        %2011 = vmatprep.subr.mxu0 0.0
        %2012 = vmatpush1.msra.mxu0 0.0
        %2013 = vmatprep.subr.mxu0 0.0
        %2014 = vmatpush1.msra.mxu0 0.0
        %2015 = vmatprep.subr.mxu0 0.0
        %2016 = vmatpush1.msra.mxu0 0.0
        %2017 = vmatprep.subr.mxu0 0.0
        %2018 = vmatpush1.msra.mxu0 0.0
        %2019 = vmatprep.subr.mxu0 0.0
        %2020 = vmatpush1.msra.mxu0 0.0
        %2021 = vmatprep.subr.mxu0 0.0
        %2022 = vmatpush1.msra.mxu0 0.0
        %2023 = vmatprep.subr.mxu0 0.0
        %2024 = vmatpush1.msra.mxu0 0.0
        %2025 = vmatprep.subr.mxu0 0.0
        %2026 = vmatpush1.msra.mxu0 0.0
        %2027 = vmatprep.subr.mxu0 0.0
        %2028 = vmatpush1.msra.mxu0 0.0
        %2029 = vmatprep.subr.mxu0 0.0
        %2030 = vmatpush1.msra.mxu0 0.0
        %2031 = vmatprep.subr.mxu0 0.0
        %2032 = vmatpush1.msra.mxu0 0.0
        %2033 = vmatprep.subr.mxu0 0.0
        %2034 = vmatpush1.msra.mxu0 0.0
        %2035 = vmatprep.subr.mxu0 0.0
        %2036 = vmatpush1.msra.mxu0 0.0
        %2037 = vmatprep.subr.mxu0 0.0
        %2038 = vmatpush1.msra.mxu0 0.0
        %2039 = vmatprep.subr.mxu0 0.0
        %2040 = vmatpush1.msra.mxu0 0.0
        %2041 = vmatprep.subr.mxu0 0.0
        %2042 = vmatpush1.msra.mxu0 0.0
        %2043 = vmatprep.subr.mxu0 0.0
        %2044 = vmatpush1.msra.mxu0 0.0
        %2045 = vmatprep.subr.mxu0 0.0
        %2046 = vmatpush1.msra.mxu0 0.0
        %2047 = vmatprep.subr.mxu0 0.0
        %2048 = vmatpush1.msra.mxu0 0.0
        %2049 = vmatprep.subr.mxu0 0.0
        %2050 = vmatpush1.msra.mxu0 0.0
        %2051 = vmatprep.subr.mxu0 0.0
        %2052 = vmatpush1.msra.mxu0 0.0
        %2053 = vmatprep.subr.mxu0 0.0
        %2054 = vmatpush1.msra.mxu0 0.0
        %2055 = vmatprep.mubr.f32.mxu0 0.0
        %2056 = vmatmul.mubr.f32.gmra.mrb[0].mxu0 %v1980
        %v2057 = vpop.f32.mrb[0].mxu0
        %v2058 = vadd.f32 %v1975, %v2057
        %v2059 = vpop.f32.mrb[0].mxu0
        %2060 = vmatprep.mubr.f32.mxu0 0.0
        %2061 = vmatmul.mubr.f32.gmra.mrb[0].mxu0 %v1983
        %v2062 = vpop.f32.mrb[0].mxu0
        %v2063 = vadd.f32 %v1976, %v2062
        %v2064 = vpop.f32.mrb[0].mxu0
        %2065 = vmatprep.mubr.f32.mxu0 0.0
        %2066 = vmatmul.mubr.f32.gmra.mrb[0].mxu0 %v1986
        %v2067 = vpop.f32.mrb[0].mxu0
        %v2068 = vadd.f32 %v1977, %v2067
        %v2069 = vpop.f32.mrb[0].mxu0
        %2070 = vmatprep.mubr.f32.mxu0 0.0
        %2071 = vmatmul.mubr.f32.gmra.mrb[0].mxu0 %v1989
        %v2072 = vpop.f32.mrb[0].mxu0
        %v2073 = vadd.f32 %v1978, %v2072
        %v2074 = vpop.f32.mrb[0].mxu0
        %2075 = vdwg.mxu0
        %v2076 = vadd.f32 %v862, %v2058
        %v2077 = vadd.f32 %v863, %v2063
        %v2078 = vadd.f32 %v864, %v2068
        %v2079 = vadd.f32 %v865, %v2073
        %v2080 = vadd.f32 %v2076, %v2077
        %v2081 = vadd.f32 %v2080, %v2078
        %v2082 = vadd.f32 %v2081, %v2079
        %v2083 = vrot.slane %v2082, 4
        %v2084 = vadd.f32 %v2082, %v2083
        %v2085 = vrot.slane %v2084, 2
        %v2086 = vadd.f32 %v2084, %v2085
        %v2087 = vrot.slane %v2086, 1
        %v2088 = vadd.f32 %v2086, %v2087
        %v2089 = vmul.f32 %v2088, %v668
        %v2090 = vsub.f32 %v2076, %v2089
        %v2091 = vsub.f32 %v2077, %v2089
        %v2092 = vsub.f32 %v2078, %v2089
        %v2093 = vsub.f32 %v2079, %v2089
        %v2094 = vmul.f32 %v2090, %v2090
        %v2095 = vmul.f32 %v2091, %v2091
        %v2096 = vmul.f32 %v2092, %v2092
        %v2097 = vmul.f32 %v2093, %v2093
        %v2098 = vadd.f32 %v2094, %v2095
        %v2099 = vadd.f32 %v2098, %v2096
        %v2100 = vadd.f32 %v2099, %v2097
        %v2101 = vrot.slane %v2100, 4
        %v2102 = vadd.f32 %v2100, %v2101
        %v2103 = vrot.slane %v2102, 2
        %v2104 = vadd.f32 %v2102, %v2103
        %v2105 = vrot.slane %v2104, 1
        %v2106 = vadd.f32 %v2104, %v2105
        %v2107 = vmul.f32 %v2106, %v668
        %v2108 = vadd.f32 %v2107, 1e-05
        %v2109 = vrsqrt.pop %v2108
        %v2110 = vmul.f32 %v2090, %v2109
        %v2111 = vmul.f32 %v2091, %v2109
        %v2112 = vmul.f32 %v2092, %v2109
        %v2113 = vmul.f32 %v2093, %v2109
        %v2114 = vld [vmem:[#allocation2 + $0x360] sm:$0xff]
        %v2115 = vld [vmem:[#allocation2 + $0x368] sm:$0xff]
        %v2116 = vld [vmem:[#allocation2 + $0x370] sm:$0xff]
        %v2117 = vld [vmem:[#allocation2 + $0x378] sm:$0xff]
        %v2118 = vmul.f32 %v2110, %v2114
        %v2119 = vmul.f32 %v2111, %v2115
        %v2120 = vmul.f32 %v2112, %v2116
        %v2121 = vmul.f32 %v2113, %v2117
        %v2122 = vld [vmem:[#allocation2 + $0x380] sm:$0xff]
        %v2123 = vld [vmem:[#allocation2 + $0x388] sm:$0xff]
        %v2124 = vld [vmem:[#allocation2 + $0x390] sm:$0xff]
        %v2125 = vld [vmem:[#allocation2 + $0x398] sm:$0xff]
        %v2126 = vadd.f32 %v2118, %v2122
        %v2127 = vadd.f32 %v2119, %v2123
        %v2128 = vadd.f32 %v2120, %v2124
        %v2129 = vadd.f32 %v2121, %v2125
        %v2130 = vld [vmem:[#allocation2 + $0xc0] sm:$0xff]
        %v2131 = vld [vmem:[#allocation2 + $0xc8] sm:$0xff]
        %v2132 = vld [vmem:[#allocation2 + $0xd0] sm:$0xff]
        %v2133 = vld [vmem:[#allocation2 + $0xd8] sm:$0xff]
        %v2134 = vld [vmem:[#allocation2 + $0xe0] sm:$0xff]
        %v2135 = vld [vmem:[#allocation2 + $0xe8] sm:$0xff]
        %v2136 = vld [vmem:[#allocation2 + $0xf0] sm:$0xff]
        %v2137 = vld [vmem:[#allocation2 + $0xf8] sm:$0xff]
        %v2138 = vld [vmem:[#allocation2 + $0x3a0] sm:$0xff]
        %v2139 = vld [vmem:[#allocation2 + $0x3a8] sm:$0xff]
        %v2140 = vld [vmem:[#allocation2 + $0x3b0] sm:$0xff]
        %v2141 = vld [vmem:[#allocation2 + $0x3b8] sm:$0xff]
        %v2142 = vld [vmem:[#allocation2 + $0x3c0] sm:$0xff]
        %v2143 = vld [vmem:[#allocation2 + $0x3c8] sm:$0xff]
        %v2144 = vld [vmem:[#allocation2 + $0x3d0] sm:$0xff]
        %v2145 = vld [vmem:[#allocation2 + $0x3d8] sm:$0xff]
        %v2147 = vsel %vm718, %v2130, 0
        %v2150 = vsel %vm718, %v2131, 0
        %v2153 = vsel %vm718, %v2132, 0
        %v2156 = vsel %vm718, %v2133, 0
        %v2159 = vsel %vm718, %v2134, 0
        %v2162 = vsel %vm718, %v2135, 0
        %v2165 = vsel %vm718, %v2136, 0
        %v2168 = vsel %vm718, %v2137, 0
        %2170 = vmatprep.subr.mxu0 0.0
        %2171 = vmatpush1.msra.mxu0 %v2126
        %2172 = vmatprep.subr.mxu0 0.0
        %2173 = vmatpush1.msra.mxu0 %v2127
        %2174 = vmatprep.subr.mxu0 0.0
        %2175 = vmatpush1.msra.mxu0 %v2128
        %2176 = vmatprep.subr.mxu0 0.0
        %2177 = vmatpush1.msra.mxu0 %v2129
        %2178 = vmatprep.subr.mxu0 0.0
        %2179 = vmatpush1.msra.mxu0 0.0
        %2180 = vmatprep.subr.mxu0 0.0
        %2181 = vmatpush1.msra.mxu0 0.0
        %2182 = vmatprep.subr.mxu0 0.0
        %2183 = vmatpush1.msra.mxu0 0.0
        %2184 = vmatprep.subr.mxu0 0.0
        %2185 = vmatpush1.msra.mxu0 0.0
        %2186 = vmatprep.subr.mxu0 0.0
        %2187 = vmatpush1.msra.mxu0 0.0
        %2188 = vmatprep.subr.mxu0 0.0
        %2189 = vmatpush1.msra.mxu0 0.0
        %2190 = vmatprep.subr.mxu0 0.0
        %2191 = vmatpush1.msra.mxu0 0.0
        %2192 = vmatprep.subr.mxu0 0.0
        %2193 = vmatpush1.msra.mxu0 0.0
        %2194 = vmatprep.subr.mxu0 0.0
        %2195 = vmatpush1.msra.mxu0 0.0
        %2196 = vmatprep.subr.mxu0 0.0
        %2197 = vmatpush1.msra.mxu0 0.0
        %2198 = vmatprep.subr.mxu0 0.0
        %2199 = vmatpush1.msra.mxu0 0.0
        %2200 = vmatprep.subr.mxu0 0.0
        %2201 = vmatpush1.msra.mxu0 0.0
        %2202 = vmatprep.subr.mxu0 0.0
        %2203 = vmatpush1.msra.mxu0 0.0
        %2204 = vmatprep.subr.mxu0 0.0
        %2205 = vmatpush1.msra.mxu0 0.0
        %2206 = vmatprep.subr.mxu0 0.0
        %2207 = vmatpush1.msra.mxu0 0.0
        %2208 = vmatprep.subr.mxu0 0.0
        %2209 = vmatpush1.msra.mxu0 0.0
        %2210 = vmatprep.subr.mxu0 0.0
        %2211 = vmatpush1.msra.mxu0 0.0
        %2212 = vmatprep.subr.mxu0 0.0
        %2213 = vmatpush1.msra.mxu0 0.0
        %2214 = vmatprep.subr.mxu0 0.0
        %2215 = vmatpush1.msra.mxu0 0.0
        %2216 = vmatprep.subr.mxu0 0.0
        %2217 = vmatpush1.msra.mxu0 0.0
        %2218 = vmatprep.subr.mxu0 0.0
        %2219 = vmatpush1.msra.mxu0 0.0
        %2220 = vmatprep.subr.mxu0 0.0
        %2221 = vmatpush1.msra.mxu0 0.0
        %2222 = vmatprep.subr.mxu0 0.0
        %2223 = vmatpush1.msra.mxu0 0.0
        %2224 = vmatprep.subr.mxu0 0.0
        %2225 = vmatpush1.msra.mxu0 0.0
        %2226 = vmatprep.subr.mxu0 0.0
        %2227 = vmatpush1.msra.mxu0 0.0
        %2228 = vmatprep.subr.mxu0 0.0
        %2229 = vmatpush1.msra.mxu0 0.0
        %2230 = vmatprep.subr.mxu0 0.0
        %2231 = vmatpush1.msra.mxu0 0.0
        %2232 = vmatprep.subr.mxu0 0.0
        %2233 = vmatpush1.msra.mxu0 0.0
        %2234 = vmatprep.mubr.f32.mxu0 0.0
        %2235 = vmatmul.mubr.f32.gmra.mrb[0].mxu0 %v2147
        %v2236 = vpop.f32.mrb[0].mxu0
        %v2237 = vadd.f32 %v2138, %v2236
        %v2238 = vpop.f32.mrb[0].mxu0
        %2239 = vmatprep.mubr.f32.mxu0 0.0
        %2240 = vmatmul.mubr.f32.gmra.mrb[0].mxu0 %v2150
        %v2241 = vpop.f32.mrb[0].mxu0
        %v2242 = vadd.f32 %v2139, %v2241
        %v2243 = vpop.f32.mrb[0].mxu0
        %2244 = vmatprep.mubr.f32.mxu0 0.0
        %2245 = vmatmul.mubr.f32.gmra.mrb[0].mxu0 %v2153
        %v2246 = vpop.f32.mrb[0].mxu0
        %v2247 = vadd.f32 %v2140, %v2246
        %v2248 = vpop.f32.mrb[0].mxu0
        %2249 = vmatprep.mubr.f32.mxu0 0.0
        %2250 = vmatmul.mubr.f32.gmra.mrb[0].mxu0 %v2156
        %v2251 = vpop.f32.mrb[0].mxu0
        %v2252 = vadd.f32 %v2141, %v2251
        %v2253 = vpop.f32.mrb[0].mxu0
        %2254 = vmatprep.mubr.f32.mxu0 0.0
        %2255 = vmatmul.mubr.f32.gmra.mrb[0].mxu0 %v2159
        %v2256 = vpop.f32.mrb[0].mxu0
        %v2257 = vadd.f32 %v2142, %v2256
        %v2258 = vpop.f32.mrb[0].mxu0
        %2259 = vmatprep.mubr.f32.mxu0 0.0
        %2260 = vmatmul.mubr.f32.gmra.mrb[0].mxu0 %v2162
        %v2261 = vpop.f32.mrb[0].mxu0
        %v2262 = vadd.f32 %v2143, %v2261
        %v2263 = vpop.f32.mrb[0].mxu0
        %2264 = vmatprep.mubr.f32.mxu0 0.0
        %2265 = vmatmul.mubr.f32.gmra.mrb[0].mxu0 %v2165
        %v2266 = vpop.f32.mrb[0].mxu0
        %v2267 = vadd.f32 %v2144, %v2266
        %v2268 = vpop.f32.mrb[0].mxu0
        %2269 = vmatprep.mubr.f32.mxu0 0.0
        %2270 = vmatmul.mubr.f32.gmra.mrb[0].mxu0 %v2168
        %v2271 = vpop.f32.mrb[0].mxu0
        %v2272 = vadd.f32 %v2145, %v2271
        %v2273 = vpop.f32.mrb[0].mxu0
        %2274 = vdwg.mxu0
        %v2275 = vmul.f32 %v2237, %v2237
        %v2276 = vmul.f32 %v2242, %v2242
        %v2277 = vmul.f32 %v2247, %v2247
        %v2278 = vmul.f32 %v2252, %v2252
        %v2279 = vmul.f32 %v2257, %v2257
        %v2280 = vmul.f32 %v2262, %v2262
        %v2281 = vmul.f32 %v2267, %v2267
        %v2282 = vmul.f32 %v2272, %v2272
        %v2283 = vmul.f32 %v2237, %v2275
        %v2284 = vmul.f32 %v2242, %v2276
        %v2285 = vmul.f32 %v2247, %v2277
        %v2286 = vmul.f32 %v2252, %v2278
        %v2287 = vmul.f32 %v2257, %v2279
        %v2288 = vmul.f32 %v2262, %v2280
        %v2289 = vmul.f32 %v2267, %v2281
        %v2290 = vmul.f32 %v2272, %v2282
        %v2291 = vmul.f32 %v2283, 0.044715
        %v2292 = vmul.f32 %v2284, 0.044715
        %v2293 = vmul.f32 %v2285, 0.044715
        %v2294 = vmul.f32 %v2286, 0.044715
        %v2295 = vmul.f32 %v2287, 0.044715
        %v2296 = vmul.f32 %v2288, 0.044715
        %v2297 = vmul.f32 %v2289, 0.044715
        %v2298 = vmul.f32 %v2290, 0.044715
        %v2299 = vadd.f32 %v2237, %v2291
        %v2300 = vadd.f32 %v2242, %v2292
        %v2301 = vadd.f32 %v2247, %v2293
        %v2302 = vadd.f32 %v2252, %v2294
        %v2303 = vadd.f32 %v2257, %v2295
        %v2304 = vadd.f32 %v2262, %v2296
        %v2305 = vadd.f32 %v2267, %v2297
        %v2306 = vadd.f32 %v2272, %v2298
        %v2307 = vmul.f32 %v2299, 0.7978846
        %v2308 = vmul.f32 %v2300, 0.7978846
        %v2309 = vmul.f32 %v2301, 0.7978846
        %v2310 = vmul.f32 %v2302, 0.7978846
        %v2311 = vmul.f32 %v2303, 0.7978846
        %v2312 = vmul.f32 %v2304, 0.7978846
        %v2313 = vmul.f32 %v2305, 0.7978846
        %v2314 = vmul.f32 %v2306, 0.7978846
        %v2315 = vtanh.pop %v2307
        %v2316 = vtanh.pop %v2308
        %v2317 = vtanh.pop %v2309
        %v2318 = vtanh.pop %v2310
        %v2319 = vtanh.pop %v2311
        %v2320 = vtanh.pop %v2312
        %v2321 = vtanh.pop %v2313
        %v2322 = vtanh.pop %v2314
        %v2323 = vadd.f32 %v2315, 1.0
        %v2324 = vadd.f32 %v2316, 1.0
        %v2325 = vadd.f32 %v2317, 1.0
        %v2326 = vadd.f32 %v2318, 1.0
        %v2327 = vadd.f32 %v2319, 1.0
        %v2328 = vadd.f32 %v2320, 1.0
        %v2329 = vadd.f32 %v2321, 1.0
        %v2330 = vadd.f32 %v2322, 1.0
        %v2331 = vmul.f32 %v2323, 0.5
        %v2332 = vmul.f32 %v2324, 0.5
        %v2333 = vmul.f32 %v2325, 0.5
        %v2334 = vmul.f32 %v2326, 0.5
        %v2335 = vmul.f32 %v2327, 0.5
        %v2336 = vmul.f32 %v2328, 0.5
        %v2337 = vmul.f32 %v2329, 0.5
        %v2338 = vmul.f32 %v2330, 0.5
        %v2339 = vmul.f32 %v2237, %v2331
        %v2340 = vmul.f32 %v2242, %v2332
        %v2341 = vmul.f32 %v2247, %v2333
        %v2342 = vmul.f32 %v2252, %v2334
        %v2343 = vmul.f32 %v2257, %v2335
        %v2344 = vmul.f32 %v2262, %v2336
        %v2345 = vmul.f32 %v2267, %v2337
        %v2346 = vmul.f32 %v2272, %v2338
        %v2347 = vld [vmem:[#allocation2 + $0x100] sm:$0xff]
        %v2348 = vld [vmem:[#allocation2 + $0x108] sm:$0xff]
        %v2349 = vld [vmem:[#allocation2 + $0x110] sm:$0xff]
        %v2350 = vld [vmem:[#allocation2 + $0x118] sm:$0xff]
        %v2351 = vld [vmem:[#allocation2 + $0x3e0] sm:$0xff]
        %v2352 = vld [vmem:[#allocation2 + $0x3e8] sm:$0xff]
        %v2353 = vld [vmem:[#allocation2 + $0x3f0] sm:$0xff]
        %v2354 = vld [vmem:[#allocation2 + $0x3f8] sm:$0xff]
        %vm2355 = vcmask 523264
        %v2357 = vsel %vm2355, %v2347, 0
        %v2360 = vsel %vm2355, %v2348, 0
        %v2363 = vsel %vm2355, %v2349, 0
        %v2366 = vsel %vm2355, %v2350, 0
        %2368 = vmatprep.subr.mxu0 0.0
        %2369 = vmatpush1.msra.mxu0 %v2339
        %2370 = vmatprep.subr.mxu0 0.0
        %2371 = vmatpush1.msra.mxu0 %v2340
        %2372 = vmatprep.subr.mxu0 0.0
        %2373 = vmatpush1.msra.mxu0 %v2341
        %2374 = vmatprep.subr.mxu0 0.0
        %2375 = vmatpush1.msra.mxu0 %v2342
        %2376 = vmatprep.subr.mxu0 0.0
        %2377 = vmatpush1.msra.mxu0 %v2343
        %2378 = vmatprep.subr.mxu0 0.0
        %2379 = vmatpush1.msra.mxu0 %v2344
        %2380 = vmatprep.subr.mxu0 0.0
        %2381 = vmatpush1.msra.mxu0 %v2345
        %2382 = vmatprep.subr.mxu0 0.0
        %2383 = vmatpush1.msra.mxu0 %v2346
        %2384 = vmatprep.subr.mxu0 0.0
        %2385 = vmatpush1.msra.mxu0 0.0
        %2386 = vmatprep.subr.mxu0 0.0
        %2387 = vmatpush1.msra.mxu0 0.0
        %2388 = vmatprep.subr.mxu0 0.0
        %2389 = vmatpush1.msra.mxu0 0.0
        %2390 = vmatprep.subr.mxu0 0.0
        %2391 = vmatpush1.msra.mxu0 0.0
        %2392 = vmatprep.subr.mxu0 0.0
        %2393 = vmatpush1.msra.mxu0 0.0
        %2394 = vmatprep.subr.mxu0 0.0
        %2395 = vmatpush1.msra.mxu0 0.0
        %2396 = vmatprep.subr.mxu0 0.0
        %2397 = vmatpush1.msra.mxu0 0.0
        %2398 = vmatprep.subr.mxu0 0.0
        %2399 = vmatpush1.msra.mxu0 0.0
        %2400 = vmatprep.subr.mxu0 0.0
        %2401 = vmatpush1.msra.mxu0 0.0
        %2402 = vmatprep.subr.mxu0 0.0
        %2403 = vmatpush1.msra.mxu0 0.0
        %2404 = vmatprep.subr.mxu0 0.0
        %2405 = vmatpush1.msra.mxu0 0.0
        %2406 = vmatprep.subr.mxu0 0.0
        %2407 = vmatpush1.msra.mxu0 0.0
        %2408 = vmatprep.subr.mxu0 0.0
        %2409 = vmatpush1.msra.mxu0 0.0
        %2410 = vmatprep.subr.mxu0 0.0
        %2411 = vmatpush1.msra.mxu0 0.0
        %2412 = vmatprep.subr.mxu0 0.0
        %2413 = vmatpush1.msra.mxu0 0.0
        %2414 = vmatprep.subr.mxu0 0.0
        %2415 = vmatpush1.msra.mxu0 0.0
        %2416 = vmatprep.subr.mxu0 0.0
        %2417 = vmatpush1.msra.mxu0 0.0
        %2418 = vmatprep.subr.mxu0 0.0
        %2419 = vmatpush1.msra.mxu0 0.0
        %2420 = vmatprep.subr.mxu0 0.0
        %2421 = vmatpush1.msra.mxu0 0.0
        %2422 = vmatprep.subr.mxu0 0.0
        %2423 = vmatpush1.msra.mxu0 0.0
        %2424 = vmatprep.subr.mxu0 0.0
        %2425 = vmatpush1.msra.mxu0 0.0
        %2426 = vmatprep.subr.mxu0 0.0
        %2427 = vmatpush1.msra.mxu0 0.0
        %2428 = vmatprep.subr.mxu0 0.0
        %2429 = vmatpush1.msra.mxu0 0.0
        %2430 = vmatprep.subr.mxu0 0.0
        %2431 = vmatpush1.msra.mxu0 0.0
        %2432 = vmatprep.mubr.f32.mxu0 0.0
        %2433 = vmatmul.mubr.f32.gmra.mrb[0].mxu0 %v2357
        %v2434 = vpop.f32.mrb[0].mxu0
        %v2435 = vadd.f32 %v2351, %v2434
        %v2436 = vpop.f32.mrb[0].mxu0
        %2437 = vmatprep.mubr.f32.mxu0 0.0
        %2438 = vmatmul.mubr.f32.gmra.mrb[0].mxu0 %v2360
        %v2439 = vpop.f32.mrb[0].mxu0
        %v2440 = vadd.f32 %v2352, %v2439
        %v2441 = vpop.f32.mrb[0].mxu0
        %2442 = vmatprep.mubr.f32.mxu0 0.0
        %2443 = vmatmul.mubr.f32.gmra.mrb[0].mxu0 %v2363
        %v2444 = vpop.f32.mrb[0].mxu0
        %v2445 = vadd.f32 %v2353, %v2444
        %v2446 = vpop.f32.mrb[0].mxu0
        %2447 = vmatprep.mubr.f32.mxu0 0.0
        %2448 = vmatmul.mubr.f32.gmra.mrb[0].mxu0 %v2366
        %v2449 = vpop.f32.mrb[0].mxu0
        %v2450 = vadd.f32 %v2354, %v2449
        %v2451 = vpop.f32.mrb[0].mxu0
        %2452 = vdwg.mxu0
        %v2453 = vadd.f32 %v2126, %v2435
        %v2454 = vadd.f32 %v2127, %v2440
        %v2455 = vadd.f32 %v2128, %v2445
        %v2456 = vadd.f32 %v2129, %v2450
        %v2457 = vadd.f32 %v2453, %v2454
        %v2458 = vadd.f32 %v2457, %v2455
        %v2459 = vadd.f32 %v2458, %v2456
        %v2460 = vrot.slane %v2459, 4
        %v2461 = vadd.f32 %v2459, %v2460
        %v2462 = vrot.slane %v2461, 2
        %v2463 = vadd.f32 %v2461, %v2462
        %v2464 = vrot.slane %v2463, 1
        %v2465 = vadd.f32 %v2463, %v2464
        %v2466 = vmul.f32 %v2465, %v668
        %v2467 = vsub.f32 %v2453, %v2466
        %v2468 = vsub.f32 %v2454, %v2466
        %v2469 = vsub.f32 %v2455, %v2466
        %v2470 = vsub.f32 %v2456, %v2466
        %v2471 = vmul.f32 %v2467, %v2467
        %v2472 = vmul.f32 %v2468, %v2468
        %v2473 = vmul.f32 %v2469, %v2469
        %v2474 = vmul.f32 %v2470, %v2470
        %v2475 = vadd.f32 %v2471, %v2472
        %v2476 = vadd.f32 %v2475, %v2473
        %v2477 = vadd.f32 %v2476, %v2474
        %v2478 = vrot.slane %v2477, 4
        %v2479 = vadd.f32 %v2477, %v2478
        %v2480 = vrot.slane %v2479, 2
        %v2481 = vadd.f32 %v2479, %v2480
        %v2482 = vrot.slane %v2481, 1
        %v2483 = vadd.f32 %v2481, %v2482
        %v2484 = vmul.f32 %v2483, %v668
        %v2485 = vadd.f32 %v2484, 1e-05
        %v2486 = vrsqrt.pop %v2485
        %v2487 = vmul.f32 %v2467, %v2486
        %v2488 = vmul.f32 %v2468, %v2486
        %v2489 = vmul.f32 %v2469, %v2486
        %v2490 = vmul.f32 %v2470, %v2486
        %v2491 = vld [vmem:[#allocation2 + $0x400] sm:$0xff]
        %v2492 = vld [vmem:[#allocation2 + $0x408] sm:$0xff]
        %v2493 = vld [vmem:[#allocation2 + $0x410] sm:$0xff]
        %v2494 = vld [vmem:[#allocation2 + $0x418] sm:$0xff]
        %v2495 = vmul.f32 %v2487, %v2491
        %v2496 = vmul.f32 %v2488, %v2492
        %v2497 = vmul.f32 %v2489, %v2493
        %v2498 = vmul.f32 %v2490, %v2494
        %v2499 = vld [vmem:[#allocation2 + $0x420] sm:$0xff]
        %v2500 = vld [vmem:[#allocation2 + $0x428] sm:$0xff]
        %v2501 = vld [vmem:[#allocation2 + $0x430] sm:$0xff]
        %v2502 = vld [vmem:[#allocation2 + $0x438] sm:$0xff]
        %v2503 = vadd.f32 %v2495, %v2499
        %v2504 = vadd.f32 %v2496, %v2500
        %v2505 = vadd.f32 %v2497, %v2501
        %v2506 = vadd.f32 %v2498, %v2502
        %v2507 = vld [vmem:[#allocation2 + $0x120] sm:$0xff]
        %v2508 = vld [vmem:[#allocation2 + $0x128] sm:$0xff]
        %v2509 = vld [vmem:[#allocation2 + $0x130] sm:$0xff]
        %v2510 = vld [vmem:[#allocation2 + $0x138] sm:$0xff]
        %v2511 = vld [vmem:[#allocation2 + $0x140] sm:$0xff]
        %v2512 = vld [vmem:[#allocation2 + $0x148] sm:$0xff]
        %v2513 = vld [vmem:[#allocation2 + $0x150] sm:$0xff]
        %v2514 = vld [vmem:[#allocation2 + $0x158] sm:$0xff]
        %v2515 = vld [vmem:[#allocation2 + $0x160] sm:$0xff]
        %v2516 = vld [vmem:[#allocation2 + $0x168] sm:$0xff]
        %v2517 = vld [vmem:[#allocation2 + $0x170] sm:$0xff]
        %v2518 = vld [vmem:[#allocation2 + $0x178] sm:$0xff]
        %v2519 = vld [vmem:[#allocation2 + $0x440] sm:$0xff]
        %v2520 = vld [vmem:[#allocation2 + $0x448] sm:$0xff]
        %v2521 = vld [vmem:[#allocation2 + $0x450] sm:$0xff]
        %v2522 = vld [vmem:[#allocation2 + $0x458] sm:$0xff]
        %v2523 = vld [vmem:[#allocation2 + $0x460] sm:$0xff]
        %v2524 = vld [vmem:[#allocation2 + $0x468] sm:$0xff]
        %v2525 = vld [vmem:[#allocation2 + $0x470] sm:$0xff]
        %v2526 = vld [vmem:[#allocation2 + $0x478] sm:$0xff]
        %v2527 = vld [vmem:[#allocation2 + $0x480] sm:$0xff]
        %v2528 = vld [vmem:[#allocation2 + $0x488] sm:$0xff]
        %v2529 = vld [vmem:[#allocation2 + $0x490] sm:$0xff]
        %v2530 = vld [vmem:[#allocation2 + $0x498] sm:$0xff]
        %v2532 = vsel %vm718, %v2507, 0
        %v2535 = vsel %vm718, %v2508, 0
        %v2538 = vsel %vm718, %v2509, 0
        %v2541 = vsel %vm718, %v2510, 0
        %v2544 = vsel %vm718, %v2511, 0
        %v2547 = vsel %vm718, %v2512, 0
        %v2550 = vsel %vm718, %v2513, 0
        %v2553 = vsel %vm718, %v2514, 0
        %v2556 = vsel %vm718, %v2515, 0
        %v2559 = vsel %vm718, %v2516, 0
        %v2562 = vsel %vm718, %v2517, 0
        %v2565 = vsel %vm718, %v2518, 0
        %2567 = vmatprep.subr.mxu0 0.0
        %2568 = vmatpush1.msra.mxu0 %v2503
        %2569 = vmatprep.subr.mxu0 0.0
        %2570 = vmatpush1.msra.mxu0 %v2504
        %2571 = vmatprep.subr.mxu0 0.0
        %2572 = vmatpush1.msra.mxu0 %v2505
        %2573 = vmatprep.subr.mxu0 0.0
        %2574 = vmatpush1.msra.mxu0 %v2506
        %2575 = vmatprep.subr.mxu0 0.0
        %2576 = vmatpush1.msra.mxu0 0.0
        %2577 = vmatprep.subr.mxu0 0.0
        %2578 = vmatpush1.msra.mxu0 0.0
        %2579 = vmatprep.subr.mxu0 0.0
        %2580 = vmatpush1.msra.mxu0 0.0
        %2581 = vmatprep.subr.mxu0 0.0
        %2582 = vmatpush1.msra.mxu0 0.0
        %2583 = vmatprep.subr.mxu0 0.0
        %2584 = vmatpush1.msra.mxu0 0.0
        %2585 = vmatprep.subr.mxu0 0.0
        %2586 = vmatpush1.msra.mxu0 0.0
        %2587 = vmatprep.subr.mxu0 0.0
        %2588 = vmatpush1.msra.mxu0 0.0
        %2589 = vmatprep.subr.mxu0 0.0
        %2590 = vmatpush1.msra.mxu0 0.0
        %2591 = vmatprep.subr.mxu0 0.0
        %2592 = vmatpush1.msra.mxu0 0.0
        %2593 = vmatprep.subr.mxu0 0.0
        %2594 = vmatpush1.msra.mxu0 0.0
        %2595 = vmatprep.subr.mxu0 0.0
        %2596 = vmatpush1.msra.mxu0 0.0
        %2597 = vmatprep.subr.mxu0 0.0
        %2598 = vmatpush1.msra.mxu0 0.0
        %2599 = vmatprep.subr.mxu0 0.0
        %2600 = vmatpush1.msra.mxu0 0.0
        %2601 = vmatprep.subr.mxu0 0.0
        %2602 = vmatpush1.msra.mxu0 0.0
        %2603 = vmatprep.subr.mxu0 0.0
        %2604 = vmatpush1.msra.mxu0 0.0
        %2605 = vmatprep.subr.mxu0 0.0
        %2606 = vmatpush1.msra.mxu0 0.0
        %2607 = vmatprep.subr.mxu0 0.0
        %2608 = vmatpush1.msra.mxu0 0.0
        %2609 = vmatprep.subr.mxu0 0.0
        %2610 = vmatpush1.msra.mxu0 0.0
        %2611 = vmatprep.subr.mxu0 0.0
        %2612 = vmatpush1.msra.mxu0 0.0
        %2613 = vmatprep.subr.mxu0 0.0
        %2614 = vmatpush1.msra.mxu0 0.0
        %2615 = vmatprep.subr.mxu0 0.0
        %2616 = vmatpush1.msra.mxu0 0.0
        %2617 = vmatprep.subr.mxu0 0.0
        %2618 = vmatpush1.msra.mxu0 0.0
        %2619 = vmatprep.subr.mxu0 0.0
        %2620 = vmatpush1.msra.mxu0 0.0
        %2621 = vmatprep.subr.mxu0 0.0
        %2622 = vmatpush1.msra.mxu0 0.0
        %2623 = vmatprep.subr.mxu0 0.0
        %2624 = vmatpush1.msra.mxu0 0.0
        %2625 = vmatprep.subr.mxu0 0.0
        %2626 = vmatpush1.msra.mxu0 0.0
        %2627 = vmatprep.subr.mxu0 0.0
        %2628 = vmatpush1.msra.mxu0 0.0
        %2629 = vmatprep.subr.mxu0 0.0
        %2630 = vmatpush1.msra.mxu0 0.0
        %2631 = vmatprep.mubr.f32.mxu0 0.0
        %2632 = vmatmul.mubr.f32.gmra.mrb[0].mxu0 %v2532
        %v2633 = vpop.f32.mrb[0].mxu0
        %v2634 = vadd.f32 %v2519, %v2633
        %v2635 = vpop.f32.mrb[0].mxu0
        %2636 = vmatprep.mubr.f32.mxu0 0.0
        %2637 = vmatmul.mubr.f32.gmra.mrb[0].mxu0 %v2535
        %v2638 = vpop.f32.mrb[0].mxu0
        %v2639 = vadd.f32 %v2520, %v2638
        %v2640 = vpop.f32.mrb[0].mxu0
        %2641 = vmatprep.mubr.f32.mxu0 0.0
        %2642 = vmatmul.mubr.f32.gmra.mrb[0].mxu0 %v2538
        %v2643 = vpop.f32.mrb[0].mxu0
        %v2644 = vadd.f32 %v2521, %v2643
        %v2645 = vpop.f32.mrb[0].mxu0
        %2646 = vmatprep.mubr.f32.mxu0 0.0
        %2647 = vmatmul.mubr.f32.gmra.mrb[0].mxu0 %v2541
        %v2648 = vpop.f32.mrb[0].mxu0
        %v2649 = vadd.f32 %v2522, %v2648
        %v2650 = vpop.f32.mrb[0].mxu0
        %2651 = vmatprep.mubr.f32.mxu0 0.0
        %2652 = vmatmul.mubr.f32.gmra.mrb[0].mxu0 %v2544
        %v2653 = vpop.f32.mrb[0].mxu0
        %v2654 = vadd.f32 %v2523, %v2653
        %v2655 = vpop.f32.mrb[0].mxu0
        %2656 = vmatprep.mubr.f32.mxu0 0.0
        %2657 = vmatmul.mubr.f32.gmra.mrb[0].mxu0 %v2547
        %v2658 = vpop.f32.mrb[0].mxu0
        %v2659 = vadd.f32 %v2524, %v2658
        %v2660 = vpop.f32.mrb[0].mxu0
        %2661 = vmatprep.mubr.f32.mxu0 0.0
        %2662 = vmatmul.mubr.f32.gmra.mrb[0].mxu0 %v2550
        %v2663 = vpop.f32.mrb[0].mxu0
        %v2664 = vadd.f32 %v2525, %v2663
        %v2665 = vpop.f32.mrb[0].mxu0
        %2666 = vmatprep.mubr.f32.mxu0 0.0
        %2667 = vmatmul.mubr.f32.gmra.mrb[0].mxu0 %v2553
        %v2668 = vpop.f32.mrb[0].mxu0
        %v2669 = vadd.f32 %v2526, %v2668
        %v2670 = vpop.f32.mrb[0].mxu0
        %2671 = vmatprep.mubr.f32.mxu0 0.0
        %2672 = vmatmul.mubr.f32.gmra.mrb[0].mxu0 %v2556
        %v2673 = vpop.f32.mrb[0].mxu0
        %v2674 = vadd.f32 %v2527, %v2673
        %v2675 = vpop.f32.mrb[0].mxu0
        %2676 = vmatprep.mubr.f32.mxu0 0.0
        %2677 = vmatmul.mubr.f32.gmra.mrb[0].mxu0 %v2559
        %v2678 = vpop.f32.mrb[0].mxu0
        %v2679 = vadd.f32 %v2528, %v2678
        %v2680 = vpop.f32.mrb[0].mxu0
        %2681 = vmatprep.mubr.f32.mxu0 0.0
        %2682 = vmatmul.mubr.f32.gmra.mrb[0].mxu0 %v2562
        %v2683 = vpop.f32.mrb[0].mxu0
        %v2684 = vadd.f32 %v2529, %v2683
        %v2685 = vpop.f32.mrb[0].mxu0
        %2686 = vmatprep.mubr.f32.mxu0 0.0
        %2687 = vmatmul.mubr.f32.gmra.mrb[0].mxu0 %v2565
        %v2688 = vpop.f32.mrb[0].mxu0
        %v2689 = vadd.f32 %v2530, %v2688
        %v2690 = vpop.f32.mrb[0].mxu0
        %2691 = vdwg.mxu0
        %2692 = vxpose.xlu0.b32.start [1/16] %v2634, 128
        %2693 = vxpose.xlu0.b32.cont [2/16] %v2639, 128
        %2694 = vxpose.xlu0.b32.cont [3/16] 0.0, 128
        %2695 = vxpose.xlu0.b32.cont [4/16] 0.0, 128
        %2696 = vxpose.xlu0.b32.cont [5/16] 0.0, 128
        %2697 = vxpose.xlu0.b32.cont [6/16] 0.0, 128
        %2698 = vxpose.xlu0.b32.cont [7/16] 0.0, 128
        %2699 = vxpose.xlu0.b32.cont [8/16] 0.0, 128
        %2700 = vxpose.xlu0.b32.cont [9/16] 0.0, 128
        %2701 = vxpose.xlu0.b32.cont [10/16] 0.0, 128
        %2702 = vxpose.xlu0.b32.cont [11/16] 0.0, 128
        %2703 = vxpose.xlu0.b32.cont [12/16] 0.0, 128
        %2704 = vxpose.xlu0.b32.cont [13/16] 0.0, 128
        %2705 = vxpose.xlu0.b32.cont [14/16] 0.0, 128
        %2706 = vxpose.xlu0.b32.cont [15/16] 0.0, 128
        %2707 = vxpose.xlu0.b32.end [16/16] 0.0, 128
        %v2708 = vpop.trf.xlu0
        %v2709 = vpop.trf.xlu0
        %v2710 = vpop.trf.xlu0
        %v2711 = vpop.trf.xlu0
        %v2712 = vpop.trf.xlu0
        %v2713 = vpop.trf.xlu0
        %v2714 = vpop.trf.xlu0
        %v2715 = vpop.trf.xlu0
        %v2716 = vpop.trf.xlu0
        %v2717 = vpop.trf.xlu0
        %v2718 = vpop.trf.xlu0
        %v2719 = vpop.trf.xlu0
        %v2720 = vpop.trf.xlu0
        %v2721 = vpop.trf.xlu0
        %v2722 = vpop.trf.xlu0
        %v2723 = vpop.trf.xlu0
        %v2725 = vsel %vm246, %v2708, 0
        %v2728 = vsel %vm246, %v2709, 0
        %v2731 = vsel %vm246, %v2710, 0
        %v2734 = vsel %vm246, %v2711, 0
        %v2737 = vsel %vm246, %v2712, 0
        %v2740 = vsel %vm246, %v2713, 0
        %v2743 = vsel %vm246, %v2714, 0
        %v2746 = vsel %vm246, %v2715, 0
        %v2749 = vsel %vm246, %v2716, 0
        %v2752 = vsel %vm246, %v2717, 0
        %v2755 = vsel %vm246, %v2718, 0
        %v2758 = vsel %vm246, %v2719, 0
        %v2761 = vsel %vm246, %v2720, 0
        %v2764 = vsel %vm246, %v2721, 0
        %v2767 = vsel %vm246, %v2722, 0
        %v2770 = vsel %vm246, %v2723, 0
        %2772 = vmatprep.subr.mxu0 0.0
        %2773 = vmatpush1.msra.mxu0 %v2654
        %2774 = vmatprep.subr.mxu0 0.0
        %2775 = vmatpush1.msra.mxu0 %v2659
        %2776 = vmatprep.subr.mxu0 0.0
        %2777 = vmatpush1.msra.mxu0 0.0
        %2778 = vmatprep.subr.mxu0 0.0
        %2779 = vmatpush1.msra.mxu0 0.0
        %2780 = vmatprep.subr.mxu0 0.0
        %2781 = vmatpush1.msra.mxu0 0.0
        %2782 = vmatprep.subr.mxu0 0.0
        %2783 = vmatpush1.msra.mxu0 0.0
        %2784 = vmatprep.subr.mxu0 0.0
        %2785 = vmatpush1.msra.mxu0 0.0
        %2786 = vmatprep.subr.mxu0 0.0
        %2787 = vmatpush1.msra.mxu0 0.0
        %2788 = vmatprep.subr.mxu0 0.0
        %2789 = vmatpush1.msra.mxu0 0.0
        %2790 = vmatprep.subr.mxu0 0.0
        %2791 = vmatpush1.msra.mxu0 0.0
        %2792 = vmatprep.subr.mxu0 0.0
        %2793 = vmatpush1.msra.mxu0 0.0
        %2794 = vmatprep.subr.mxu0 0.0
        %2795 = vmatpush1.msra.mxu0 0.0
        %2796 = vmatprep.subr.mxu0 0.0
        %2797 = vmatpush1.msra.mxu0 0.0
        %2798 = vmatprep.subr.mxu0 0.0
        %2799 = vmatpush1.msra.mxu0 0.0
        %2800 = vmatprep.subr.mxu0 0.0
        %2801 = vmatpush1.msra.mxu0 0.0
        %2802 = vmatprep.subr.mxu0 0.0
        %2803 = vmatpush1.msra.mxu0 0.0
        %2804 = vmatprep.subr.mxu0 0.0
        %2805 = vmatpush1.msra.mxu0 0.0
        %2806 = vmatprep.subr.mxu0 0.0
        %2807 = vmatpush1.msra.mxu0 0.0
        %2808 = vmatprep.subr.mxu0 0.0
        %2809 = vmatpush1.msra.mxu0 0.0
        %2810 = vmatprep.subr.mxu0 0.0
        %2811 = vmatpush1.msra.mxu0 0.0
        %2812 = vmatprep.subr.mxu0 0.0
        %2813 = vmatpush1.msra.mxu0 0.0
        %2814 = vmatprep.subr.mxu0 0.0
        %2815 = vmatpush1.msra.mxu0 0.0
        %2816 = vmatprep.subr.mxu0 0.0
        %2817 = vmatpush1.msra.mxu0 0.0
        %2818 = vmatprep.subr.mxu0 0.0
        %2819 = vmatpush1.msra.mxu0 0.0
        %2820 = vmatprep.subr.mxu0 0.0
        %2821 = vmatpush1.msra.mxu0 0.0
        %2822 = vmatprep.subr.mxu0 0.0
        %2823 = vmatpush1.msra.mxu0 0.0
        %2824 = vmatprep.subr.mxu0 0.0
        %2825 = vmatpush1.msra.mxu0 0.0
        %2826 = vmatprep.subr.mxu0 0.0
        %2827 = vmatpush1.msra.mxu0 0.0
        %2828 = vmatprep.subr.mxu0 0.0
        %2829 = vmatpush1.msra.mxu0 0.0
        %2830 = vmatprep.subr.mxu0 0.0
        %2831 = vmatpush1.msra.mxu0 0.0
        %2832 = vmatprep.subr.mxu0 0.0
        %2833 = vmatpush1.msra.mxu0 0.0
        %2834 = vmatprep.subr.mxu0 0.0
        %2835 = vmatpush1.msra.mxu0 0.0
        %2836 = vmatprep.mubr.f32.mxu0 0.0
        %2837 = vmatmul.mubr.f32.gmra.mrb[0].mxu0 %v2725
        %v2838 = vpop.f32.mrb[0].mxu0
        %v2839 = vadd.f32 0.0, %v2838
        %v2840 = vpop.f32.mrb[0].mxu0
        %2841 = vmatprep.mubr.f32.mxu0 0.0
        %2842 = vmatmul.mubr.f32.gmra.mrb[0].mxu0 %v2728
        %v2843 = vpop.f32.mrb[0].mxu0
        %v2844 = vadd.f32 0.0, %v2843
        %v2845 = vpop.f32.mrb[0].mxu0
        %2846 = vmatprep.mubr.f32.mxu0 0.0
        %2847 = vmatmul.mubr.f32.gmra.mrb[0].mxu0 %v2731
        %v2848 = vpop.f32.mrb[0].mxu0
        %v2849 = vadd.f32 0.0, %v2848
        %v2850 = vpop.f32.mrb[0].mxu0
        %2851 = vmatprep.mubr.f32.mxu0 0.0
        %2852 = vmatmul.mubr.f32.gmra.mrb[0].mxu0 %v2734
        %v2853 = vpop.f32.mrb[0].mxu0
        %v2854 = vadd.f32 0.0, %v2853
        %v2855 = vpop.f32.mrb[0].mxu0
        %2856 = vmatprep.mubr.f32.mxu0 0.0
        %2857 = vmatmul.mubr.f32.gmra.mrb[0].mxu0 %v2737
        %v2858 = vpop.f32.mrb[0].mxu0
        %v2859 = vadd.f32 0.0, %v2858
        %v2860 = vpop.f32.mrb[0].mxu0
        %2861 = vmatprep.mubr.f32.mxu0 0.0
        %2862 = vmatmul.mubr.f32.gmra.mrb[0].mxu0 %v2740
        %v2863 = vpop.f32.mrb[0].mxu0
        %v2864 = vadd.f32 0.0, %v2863
        %v2865 = vpop.f32.mrb[0].mxu0
        %2866 = vmatprep.mubr.f32.mxu0 0.0
        %2867 = vmatmul.mubr.f32.gmra.mrb[0].mxu0 %v2743
        %v2868 = vpop.f32.mrb[0].mxu0
        %v2869 = vadd.f32 0.0, %v2868
        %v2870 = vpop.f32.mrb[0].mxu0
        %2871 = vmatprep.mubr.f32.mxu0 0.0
        %2872 = vmatmul.mubr.f32.gmra.mrb[0].mxu0 %v2746
        %v2873 = vpop.f32.mrb[0].mxu0
        %v2874 = vadd.f32 0.0, %v2873
        %v2875 = vpop.f32.mrb[0].mxu0
        %2876 = vmatprep.mubr.f32.mxu0 0.0
        %2877 = vmatmul.mubr.f32.gmra.mrb[0].mxu0 %v2749
        %v2878 = vpop.f32.mrb[0].mxu0
        %v2879 = vadd.f32 0.0, %v2878
        %v2880 = vpop.f32.mrb[0].mxu0
        %2881 = vmatprep.mubr.f32.mxu0 0.0
        %2882 = vmatmul.mubr.f32.gmra.mrb[0].mxu0 %v2752
        %v2883 = vpop.f32.mrb[0].mxu0
        %v2884 = vadd.f32 0.0, %v2883
        %v2885 = vpop.f32.mrb[0].mxu0
        %2886 = vmatprep.mubr.f32.mxu0 0.0
        %2887 = vmatmul.mubr.f32.gmra.mrb[0].mxu0 %v2755
        %v2888 = vpop.f32.mrb[0].mxu0
        %v2889 = vadd.f32 0.0, %v2888
        %v2890 = vpop.f32.mrb[0].mxu0
        %2891 = vmatprep.mubr.f32.mxu0 0.0
        %2892 = vmatmul.mubr.f32.gmra.mrb[0].mxu0 %v2758
        %v2893 = vpop.f32.mrb[0].mxu0
        %v2894 = vadd.f32 0.0, %v2893
        %v2895 = vpop.f32.mrb[0].mxu0
        %2896 = vmatprep.mubr.f32.mxu0 0.0
        %2897 = vmatmul.mubr.f32.gmra.mrb[0].mxu0 %v2761
        %v2898 = vpop.f32.mrb[0].mxu0
        %v2899 = vadd.f32 0.0, %v2898
        %v2900 = vpop.f32.mrb[0].mxu0
        %2901 = vmatprep.mubr.f32.mxu0 0.0
        %2902 = vmatmul.mubr.f32.gmra.mrb[0].mxu0 %v2764
        %v2903 = vpop.f32.mrb[0].mxu0
        %v2904 = vadd.f32 0.0, %v2903
        %v2905 = vpop.f32.mrb[0].mxu0
        %2906 = vmatprep.mubr.f32.mxu0 0.0
        %2907 = vmatmul.mubr.f32.gmra.mrb[0].mxu0 %v2767
        %v2908 = vpop.f32.mrb[0].mxu0
        %v2909 = vadd.f32 0.0, %v2908
        %v2910 = vpop.f32.mrb[0].mxu0
        %2911 = vmatprep.mubr.f32.mxu0 0.0
        %2912 = vmatmul.mubr.f32.gmra.mrb[0].mxu0 %v2770
        %v2913 = vpop.f32.mrb[0].mxu0
        %v2914 = vadd.f32 0.0, %v2913
        %v2915 = vpop.f32.mrb[0].mxu0
        %2916 = vdwg.mxu0
        %v2917 = vmul.f32 %v2839, 0.25
        %v2918 = vmul.f32 %v2844, 0.25
        %v2919 = vmul.f32 %v2849, 0.25
        %v2920 = vmul.f32 %v2854, 0.25
        %v2921 = vmul.f32 %v2859, 0.25
        %v2922 = vmul.f32 %v2864, 0.25
        %v2923 = vmul.f32 %v2869, 0.25
        %v2924 = vmul.f32 %v2874, 0.25
        %v2925 = vmul.f32 %v2879, 0.25
        %v2926 = vmul.f32 %v2884, 0.25
        %v2927 = vmul.f32 %v2889, 0.25
        %v2928 = vmul.f32 %v2894, 0.25
        %v2929 = vmul.f32 %v2899, 0.25
        %v2930 = vmul.f32 %v2904, 0.25
        %v2931 = vmul.f32 %v2909, 0.25
        %v2932 = vmul.f32 %v2914, 0.25
        %2933 = vmax.xlane.f32.xlu0 %v2917
        %v2934 = vpop.xlane.xlu0 %2933
        %2935 = vmax.xlane.f32.xlu0 %v2918
        %v2936 = vpop.xlane.xlu0 %2935
        %2937 = vmax.xlane.f32.xlu0 %v2919
        %v2938 = vpop.xlane.xlu0 %2937
        %2939 = vmax.xlane.f32.xlu0 %v2920
        %v2940 = vpop.xlane.xlu0 %2939
        %2941 = vmax.xlane.f32.xlu0 %v2921
        %v2942 = vpop.xlane.xlu0 %2941
        %2943 = vmax.xlane.f32.xlu0 %v2922
        %v2944 = vpop.xlane.xlu0 %2943
        %2945 = vmax.xlane.f32.xlu0 %v2923
        %v2946 = vpop.xlane.xlu0 %2945
        %2947 = vmax.xlane.f32.xlu0 %v2924
        %v2948 = vpop.xlane.xlu0 %2947
        %2949 = vmax.xlane.f32.xlu0 %v2925
        %v2950 = vpop.xlane.xlu0 %2949
        %2951 = vmax.xlane.f32.xlu0 %v2926
        %v2952 = vpop.xlane.xlu0 %2951
        %2953 = vmax.xlane.f32.xlu0 %v2927
        %v2954 = vpop.xlane.xlu0 %2953
        %2955 = vmax.xlane.f32.xlu0 %v2928
        %v2956 = vpop.xlane.xlu0 %2955
        %2957 = vmax.xlane.f32.xlu0 %v2929
        %v2958 = vpop.xlane.xlu0 %2957
        %2959 = vmax.xlane.f32.xlu0 %v2930
        %v2960 = vpop.xlane.xlu0 %2959
        %2961 = vmax.xlane.f32.xlu0 %v2931
        %v2962 = vpop.xlane.xlu0 %2961
        %2963 = vmax.xlane.f32.xlu0 %v2932
        %v2964 = vpop.xlane.xlu0 %2963
        %v2965 = vsub.f32 %v2917, %v2934
        %v2966 = vsub.f32 %v2918, %v2936
        %v2967 = vsub.f32 %v2919, %v2938
        %v2968 = vsub.f32 %v2920, %v2940
        %v2969 = vsub.f32 %v2921, %v2942
        %v2970 = vsub.f32 %v2922, %v2944
        %v2971 = vsub.f32 %v2923, %v2946
        %v2972 = vsub.f32 %v2924, %v2948
        %v2973 = vsub.f32 %v2925, %v2950
        %v2974 = vsub.f32 %v2926, %v2952
        %v2975 = vsub.f32 %v2927, %v2954
        %v2976 = vsub.f32 %v2928, %v2956
        %v2977 = vsub.f32 %v2929, %v2958
        %v2978 = vsub.f32 %v2930, %v2960
        %v2979 = vsub.f32 %v2931, %v2962
        %v2980 = vsub.f32 %v2932, %v2964
        %v2981 = vmul.f32 %v2965, 1.442695
        %v2982 = vpow.pop %v2981
        %v2983 = vmul.f32 %v2966, 1.442695
        %v2984 = vpow.pop %v2983
        %v2985 = vmul.f32 %v2967, 1.442695
        %v2986 = vpow.pop %v2985
        %v2987 = vmul.f32 %v2968, 1.442695
        %v2988 = vpow.pop %v2987
        %v2989 = vmul.f32 %v2969, 1.442695
        %v2990 = vpow.pop %v2989
        %v2991 = vmul.f32 %v2970, 1.442695
        %v2992 = vpow.pop %v2991
        %v2993 = vmul.f32 %v2971, 1.442695
        %v2994 = vpow.pop %v2993
        %v2995 = vmul.f32 %v2972, 1.442695
        %v2996 = vpow.pop %v2995
        %v2997 = vmul.f32 %v2973, 1.442695
        %v2998 = vpow.pop %v2997
        %v2999 = vmul.f32 %v2974, 1.442695
        %v3000 = vpow.pop %v2999
        %v3001 = vmul.f32 %v2975, 1.442695
        %v3002 = vpow.pop %v3001
        %v3003 = vmul.f32 %v2976, 1.442695
        %v3004 = vpow.pop %v3003
        %v3005 = vmul.f32 %v2977, 1.442695
        %v3006 = vpow.pop %v3005
        %v3007 = vmul.f32 %v2978, 1.442695
        %v3008 = vpow.pop %v3007
        %v3009 = vmul.f32 %v2979, 1.442695
        %v3010 = vpow.pop %v3009
        %v3011 = vmul.f32 %v2980, 1.442695
        %v3012 = vpow.pop %v3011
        %3013 = vadd.xlane.f32.xlu0 %v2982
        %v3014 = vpop.xlane.xlu0 %3013
        %3015 = vadd.xlane.f32.xlu0 %v2984
        %v3016 = vpop.xlane.xlu0 %3015
        %3017 = vadd.xlane.f32.xlu0 %v2986
        %v3018 = vpop.xlane.xlu0 %3017
        %3019 = vadd.xlane.f32.xlu0 %v2988
        %v3020 = vpop.xlane.xlu0 %3019
        %3021 = vadd.xlane.f32.xlu0 %v2990
        %v3022 = vpop.xlane.xlu0 %3021
        %3023 = vadd.xlane.f32.xlu0 %v2992
        %v3024 = vpop.xlane.xlu0 %3023
        %3025 = vadd.xlane.f32.xlu0 %v2994
        %v3026 = vpop.xlane.xlu0 %3025
        %3027 = vadd.xlane.f32.xlu0 %v2996
        %v3028 = vpop.xlane.xlu0 %3027
        %3029 = vadd.xlane.f32.xlu0 %v2998
        %v3030 = vpop.xlane.xlu0 %3029
        %3031 = vadd.xlane.f32.xlu0 %v3000
        %v3032 = vpop.xlane.xlu0 %3031
        %3033 = vadd.xlane.f32.xlu0 %v3002
        %v3034 = vpop.xlane.xlu0 %3033
        %3035 = vadd.xlane.f32.xlu0 %v3004
        %v3036 = vpop.xlane.xlu0 %3035
        %3037 = vadd.xlane.f32.xlu0 %v3006
        %v3038 = vpop.xlane.xlu0 %3037
        %3039 = vadd.xlane.f32.xlu0 %v3008
        %v3040 = vpop.xlane.xlu0 %3039
        %3041 = vadd.xlane.f32.xlu0 %v3010
        %v3042 = vpop.xlane.xlu0 %3041
        %3043 = vadd.xlane.f32.xlu0 %v3012
        %v3044 = vpop.xlane.xlu0 %3043
        %v3045 = vrcp.pop %v3014
        %v3046 = vrcp.pop %v3016
        %v3047 = vrcp.pop %v3018
        %v3048 = vrcp.pop %v3020
        %v3049 = vrcp.pop %v3022
        %v3050 = vrcp.pop %v3024
        %v3051 = vrcp.pop %v3026
        %v3052 = vrcp.pop %v3028
        %v3053 = vrcp.pop %v3030
        %v3054 = vrcp.pop %v3032
        %v3055 = vrcp.pop %v3034
        %v3056 = vrcp.pop %v3036
        %v3057 = vrcp.pop %v3038
        %v3058 = vrcp.pop %v3040
        %v3059 = vrcp.pop %v3042
        %v3060 = vrcp.pop %v3044
        %v3061 = vmul.f32 %v2982, %v3045
        %v3062 = vmul.f32 %v2984, %v3046
        %v3063 = vmul.f32 %v2986, %v3047
        %v3064 = vmul.f32 %v2988, %v3048
        %v3065 = vmul.f32 %v2990, %v3049
        %v3066 = vmul.f32 %v2992, %v3050
        %v3067 = vmul.f32 %v2994, %v3051
        %v3068 = vmul.f32 %v2996, %v3052
        %v3069 = vmul.f32 %v2998, %v3053
        %v3070 = vmul.f32 %v3000, %v3054
        %v3071 = vmul.f32 %v3002, %v3055
        %v3072 = vmul.f32 %v3004, %v3056
        %v3073 = vmul.f32 %v3006, %v3057
        %v3074 = vmul.f32 %v3008, %v3058
        %v3075 = vmul.f32 %v3010, %v3059
        %v3076 = vmul.f32 %v3012, %v3060
        %3077 = vmatprep.subr.mxu0 0.0
        %3078 = vmatpush1.xpose.msra.mxu0 %v3061
        %3079 = vmatprep.subr.mxu0 0.0
        %3080 = vmatpush1.xpose.msra.mxu0 %v3062
        %3081 = vmatprep.subr.mxu0 0.0
        %3082 = vmatpush1.xpose.msra.mxu0 %v3063
        %3083 = vmatprep.subr.mxu0 0.0
        %3084 = vmatpush1.xpose.msra.mxu0 %v3064
        %3085 = vmatprep.subr.mxu0 0.0
        %3086 = vmatpush1.xpose.msra.mxu0 %v3065
        %3087 = vmatprep.subr.mxu0 0.0
        %3088 = vmatpush1.xpose.msra.mxu0 %v3066
        %3089 = vmatprep.subr.mxu0 0.0
        %3090 = vmatpush1.xpose.msra.mxu0 %v3067
        %3091 = vmatprep.subr.mxu0 0.0
        %3092 = vmatpush1.xpose.msra.mxu0 %v3068
        %3093 = vmatprep.subr.mxu0 0.0
        %3094 = vmatpush1.xpose.msra.mxu0 %v3069
        %3095 = vmatprep.subr.mxu0 0.0
        %3096 = vmatpush1.xpose.msra.mxu0 %v3070
        %3097 = vmatprep.subr.mxu0 0.0
        %3098 = vmatpush1.xpose.msra.mxu0 %v3071
        %3099 = vmatprep.subr.mxu0 0.0
        %3100 = vmatpush1.xpose.msra.mxu0 %v3072
        %3101 = vmatprep.subr.mxu0 0.0
        %3102 = vmatpush1.xpose.msra.mxu0 %v3073
        %3103 = vmatprep.subr.mxu0 0.0
        %3104 = vmatpush1.xpose.msra.mxu0 %v3074
        %3105 = vmatprep.subr.mxu0 0.0
        %3106 = vmatpush1.xpose.msra.mxu0 %v3075
        %3107 = vmatprep.subr.mxu0 0.0
        %3108 = vmatpush1.xpose.msra.mxu0 %v3076
        %3109 = vmatprep.subr.mxu0 0.0
        %3110 = vmatpush1.xpose.msra.mxu0 0.0
        %3111 = vmatprep.subr.mxu0 0.0
        %3112 = vmatpush1.xpose.msra.mxu0 0.0
        %3113 = vmatprep.subr.mxu0 0.0
        %3114 = vmatpush1.xpose.msra.mxu0 0.0
        %3115 = vmatprep.subr.mxu0 0.0
        %3116 = vmatpush1.xpose.msra.mxu0 0.0
        %3117 = vmatprep.subr.mxu0 0.0
        %3118 = vmatpush1.xpose.msra.mxu0 0.0
        %3119 = vmatprep.subr.mxu0 0.0
        %3120 = vmatpush1.xpose.msra.mxu0 0.0
        %3121 = vmatprep.subr.mxu0 0.0
        %3122 = vmatpush1.xpose.msra.mxu0 0.0
        %3123 = vmatprep.subr.mxu0 0.0
        %3124 = vmatpush1.xpose.msra.mxu0 0.0
        %3125 = vmatprep.subr.mxu0 0.0
        %3126 = vmatpush1.xpose.msra.mxu0 0.0
        %3127 = vmatprep.subr.mxu0 0.0
        %3128 = vmatpush1.xpose.msra.mxu0 0.0
        %3129 = vmatprep.subr.mxu0 0.0
        %3130 = vmatpush1.xpose.msra.mxu0 0.0
        %3131 = vmatprep.subr.mxu0 0.0
        %3132 = vmatpush1.xpose.msra.mxu0 0.0
        %3133 = vmatprep.subr.mxu0 0.0
        %3134 = vmatpush1.xpose.msra.mxu0 0.0
        %3135 = vmatprep.subr.mxu0 0.0
        %3136 = vmatpush1.xpose.msra.mxu0 0.0
        %3137 = vmatprep.subr.mxu0 0.0
        %3138 = vmatpush1.xpose.msra.mxu0 0.0
        %3139 = vmatprep.subr.mxu0 0.0
        %3140 = vmatpush1.xpose.msra.mxu0 0.0
        %3141 = vmatprep.mubr.f32.mxu0 0.0
        %3142 = vmatmul.mubr.f32.gmra.mrb[0].mxu0 %v2674
        %v3143 = vpop.f32.mrb[0].mxu0
        %v3144 = vadd.f32 0.0, %v3143
        %v3145 = vpop.f32.mrb[0].mxu0
        %3146 = vmatprep.mubr.f32.mxu0 0.0
        %3147 = vmatmul.mubr.f32.gmra.mrb[0].mxu0 %v2679
        %v3148 = vpop.f32.mrb[0].mxu0
        %v3149 = vadd.f32 0.0, %v3148
        %v3150 = vpop.f32.mrb[0].mxu0
        %3151 = vdwg.mxu0
        %3152 = vxpose.xlu0.b32.start [1/16] %v2644, 128
        %3153 = vxpose.xlu0.b32.cont [2/16] %v2649, 128
        %3154 = vxpose.xlu0.b32.cont [3/16] 0.0, 128
        %3155 = vxpose.xlu0.b32.cont [4/16] 0.0, 128
        %3156 = vxpose.xlu0.b32.cont [5/16] 0.0, 128
        %3157 = vxpose.xlu0.b32.cont [6/16] 0.0, 128
        %3158 = vxpose.xlu0.b32.cont [7/16] 0.0, 128
        %3159 = vxpose.xlu0.b32.cont [8/16] 0.0, 128
        %3160 = vxpose.xlu0.b32.cont [9/16] 0.0, 128
        %3161 = vxpose.xlu0.b32.cont [10/16] 0.0, 128
        %3162 = vxpose.xlu0.b32.cont [11/16] 0.0, 128
        %3163 = vxpose.xlu0.b32.cont [12/16] 0.0, 128
        %3164 = vxpose.xlu0.b32.cont [13/16] 0.0, 128
        %3165 = vxpose.xlu0.b32.cont [14/16] 0.0, 128
        %3166 = vxpose.xlu0.b32.cont [15/16] 0.0, 128
        %3167 = vxpose.xlu0.b32.end [16/16] 0.0, 128
        %v3168 = vpop.trf.xlu0
        %v3169 = vpop.trf.xlu0
        %v3170 = vpop.trf.xlu0
        %v3171 = vpop.trf.xlu0
        %v3172 = vpop.trf.xlu0
        %v3173 = vpop.trf.xlu0
        %v3174 = vpop.trf.xlu0
        %v3175 = vpop.trf.xlu0
        %v3176 = vpop.trf.xlu0
        %v3177 = vpop.trf.xlu0
        %v3178 = vpop.trf.xlu0
        %v3179 = vpop.trf.xlu0
        %v3180 = vpop.trf.xlu0
        %v3181 = vpop.trf.xlu0
        %v3182 = vpop.trf.xlu0
        %v3183 = vpop.trf.xlu0
        %v3185 = vsel %vm246, %v3168, 0
        %v3188 = vsel %vm246, %v3169, 0
        %v3191 = vsel %vm246, %v3170, 0
        %v3194 = vsel %vm246, %v3171, 0
        %v3197 = vsel %vm246, %v3172, 0
        %v3200 = vsel %vm246, %v3173, 0
        %v3203 = vsel %vm246, %v3174, 0
        %v3206 = vsel %vm246, %v3175, 0
        %v3209 = vsel %vm246, %v3176, 0
        %v3212 = vsel %vm246, %v3177, 0
        %v3215 = vsel %vm246, %v3178, 0
        %v3218 = vsel %vm246, %v3179, 0
        %v3221 = vsel %vm246, %v3180, 0
        %v3224 = vsel %vm246, %v3181, 0
        %v3227 = vsel %vm246, %v3182, 0
        %v3230 = vsel %vm246, %v3183, 0
        %3232 = vmatprep.subr.mxu0 0.0
        %3233 = vmatpush1.msra.mxu0 %v2664
        %3234 = vmatprep.subr.mxu0 0.0
        %3235 = vmatpush1.msra.mxu0 %v2669
        %3236 = vmatprep.subr.mxu0 0.0
        %3237 = vmatpush1.msra.mxu0 0.0
        %3238 = vmatprep.subr.mxu0 0.0
        %3239 = vmatpush1.msra.mxu0 0.0
        %3240 = vmatprep.subr.mxu0 0.0
        %3241 = vmatpush1.msra.mxu0 0.0
        %3242 = vmatprep.subr.mxu0 0.0
        %3243 = vmatpush1.msra.mxu0 0.0
        %3244 = vmatprep.subr.mxu0 0.0
        %3245 = vmatpush1.msra.mxu0 0.0
        %3246 = vmatprep.subr.mxu0 0.0
        %3247 = vmatpush1.msra.mxu0 0.0
        %3248 = vmatprep.subr.mxu0 0.0
        %3249 = vmatpush1.msra.mxu0 0.0
        %3250 = vmatprep.subr.mxu0 0.0
        %3251 = vmatpush1.msra.mxu0 0.0
        %3252 = vmatprep.subr.mxu0 0.0
        %3253 = vmatpush1.msra.mxu0 0.0
        %3254 = vmatprep.subr.mxu0 0.0
        %3255 = vmatpush1.msra.mxu0 0.0
        %3256 = vmatprep.subr.mxu0 0.0
        %3257 = vmatpush1.msra.mxu0 0.0
        %3258 = vmatprep.subr.mxu0 0.0
        %3259 = vmatpush1.msra.mxu0 0.0
        %3260 = vmatprep.subr.mxu0 0.0
        %3261 = vmatpush1.msra.mxu0 0.0
        %3262 = vmatprep.subr.mxu0 0.0
        %3263 = vmatpush1.msra.mxu0 0.0
        %3264 = vmatprep.subr.mxu0 0.0
        %3265 = vmatpush1.msra.mxu0 0.0
        %3266 = vmatprep.subr.mxu0 0.0
        %3267 = vmatpush1.msra.mxu0 0.0
        %3268 = vmatprep.subr.mxu0 0.0
        %3269 = vmatpush1.msra.mxu0 0.0
        %3270 = vmatprep.subr.mxu0 0.0
        %3271 = vmatpush1.msra.mxu0 0.0
        %3272 = vmatprep.subr.mxu0 0.0
        %3273 = vmatpush1.msra.mxu0 0.0
        %3274 = vmatprep.subr.mxu0 0.0
        %3275 = vmatpush1.msra.mxu0 0.0
        %3276 = vmatprep.subr.mxu0 0.0
        %3277 = vmatpush1.msra.mxu0 0.0
        %3278 = vmatprep.subr.mxu0 0.0
        %3279 = vmatpush1.msra.mxu0 0.0
        %3280 = vmatprep.subr.mxu0 0.0
        %3281 = vmatpush1.msra.mxu0 0.0
        %3282 = vmatprep.subr.mxu0 0.0
        %3283 = vmatpush1.msra.mxu0 0.0
        %3284 = vmatprep.subr.mxu0 0.0
        %3285 = vmatpush1.msra.mxu0 0.0
        %3286 = vmatprep.subr.mxu0 0.0
        %3287 = vmatpush1.msra.mxu0 0.0
        %3288 = vmatprep.subr.mxu0 0.0
        %3289 = vmatpush1.msra.mxu0 0.0
        %3290 = vmatprep.subr.mxu0 0.0
        %3291 = vmatpush1.msra.mxu0 0.0
        %3292 = vmatprep.subr.mxu0 0.0
        %3293 = vmatpush1.msra.mxu0 0.0
        %3294 = vmatprep.subr.mxu0 0.0
        %3295 = vmatpush1.msra.mxu0 0.0
        %3296 = vmatprep.mubr.f32.mxu0 0.0
        %3297 = vmatmul.mubr.f32.gmra.mrb[0].mxu0 %v3185
        %v3298 = vpop.f32.mrb[0].mxu0
        %v3299 = vadd.f32 0.0, %v3298
        %v3300 = vpop.f32.mrb[0].mxu0
        %3301 = vmatprep.mubr.f32.mxu0 0.0
        %3302 = vmatmul.mubr.f32.gmra.mrb[0].mxu0 %v3188
        %v3303 = vpop.f32.mrb[0].mxu0
        %v3304 = vadd.f32 0.0, %v3303
        %v3305 = vpop.f32.mrb[0].mxu0
        %3306 = vmatprep.mubr.f32.mxu0 0.0
        %3307 = vmatmul.mubr.f32.gmra.mrb[0].mxu0 %v3191
        %v3308 = vpop.f32.mrb[0].mxu0
        %v3309 = vadd.f32 0.0, %v3308
        %v3310 = vpop.f32.mrb[0].mxu0
        %3311 = vmatprep.mubr.f32.mxu0 0.0
        %3312 = vmatmul.mubr.f32.gmra.mrb[0].mxu0 %v3194
        %v3313 = vpop.f32.mrb[0].mxu0
        %v3314 = vadd.f32 0.0, %v3313
        %v3315 = vpop.f32.mrb[0].mxu0
        %3316 = vmatprep.mubr.f32.mxu0 0.0
        %3317 = vmatmul.mubr.f32.gmra.mrb[0].mxu0 %v3197
        %v3318 = vpop.f32.mrb[0].mxu0
        %v3319 = vadd.f32 0.0, %v3318
        %v3320 = vpop.f32.mrb[0].mxu0
        %3321 = vmatprep.mubr.f32.mxu0 0.0
        %3322 = vmatmul.mubr.f32.gmra.mrb[0].mxu0 %v3200
        %v3323 = vpop.f32.mrb[0].mxu0
        %v3324 = vadd.f32 0.0, %v3323
        %v3325 = vpop.f32.mrb[0].mxu0
        %3326 = vmatprep.mubr.f32.mxu0 0.0
        %3327 = vmatmul.mubr.f32.gmra.mrb[0].mxu0 %v3203
        %v3328 = vpop.f32.mrb[0].mxu0
        %v3329 = vadd.f32 0.0, %v3328
        %v3330 = vpop.f32.mrb[0].mxu0
        %3331 = vmatprep.mubr.f32.mxu0 0.0
        %3332 = vmatmul.mubr.f32.gmra.mrb[0].mxu0 %v3206
        %v3333 = vpop.f32.mrb[0].mxu0
        %v3334 = vadd.f32 0.0, %v3333
        %v3335 = vpop.f32.mrb[0].mxu0
        %3336 = vmatprep.mubr.f32.mxu0 0.0
        %3337 = vmatmul.mubr.f32.gmra.mrb[0].mxu0 %v3209
        %v3338 = vpop.f32.mrb[0].mxu0
        %v3339 = vadd.f32 0.0, %v3338
        %v3340 = vpop.f32.mrb[0].mxu0
        %3341 = vmatprep.mubr.f32.mxu0 0.0
        %3342 = vmatmul.mubr.f32.gmra.mrb[0].mxu0 %v3212
        %v3343 = vpop.f32.mrb[0].mxu0
        %v3344 = vadd.f32 0.0, %v3343
        %v3345 = vpop.f32.mrb[0].mxu0
        %3346 = vmatprep.mubr.f32.mxu0 0.0
        %3347 = vmatmul.mubr.f32.gmra.mrb[0].mxu0 %v3215
        %v3348 = vpop.f32.mrb[0].mxu0
        %v3349 = vadd.f32 0.0, %v3348
        %v3350 = vpop.f32.mrb[0].mxu0
        %3351 = vmatprep.mubr.f32.mxu0 0.0
        %3352 = vmatmul.mubr.f32.gmra.mrb[0].mxu0 %v3218
        %v3353 = vpop.f32.mrb[0].mxu0
        %v3354 = vadd.f32 0.0, %v3353
        %v3355 = vpop.f32.mrb[0].mxu0
        %3356 = vmatprep.mubr.f32.mxu0 0.0
        %3357 = vmatmul.mubr.f32.gmra.mrb[0].mxu0 %v3221
        %v3358 = vpop.f32.mrb[0].mxu0
        %v3359 = vadd.f32 0.0, %v3358
        %v3360 = vpop.f32.mrb[0].mxu0
        %3361 = vmatprep.mubr.f32.mxu0 0.0
        %3362 = vmatmul.mubr.f32.gmra.mrb[0].mxu0 %v3224
        %v3363 = vpop.f32.mrb[0].mxu0
        %v3364 = vadd.f32 0.0, %v3363
        %v3365 = vpop.f32.mrb[0].mxu0
        %3366 = vmatprep.mubr.f32.mxu0 0.0
        %3367 = vmatmul.mubr.f32.gmra.mrb[0].mxu0 %v3227
        %v3368 = vpop.f32.mrb[0].mxu0
        %v3369 = vadd.f32 0.0, %v3368
        %v3370 = vpop.f32.mrb[0].mxu0
        %3371 = vmatprep.mubr.f32.mxu0 0.0
        %3372 = vmatmul.mubr.f32.gmra.mrb[0].mxu0 %v3230
        %v3373 = vpop.f32.mrb[0].mxu0
        %v3374 = vadd.f32 0.0, %v3373
        %v3375 = vpop.f32.mrb[0].mxu0
        %3376 = vdwg.mxu0
        %v3377 = vmul.f32 %v3299, 0.25
        %v3378 = vmul.f32 %v3304, 0.25
        %v3379 = vmul.f32 %v3309, 0.25
        %v3380 = vmul.f32 %v3314, 0.25
        %v3381 = vmul.f32 %v3319, 0.25
        %v3382 = vmul.f32 %v3324, 0.25
        %v3383 = vmul.f32 %v3329, 0.25
        %v3384 = vmul.f32 %v3334, 0.25
        %v3385 = vmul.f32 %v3339, 0.25
        %v3386 = vmul.f32 %v3344, 0.25
        %v3387 = vmul.f32 %v3349, 0.25
        %v3388 = vmul.f32 %v3354, 0.25
        %v3389 = vmul.f32 %v3359, 0.25
        %v3390 = vmul.f32 %v3364, 0.25
        %v3391 = vmul.f32 %v3369, 0.25
        %v3392 = vmul.f32 %v3374, 0.25
        %3393 = vmax.xlane.f32.xlu0 %v3377
        %v3394 = vpop.xlane.xlu0 %3393
        %3395 = vmax.xlane.f32.xlu0 %v3378
        %v3396 = vpop.xlane.xlu0 %3395
        %3397 = vmax.xlane.f32.xlu0 %v3379
        %v3398 = vpop.xlane.xlu0 %3397
        %3399 = vmax.xlane.f32.xlu0 %v3380
        %v3400 = vpop.xlane.xlu0 %3399
        %3401 = vmax.xlane.f32.xlu0 %v3381
        %v3402 = vpop.xlane.xlu0 %3401
        %3403 = vmax.xlane.f32.xlu0 %v3382
        %v3404 = vpop.xlane.xlu0 %3403
        %3405 = vmax.xlane.f32.xlu0 %v3383
        %v3406 = vpop.xlane.xlu0 %3405
        %3407 = vmax.xlane.f32.xlu0 %v3384
        %v3408 = vpop.xlane.xlu0 %3407
        %3409 = vmax.xlane.f32.xlu0 %v3385
        %v3410 = vpop.xlane.xlu0 %3409
        %3411 = vmax.xlane.f32.xlu0 %v3386
        %v3412 = vpop.xlane.xlu0 %3411
        %3413 = vmax.xlane.f32.xlu0 %v3387
        %v3414 = vpop.xlane.xlu0 %3413
        %3415 = vmax.xlane.f32.xlu0 %v3388
        %v3416 = vpop.xlane.xlu0 %3415
        %3417 = vmax.xlane.f32.xlu0 %v3389
        %v3418 = vpop.xlane.xlu0 %3417
        %3419 = vmax.xlane.f32.xlu0 %v3390
        %v3420 = vpop.xlane.xlu0 %3419
        %3421 = vmax.xlane.f32.xlu0 %v3391
        %v3422 = vpop.xlane.xlu0 %3421
        %3423 = vmax.xlane.f32.xlu0 %v3392
        %v3424 = vpop.xlane.xlu0 %3423
        %v3425 = vsub.f32 %v3377, %v3394
        %v3426 = vsub.f32 %v3378, %v3396
        %v3427 = vsub.f32 %v3379, %v3398
        %v3428 = vsub.f32 %v3380, %v3400
        %v3429 = vsub.f32 %v3381, %v3402
        %v3430 = vsub.f32 %v3382, %v3404
        %v3431 = vsub.f32 %v3383, %v3406
        %v3432 = vsub.f32 %v3384, %v3408
        %v3433 = vsub.f32 %v3385, %v3410
        %v3434 = vsub.f32 %v3386, %v3412
        %v3435 = vsub.f32 %v3387, %v3414
        %v3436 = vsub.f32 %v3388, %v3416
        %v3437 = vsub.f32 %v3389, %v3418
        %v3438 = vsub.f32 %v3390, %v3420
        %v3439 = vsub.f32 %v3391, %v3422
        %v3440 = vsub.f32 %v3392, %v3424
        %v3441 = vmul.f32 %v3425, 1.442695
        %v3442 = vpow.pop %v3441
        %v3443 = vmul.f32 %v3426, 1.442695
        %v3444 = vpow.pop %v3443
        %v3445 = vmul.f32 %v3427, 1.442695
        %v3446 = vpow.pop %v3445
        %v3447 = vmul.f32 %v3428, 1.442695
        %v3448 = vpow.pop %v3447
        %v3449 = vmul.f32 %v3429, 1.442695
        %v3450 = vpow.pop %v3449
        %v3451 = vmul.f32 %v3430, 1.442695
        %v3452 = vpow.pop %v3451
        %v3453 = vmul.f32 %v3431, 1.442695
        %v3454 = vpow.pop %v3453
        %v3455 = vmul.f32 %v3432, 1.442695
        %v3456 = vpow.pop %v3455
        %v3457 = vmul.f32 %v3433, 1.442695
        %v3458 = vpow.pop %v3457
        %v3459 = vmul.f32 %v3434, 1.442695
        %v3460 = vpow.pop %v3459
        %v3461 = vmul.f32 %v3435, 1.442695
        %v3462 = vpow.pop %v3461
        %v3463 = vmul.f32 %v3436, 1.442695
        %v3464 = vpow.pop %v3463
        %v3465 = vmul.f32 %v3437, 1.442695
        %v3466 = vpow.pop %v3465
        %v3467 = vmul.f32 %v3438, 1.442695
        %v3468 = vpow.pop %v3467
        %v3469 = vmul.f32 %v3439, 1.442695
        %v3470 = vpow.pop %v3469
        %v3471 = vmul.f32 %v3440, 1.442695
        %v3472 = vpow.pop %v3471
        %3473 = vadd.xlane.f32.xlu0 %v3442
        %v3474 = vpop.xlane.xlu0 %3473
        %3475 = vadd.xlane.f32.xlu0 %v3444
        %v3476 = vpop.xlane.xlu0 %3475
        %3477 = vadd.xlane.f32.xlu0 %v3446
        %v3478 = vpop.xlane.xlu0 %3477
        %3479 = vadd.xlane.f32.xlu0 %v3448
        %v3480 = vpop.xlane.xlu0 %3479
        %3481 = vadd.xlane.f32.xlu0 %v3450
        %v3482 = vpop.xlane.xlu0 %3481
        %3483 = vadd.xlane.f32.xlu0 %v3452
        %v3484 = vpop.xlane.xlu0 %3483
        %3485 = vadd.xlane.f32.xlu0 %v3454
        %v3486 = vpop.xlane.xlu0 %3485
        %3487 = vadd.xlane.f32.xlu0 %v3456
        %v3488 = vpop.xlane.xlu0 %3487
        %3489 = vadd.xlane.f32.xlu0 %v3458
        %v3490 = vpop.xlane.xlu0 %3489
        %3491 = vadd.xlane.f32.xlu0 %v3460
        %v3492 = vpop.xlane.xlu0 %3491
        %3493 = vadd.xlane.f32.xlu0 %v3462
        %v3494 = vpop.xlane.xlu0 %3493
        %3495 = vadd.xlane.f32.xlu0 %v3464
        %v3496 = vpop.xlane.xlu0 %3495
        %3497 = vadd.xlane.f32.xlu0 %v3466
        %v3498 = vpop.xlane.xlu0 %3497
        %3499 = vadd.xlane.f32.xlu0 %v3468
        %v3500 = vpop.xlane.xlu0 %3499
        %3501 = vadd.xlane.f32.xlu0 %v3470
        %v3502 = vpop.xlane.xlu0 %3501
        %3503 = vadd.xlane.f32.xlu0 %v3472
        %v3504 = vpop.xlane.xlu0 %3503
        %v3505 = vrcp.pop %v3474
        %v3506 = vrcp.pop %v3476
        %v3507 = vrcp.pop %v3478
        %v3508 = vrcp.pop %v3480
        %v3509 = vrcp.pop %v3482
        %v3510 = vrcp.pop %v3484
        %v3511 = vrcp.pop %v3486
        %v3512 = vrcp.pop %v3488
        %v3513 = vrcp.pop %v3490
        %v3514 = vrcp.pop %v3492
        %v3515 = vrcp.pop %v3494
        %v3516 = vrcp.pop %v3496
        %v3517 = vrcp.pop %v3498
        %v3518 = vrcp.pop %v3500
        %v3519 = vrcp.pop %v3502
        %v3520 = vrcp.pop %v3504
        %v3521 = vmul.f32 %v3442, %v3505
        %v3522 = vmul.f32 %v3444, %v3506
        %v3523 = vmul.f32 %v3446, %v3507
        %v3524 = vmul.f32 %v3448, %v3508
        %v3525 = vmul.f32 %v3450, %v3509
        %v3526 = vmul.f32 %v3452, %v3510
        %v3527 = vmul.f32 %v3454, %v3511
        %v3528 = vmul.f32 %v3456, %v3512
        %v3529 = vmul.f32 %v3458, %v3513
        %v3530 = vmul.f32 %v3460, %v3514
        %v3531 = vmul.f32 %v3462, %v3515
        %v3532 = vmul.f32 %v3464, %v3516
        %v3533 = vmul.f32 %v3466, %v3517
        %v3534 = vmul.f32 %v3468, %v3518
        %v3535 = vmul.f32 %v3470, %v3519
        %v3536 = vmul.f32 %v3472, %v3520
        %3537 = vmatprep.subr.mxu0 0.0
        %3538 = vmatpush1.xpose.msra.mxu0 %v3521
        %3539 = vmatprep.subr.mxu0 0.0
        %3540 = vmatpush1.xpose.msra.mxu0 %v3522
        %3541 = vmatprep.subr.mxu0 0.0
        %3542 = vmatpush1.xpose.msra.mxu0 %v3523
        %3543 = vmatprep.subr.mxu0 0.0
        %3544 = vmatpush1.xpose.msra.mxu0 %v3524
        %3545 = vmatprep.subr.mxu0 0.0
        %3546 = vmatpush1.xpose.msra.mxu0 %v3525
        %3547 = vmatprep.subr.mxu0 0.0
        %3548 = vmatpush1.xpose.msra.mxu0 %v3526
        %3549 = vmatprep.subr.mxu0 0.0
        %3550 = vmatpush1.xpose.msra.mxu0 %v3527
        %3551 = vmatprep.subr.mxu0 0.0
        %3552 = vmatpush1.xpose.msra.mxu0 %v3528
        %3553 = vmatprep.subr.mxu0 0.0
        %3554 = vmatpush1.xpose.msra.mxu0 %v3529
        %3555 = vmatprep.subr.mxu0 0.0
        %3556 = vmatpush1.xpose.msra.mxu0 %v3530
        %3557 = vmatprep.subr.mxu0 0.0
        %3558 = vmatpush1.xpose.msra.mxu0 %v3531
        %3559 = vmatprep.subr.mxu0 0.0
        %3560 = vmatpush1.xpose.msra.mxu0 %v3532
        %3561 = vmatprep.subr.mxu0 0.0
        %3562 = vmatpush1.xpose.msra.mxu0 %v3533
        %3563 = vmatprep.subr.mxu0 0.0
        %3564 = vmatpush1.xpose.msra.mxu0 %v3534
        %3565 = vmatprep.subr.mxu0 0.0
        %3566 = vmatpush1.xpose.msra.mxu0 %v3535
        %3567 = vmatprep.subr.mxu0 0.0
        %3568 = vmatpush1.xpose.msra.mxu0 %v3536
        %3569 = vmatprep.subr.mxu0 0.0
        %3570 = vmatpush1.xpose.msra.mxu0 0.0
        %3571 = vmatprep.subr.mxu0 0.0
        %3572 = vmatpush1.xpose.msra.mxu0 0.0
        %3573 = vmatprep.subr.mxu0 0.0
        %3574 = vmatpush1.xpose.msra.mxu0 0.0
        %3575 = vmatprep.subr.mxu0 0.0
        %3576 = vmatpush1.xpose.msra.mxu0 0.0
        %3577 = vmatprep.subr.mxu0 0.0
        %3578 = vmatpush1.xpose.msra.mxu0 0.0
        %3579 = vmatprep.subr.mxu0 0.0
        %3580 = vmatpush1.xpose.msra.mxu0 0.0
        %3581 = vmatprep.subr.mxu0 0.0
        %3582 = vmatpush1.xpose.msra.mxu0 0.0
        %3583 = vmatprep.subr.mxu0 0.0
        %3584 = vmatpush1.xpose.msra.mxu0 0.0
        %3585 = vmatprep.subr.mxu0 0.0
        %3586 = vmatpush1.xpose.msra.mxu0 0.0
        %3587 = vmatprep.subr.mxu0 0.0
        %3588 = vmatpush1.xpose.msra.mxu0 0.0
        %3589 = vmatprep.subr.mxu0 0.0
        %3590 = vmatpush1.xpose.msra.mxu0 0.0
        %3591 = vmatprep.subr.mxu0 0.0
        %3592 = vmatpush1.xpose.msra.mxu0 0.0
        %3593 = vmatprep.subr.mxu0 0.0
        %3594 = vmatpush1.xpose.msra.mxu0 0.0
        %3595 = vmatprep.subr.mxu0 0.0
        %3596 = vmatpush1.xpose.msra.mxu0 0.0
        %3597 = vmatprep.subr.mxu0 0.0
        %3598 = vmatpush1.xpose.msra.mxu0 0.0
        %3599 = vmatprep.subr.mxu0 0.0
        %3600 = vmatpush1.xpose.msra.mxu0 0.0
        %3601 = vmatprep.mubr.f32.mxu0 0.0
        %3602 = vmatmul.mubr.f32.gmra.mrb[0].mxu0 %v2684
        %v3603 = vpop.f32.mrb[0].mxu0
        %v3604 = vadd.f32 0.0, %v3603
        %v3605 = vpop.f32.mrb[0].mxu0
        %3606 = vmatprep.mubr.f32.mxu0 0.0
        %3607 = vmatmul.mubr.f32.gmra.mrb[0].mxu0 %v2689
        %v3608 = vpop.f32.mrb[0].mxu0
        %v3609 = vadd.f32 0.0, %v3608
        %v3610 = vpop.f32.mrb[0].mxu0
        %3611 = vdwg.mxu0
        %v3612 = vld [vmem:[#allocation2 + $0x180] sm:$0xff]
        %v3613 = vld [vmem:[#allocation2 + $0x188] sm:$0xff]
        %v3614 = vld [vmem:[#allocation2 + $0x190] sm:$0xff]
        %v3615 = vld [vmem:[#allocation2 + $0x198] sm:$0xff]
        %v3616 = vld [vmem:[#allocation2 + $0x4a0] sm:$0xff]
        %v3617 = vld [vmem:[#allocation2 + $0x4a8] sm:$0xff]
        %v3618 = vld [vmem:[#allocation2 + $0x4b0] sm:$0xff]
        %v3619 = vld [vmem:[#allocation2 + $0x4b8] sm:$0xff]
        %v3621 = vsel %vm718, %v3612, 0
        %v3624 = vsel %vm718, %v3613, 0
        %v3627 = vsel %vm718, %v3614, 0
        %v3630 = vsel %vm718, %v3615, 0
        %3632 = vmatprep.subr.mxu0 0.0
        %3633 = vmatpush1.msra.mxu0 %v3144
        %3634 = vmatprep.subr.mxu0 0.0
        %3635 = vmatpush1.msra.mxu0 %v3149
        %3636 = vmatprep.subr.mxu0 0.0
        %3637 = vmatpush1.msra.mxu0 %v3604
        %3638 = vmatprep.subr.mxu0 0.0
        %3639 = vmatpush1.msra.mxu0 %v3609
        %3640 = vmatprep.subr.mxu0 0.0
        %3641 = vmatpush1.msra.mxu0 0.0
        %3642 = vmatprep.subr.mxu0 0.0
        %3643 = vmatpush1.msra.mxu0 0.0
        %3644 = vmatprep.subr.mxu0 0.0
        %3645 = vmatpush1.msra.mxu0 0.0
        %3646 = vmatprep.subr.mxu0 0.0
        %3647 = vmatpush1.msra.mxu0 0.0
        %3648 = vmatprep.subr.mxu0 0.0
        %3649 = vmatpush1.msra.mxu0 0.0
        %3650 = vmatprep.subr.mxu0 0.0
        %3651 = vmatpush1.msra.mxu0 0.0
        %3652 = vmatprep.subr.mxu0 0.0
        %3653 = vmatpush1.msra.mxu0 0.0
        %3654 = vmatprep.subr.mxu0 0.0
        %3655 = vmatpush1.msra.mxu0 0.0
        %3656 = vmatprep.subr.mxu0 0.0
        %3657 = vmatpush1.msra.mxu0 0.0
        %3658 = vmatprep.subr.mxu0 0.0
        %3659 = vmatpush1.msra.mxu0 0.0
        %3660 = vmatprep.subr.mxu0 0.0
        %3661 = vmatpush1.msra.mxu0 0.0
        %3662 = vmatprep.subr.mxu0 0.0
        %3663 = vmatpush1.msra.mxu0 0.0
        %3664 = vmatprep.subr.mxu0 0.0
        %3665 = vmatpush1.msra.mxu0 0.0
        %3666 = vmatprep.subr.mxu0 0.0
        %3667 = vmatpush1.msra.mxu0 0.0
        %3668 = vmatprep.subr.mxu0 0.0
        %3669 = vmatpush1.msra.mxu0 0.0
        %3670 = vmatprep.subr.mxu0 0.0
        %3671 = vmatpush1.msra.mxu0 0.0
        %3672 = vmatprep.subr.mxu0 0.0
        %3673 = vmatpush1.msra.mxu0 0.0
        %3674 = vmatprep.subr.mxu0 0.0
        %3675 = vmatpush1.msra.mxu0 0.0
        %3676 = vmatprep.subr.mxu0 0.0
        %3677 = vmatpush1.msra.mxu0 0.0
        %3678 = vmatprep.subr.mxu0 0.0
        %3679 = vmatpush1.msra.mxu0 0.0
        %3680 = vmatprep.subr.mxu0 0.0
        %3681 = vmatpush1.msra.mxu0 0.0
        %3682 = vmatprep.subr.mxu0 0.0
        %3683 = vmatpush1.msra.mxu0 0.0
        %3684 = vmatprep.subr.mxu0 0.0
        %3685 = vmatpush1.msra.mxu0 0.0
        %3686 = vmatprep.subr.mxu0 0.0
        %3687 = vmatpush1.msra.mxu0 0.0
        %3688 = vmatprep.subr.mxu0 0.0
        %3689 = vmatpush1.msra.mxu0 0.0
        %3690 = vmatprep.subr.mxu0 0.0
        %3691 = vmatpush1.msra.mxu0 0.0
        %3692 = vmatprep.subr.mxu0 0.0
        %3693 = vmatpush1.msra.mxu0 0.0
        %3694 = vmatprep.subr.mxu0 0.0
        %3695 = vmatpush1.msra.mxu0 0.0
        %3696 = vmatprep.mubr.f32.mxu0 0.0
        %3697 = vmatmul.mubr.f32.gmra.mrb[0].mxu0 %v3621
        %v3698 = vpop.f32.mrb[0].mxu0
        %v3699 = vadd.f32 %v3616, %v3698
        %v3700 = vpop.f32.mrb[0].mxu0
        %3701 = vmatprep.mubr.f32.mxu0 0.0
        %3702 = vmatmul.mubr.f32.gmra.mrb[0].mxu0 %v3624
        %v3703 = vpop.f32.mrb[0].mxu0
        %v3704 = vadd.f32 %v3617, %v3703
        %v3705 = vpop.f32.mrb[0].mxu0
        %3706 = vmatprep.mubr.f32.mxu0 0.0
        %3707 = vmatmul.mubr.f32.gmra.mrb[0].mxu0 %v3627
        %v3708 = vpop.f32.mrb[0].mxu0
        %v3709 = vadd.f32 %v3618, %v3708
        %v3710 = vpop.f32.mrb[0].mxu0
        %3711 = vmatprep.mubr.f32.mxu0 0.0
        %3712 = vmatmul.mubr.f32.gmra.mrb[0].mxu0 %v3630
        %v3713 = vpop.f32.mrb[0].mxu0
        %v3714 = vadd.f32 %v3619, %v3713
        %v3715 = vpop.f32.mrb[0].mxu0
        %3716 = vdwg.mxu0
        %v3717 = vadd.f32 %v2503, %v3699
        %v3718 = vadd.f32 %v2504, %v3704
        %v3719 = vadd.f32 %v2505, %v3709
        %v3720 = vadd.f32 %v2506, %v3714
        %v3721 = vadd.f32 %v3717, %v3718
        %v3722 = vadd.f32 %v3721, %v3719
        %v3723 = vadd.f32 %v3722, %v3720
        %v3724 = vrot.slane %v3723, 4
        %v3725 = vadd.f32 %v3723, %v3724
        %v3726 = vrot.slane %v3725, 2
        %v3727 = vadd.f32 %v3725, %v3726
        %v3728 = vrot.slane %v3727, 1
        %v3729 = vadd.f32 %v3727, %v3728
        %v3730 = vmul.f32 %v3729, %v668
        %v3731 = vsub.f32 %v3717, %v3730
        %v3732 = vsub.f32 %v3718, %v3730
        %v3733 = vsub.f32 %v3719, %v3730
        %v3734 = vsub.f32 %v3720, %v3730
        %v3735 = vmul.f32 %v3731, %v3731
        %v3736 = vmul.f32 %v3732, %v3732
        %v3737 = vmul.f32 %v3733, %v3733
        %v3738 = vmul.f32 %v3734, %v3734
        %v3739 = vadd.f32 %v3735, %v3736
        %v3740 = vadd.f32 %v3739, %v3737
        %v3741 = vadd.f32 %v3740, %v3738
        %v3742 = vrot.slane %v3741, 4
        %v3743 = vadd.f32 %v3741, %v3742
        %v3744 = vrot.slane %v3743, 2
        %v3745 = vadd.f32 %v3743, %v3744
        %v3746 = vrot.slane %v3745, 1
        %v3747 = vadd.f32 %v3745, %v3746
        %v3748 = vmul.f32 %v3747, %v668
        %v3749 = vadd.f32 %v3748, 1e-05
        %v3750 = vrsqrt.pop %v3749
        %v3751 = vmul.f32 %v3731, %v3750
        %v3752 = vmul.f32 %v3732, %v3750
        %v3753 = vmul.f32 %v3733, %v3750
        %v3754 = vmul.f32 %v3734, %v3750
        %v3755 = vld [vmem:[#allocation2 + $0x4c0] sm:$0xff]
        %v3756 = vld [vmem:[#allocation2 + $0x4c8] sm:$0xff]
        %v3757 = vld [vmem:[#allocation2 + $0x4d0] sm:$0xff]
        %v3758 = vld [vmem:[#allocation2 + $0x4d8] sm:$0xff]
        %v3759 = vmul.f32 %v3751, %v3755
        %v3760 = vmul.f32 %v3752, %v3756
        %v3761 = vmul.f32 %v3753, %v3757
        %v3762 = vmul.f32 %v3754, %v3758
        %v3763 = vld [vmem:[#allocation2 + $0x4e0] sm:$0xff]
        %v3764 = vld [vmem:[#allocation2 + $0x4e8] sm:$0xff]
        %v3765 = vld [vmem:[#allocation2 + $0x4f0] sm:$0xff]
        %v3766 = vld [vmem:[#allocation2 + $0x4f8] sm:$0xff]
        %v3767 = vadd.f32 %v3759, %v3763
        %v3768 = vadd.f32 %v3760, %v3764
        %v3769 = vadd.f32 %v3761, %v3765
        %v3770 = vadd.f32 %v3762, %v3766
        %v3771 = vld [vmem:[#allocation2 + $0x1a0] sm:$0xff]
        %v3772 = vld [vmem:[#allocation2 + $0x1a8] sm:$0xff]
        %v3773 = vld [vmem:[#allocation2 + $0x1b0] sm:$0xff]
        %v3774 = vld [vmem:[#allocation2 + $0x1b8] sm:$0xff]
        %v3775 = vld [vmem:[#allocation2 + $0x1c0] sm:$0xff]
        %v3776 = vld [vmem:[#allocation2 + $0x1c8] sm:$0xff]
        %v3777 = vld [vmem:[#allocation2 + $0x1d0] sm:$0xff]
        %v3778 = vld [vmem:[#allocation2 + $0x1d8] sm:$0xff]
        %v3779 = vld [vmem:[#allocation2 + $0x500] sm:$0xff]
        %v3780 = vld [vmem:[#allocation2 + $0x508] sm:$0xff]
        %v3781 = vld [vmem:[#allocation2 + $0x510] sm:$0xff]
        %v3782 = vld [vmem:[#allocation2 + $0x518] sm:$0xff]
        %v3783 = vld [vmem:[#allocation2 + $0x520] sm:$0xff]
        %v3784 = vld [vmem:[#allocation2 + $0x528] sm:$0xff]
        %v3785 = vld [vmem:[#allocation2 + $0x530] sm:$0xff]
        %v3786 = vld [vmem:[#allocation2 + $0x538] sm:$0xff]
        %v3788 = vsel %vm718, %v3771, 0
        %v3791 = vsel %vm718, %v3772, 0
        %v3794 = vsel %vm718, %v3773, 0
        %v3797 = vsel %vm718, %v3774, 0
        %v3800 = vsel %vm718, %v3775, 0
        %v3803 = vsel %vm718, %v3776, 0
        %v3806 = vsel %vm718, %v3777, 0
        %v3809 = vsel %vm718, %v3778, 0
        %3811 = vmatprep.subr.mxu0 0.0
        %3812 = vmatpush1.msra.mxu0 %v3767
        %3813 = vmatprep.subr.mxu0 0.0
        %3814 = vmatpush1.msra.mxu0 %v3768
        %3815 = vmatprep.subr.mxu0 0.0
        %3816 = vmatpush1.msra.mxu0 %v3769
        %3817 = vmatprep.subr.mxu0 0.0
        %3818 = vmatpush1.msra.mxu0 %v3770
        %3819 = vmatprep.subr.mxu0 0.0
        %3820 = vmatpush1.msra.mxu0 0.0
        %3821 = vmatprep.subr.mxu0 0.0
        %3822 = vmatpush1.msra.mxu0 0.0
        %3823 = vmatprep.subr.mxu0 0.0
        %3824 = vmatpush1.msra.mxu0 0.0
        %3825 = vmatprep.subr.mxu0 0.0
        %3826 = vmatpush1.msra.mxu0 0.0
        %3827 = vmatprep.subr.mxu0 0.0
        %3828 = vmatpush1.msra.mxu0 0.0
        %3829 = vmatprep.subr.mxu0 0.0
        %3830 = vmatpush1.msra.mxu0 0.0
        %3831 = vmatprep.subr.mxu0 0.0
        %3832 = vmatpush1.msra.mxu0 0.0
        %3833 = vmatprep.subr.mxu0 0.0
        %3834 = vmatpush1.msra.mxu0 0.0
        %3835 = vmatprep.subr.mxu0 0.0
        %3836 = vmatpush1.msra.mxu0 0.0
        %3837 = vmatprep.subr.mxu0 0.0
        %3838 = vmatpush1.msra.mxu0 0.0
        %3839 = vmatprep.subr.mxu0 0.0
        %3840 = vmatpush1.msra.mxu0 0.0
        %3841 = vmatprep.subr.mxu0 0.0
        %3842 = vmatpush1.msra.mxu0 0.0
        %3843 = vmatprep.subr.mxu0 0.0
        %3844 = vmatpush1.msra.mxu0 0.0
        %3845 = vmatprep.subr.mxu0 0.0
        %3846 = vmatpush1.msra.mxu0 0.0
        %3847 = vmatprep.subr.mxu0 0.0
        %3848 = vmatpush1.msra.mxu0 0.0
        %3849 = vmatprep.subr.mxu0 0.0
        %3850 = vmatpush1.msra.mxu0 0.0
        %3851 = vmatprep.subr.mxu0 0.0
        %3852 = vmatpush1.msra.mxu0 0.0
        %3853 = vmatprep.subr.mxu0 0.0
        %3854 = vmatpush1.msra.mxu0 0.0
        %3855 = vmatprep.subr.mxu0 0.0
        %3856 = vmatpush1.msra.mxu0 0.0
        %3857 = vmatprep.subr.mxu0 0.0
        %3858 = vmatpush1.msra.mxu0 0.0
        %3859 = vmatprep.subr.mxu0 0.0
        %3860 = vmatpush1.msra.mxu0 0.0
        %3861 = vmatprep.subr.mxu0 0.0
        %3862 = vmatpush1.msra.mxu0 0.0
        %3863 = vmatprep.subr.mxu0 0.0
        %3864 = vmatpush1.msra.mxu0 0.0
        %3865 = vmatprep.subr.mxu0 0.0
        %3866 = vmatpush1.msra.mxu0 0.0
        %3867 = vmatprep.subr.mxu0 0.0
        %3868 = vmatpush1.msra.mxu0 0.0
        %3869 = vmatprep.subr.mxu0 0.0
        %3870 = vmatpush1.msra.mxu0 0.0
        %3871 = vmatprep.subr.mxu0 0.0
        %3872 = vmatpush1.msra.mxu0 0.0
        %3873 = vmatprep.subr.mxu0 0.0
        %3874 = vmatpush1.msra.mxu0 0.0
        %3875 = vmatprep.mubr.f32.mxu0 0.0
        %3876 = vmatmul.mubr.f32.gmra.mrb[0].mxu0 %v3788
        %v3877 = vpop.f32.mrb[0].mxu0
        %v3878 = vadd.f32 %v3779, %v3877
        %v3879 = vpop.f32.mrb[0].mxu0
        %3880 = vmatprep.mubr.f32.mxu0 0.0
        %3881 = vmatmul.mubr.f32.gmra.mrb[0].mxu0 %v3791
        %v3882 = vpop.f32.mrb[0].mxu0
        %v3883 = vadd.f32 %v3780, %v3882
        %v3884 = vpop.f32.mrb[0].mxu0
        %3885 = vmatprep.mubr.f32.mxu0 0.0
        %3886 = vmatmul.mubr.f32.gmra.mrb[0].mxu0 %v3794
        %v3887 = vpop.f32.mrb[0].mxu0
        %v3888 = vadd.f32 %v3781, %v3887
        %v3889 = vpop.f32.mrb[0].mxu0
        %3890 = vmatprep.mubr.f32.mxu0 0.0
        %3891 = vmatmul.mubr.f32.gmra.mrb[0].mxu0 %v3797
        %v3892 = vpop.f32.mrb[0].mxu0
        %v3893 = vadd.f32 %v3782, %v3892
        %v3894 = vpop.f32.mrb[0].mxu0
        %3895 = vmatprep.mubr.f32.mxu0 0.0
        %3896 = vmatmul.mubr.f32.gmra.mrb[0].mxu0 %v3800
        %v3897 = vpop.f32.mrb[0].mxu0
        %v3898 = vadd.f32 %v3783, %v3897
        %v3899 = vpop.f32.mrb[0].mxu0
        %3900 = vmatprep.mubr.f32.mxu0 0.0
        %3901 = vmatmul.mubr.f32.gmra.mrb[0].mxu0 %v3803
        %v3902 = vpop.f32.mrb[0].mxu0
        %v3903 = vadd.f32 %v3784, %v3902
        %v3904 = vpop.f32.mrb[0].mxu0
        %3905 = vmatprep.mubr.f32.mxu0 0.0
        %3906 = vmatmul.mubr.f32.gmra.mrb[0].mxu0 %v3806
        %v3907 = vpop.f32.mrb[0].mxu0
        %v3908 = vadd.f32 %v3785, %v3907
        %v3909 = vpop.f32.mrb[0].mxu0
        %3910 = vmatprep.mubr.f32.mxu0 0.0
        %3911 = vmatmul.mubr.f32.gmra.mrb[0].mxu0 %v3809
        %v3912 = vpop.f32.mrb[0].mxu0
        %v3913 = vadd.f32 %v3786, %v3912
        %v3914 = vpop.f32.mrb[0].mxu0
        %3915 = vdwg.mxu0
        %v3916 = vmul.f32 %v3878, %v3878
        %v3917 = vmul.f32 %v3883, %v3883
        %v3918 = vmul.f32 %v3888, %v3888
        %v3919 = vmul.f32 %v3893, %v3893
        %v3920 = vmul.f32 %v3898, %v3898
        %v3921 = vmul.f32 %v3903, %v3903
        %v3922 = vmul.f32 %v3908, %v3908
        %v3923 = vmul.f32 %v3913, %v3913
        %v3924 = vmul.f32 %v3878, %v3916
        %v3925 = vmul.f32 %v3883, %v3917
        %v3926 = vmul.f32 %v3888, %v3918
        %v3927 = vmul.f32 %v3893, %v3919
        %v3928 = vmul.f32 %v3898, %v3920
        %v3929 = vmul.f32 %v3903, %v3921
        %v3930 = vmul.f32 %v3908, %v3922
        %v3931 = vmul.f32 %v3913, %v3923
        %v3932 = vmul.f32 %v3924, 0.044715
        %v3933 = vmul.f32 %v3925, 0.044715
        %v3934 = vmul.f32 %v3926, 0.044715
        %v3935 = vmul.f32 %v3927, 0.044715
        %v3936 = vmul.f32 %v3928, 0.044715
        %v3937 = vmul.f32 %v3929, 0.044715
        %v3938 = vmul.f32 %v3930, 0.044715
        %v3939 = vmul.f32 %v3931, 0.044715
        %v3940 = vadd.f32 %v3878, %v3932
        %v3941 = vadd.f32 %v3883, %v3933
        %v3942 = vadd.f32 %v3888, %v3934
        %v3943 = vadd.f32 %v3893, %v3935
        %v3944 = vadd.f32 %v3898, %v3936
        %v3945 = vadd.f32 %v3903, %v3937
        %v3946 = vadd.f32 %v3908, %v3938
        %v3947 = vadd.f32 %v3913, %v3939
        %v3948 = vmul.f32 %v3940, 0.7978846
        %v3949 = vmul.f32 %v3941, 0.7978846
        %v3950 = vmul.f32 %v3942, 0.7978846
        %v3951 = vmul.f32 %v3943, 0.7978846
        %v3952 = vmul.f32 %v3944, 0.7978846
        %v3953 = vmul.f32 %v3945, 0.7978846
        %v3954 = vmul.f32 %v3946, 0.7978846
        %v3955 = vmul.f32 %v3947, 0.7978846
        %v3956 = vtanh.pop %v3948
        %v3957 = vtanh.pop %v3949
        %v3958 = vtanh.pop %v3950
        %v3959 = vtanh.pop %v3951
        %v3960 = vtanh.pop %v3952
        %v3961 = vtanh.pop %v3953
        %v3962 = vtanh.pop %v3954
        %v3963 = vtanh.pop %v3955
        %v3964 = vadd.f32 %v3956, 1.0
        %v3965 = vadd.f32 %v3957, 1.0
        %v3966 = vadd.f32 %v3958, 1.0
        %v3967 = vadd.f32 %v3959, 1.0
        %v3968 = vadd.f32 %v3960, 1.0
        %v3969 = vadd.f32 %v3961, 1.0
        %v3970 = vadd.f32 %v3962, 1.0
        %v3971 = vadd.f32 %v3963, 1.0
        %v3972 = vmul.f32 %v3964, 0.5
        %v3973 = vmul.f32 %v3965, 0.5
        %v3974 = vmul.f32 %v3966, 0.5
        %v3975 = vmul.f32 %v3967, 0.5
        %v3976 = vmul.f32 %v3968, 0.5
        %v3977 = vmul.f32 %v3969, 0.5
        %v3978 = vmul.f32 %v3970, 0.5
        %v3979 = vmul.f32 %v3971, 0.5
        %v3980 = vmul.f32 %v3878, %v3972
        %v3981 = vmul.f32 %v3883, %v3973
        %v3982 = vmul.f32 %v3888, %v3974
        %v3983 = vmul.f32 %v3893, %v3975
        %v3984 = vmul.f32 %v3898, %v3976
        %v3985 = vmul.f32 %v3903, %v3977
        %v3986 = vmul.f32 %v3908, %v3978
        %v3987 = vmul.f32 %v3913, %v3979
        %v3988 = vld [vmem:[#allocation2 + $0x1e0] sm:$0xff]
        %v3989 = vld [vmem:[#allocation2 + $0x1e8] sm:$0xff]
        %v3990 = vld [vmem:[#allocation2 + $0x1f0] sm:$0xff]
        %v3991 = vld [vmem:[#allocation2 + $0x1f8] sm:$0xff]
        %v3992 = vld [vmem:[#allocation2 + $0x540] sm:$0xff]
        %v3993 = vld [vmem:[#allocation2 + $0x548] sm:$0xff]
        %v3994 = vld [vmem:[#allocation2 + $0x550] sm:$0xff]
        %v3995 = vld [vmem:[#allocation2 + $0x558] sm:$0xff]
        %v3997 = vsel %vm2355, %v3988, 0
        %v4000 = vsel %vm2355, %v3989, 0
        %v4003 = vsel %vm2355, %v3990, 0
        %v4006 = vsel %vm2355, %v3991, 0
        %4008 = vmatprep.subr.mxu0 0.0
        %4009 = vmatpush1.msra.mxu0 %v3980
        %4010 = vmatprep.subr.mxu0 0.0
        %4011 = vmatpush1.msra.mxu0 %v3981
        %4012 = vmatprep.subr.mxu0 0.0
        %4013 = vmatpush1.msra.mxu0 %v3982
        %4014 = vmatprep.subr.mxu0 0.0
        %4015 = vmatpush1.msra.mxu0 %v3983
        %4016 = vmatprep.subr.mxu0 0.0
        %4017 = vmatpush1.msra.mxu0 %v3984
        %4018 = vmatprep.subr.mxu0 0.0
        %4019 = vmatpush1.msra.mxu0 %v3985
        %4020 = vmatprep.subr.mxu0 0.0
        %4021 = vmatpush1.msra.mxu0 %v3986
        %4022 = vmatprep.subr.mxu0 0.0
        %4023 = vmatpush1.msra.mxu0 %v3987
        %4024 = vmatprep.subr.mxu0 0.0
        %4025 = vmatpush1.msra.mxu0 0.0
        %4026 = vmatprep.subr.mxu0 0.0
        %4027 = vmatpush1.msra.mxu0 0.0
        %4028 = vmatprep.subr.mxu0 0.0
        %4029 = vmatpush1.msra.mxu0 0.0
        %4030 = vmatprep.subr.mxu0 0.0
        %4031 = vmatpush1.msra.mxu0 0.0
        %4032 = vmatprep.subr.mxu0 0.0
        %4033 = vmatpush1.msra.mxu0 0.0
        %4034 = vmatprep.subr.mxu0 0.0
        %4035 = vmatpush1.msra.mxu0 0.0
        %4036 = vmatprep.subr.mxu0 0.0
        %4037 = vmatpush1.msra.mxu0 0.0
        %4038 = vmatprep.subr.mxu0 0.0
        %4039 = vmatpush1.msra.mxu0 0.0
        %4040 = vmatprep.subr.mxu0 0.0
        %4041 = vmatpush1.msra.mxu0 0.0
        %4042 = vmatprep.subr.mxu0 0.0
        %4043 = vmatpush1.msra.mxu0 0.0
        %4044 = vmatprep.subr.mxu0 0.0
        %4045 = vmatpush1.msra.mxu0 0.0
        %4046 = vmatprep.subr.mxu0 0.0
        %4047 = vmatpush1.msra.mxu0 0.0
        %4048 = vmatprep.subr.mxu0 0.0
        %4049 = vmatpush1.msra.mxu0 0.0
        %4050 = vmatprep.subr.mxu0 0.0
        %4051 = vmatpush1.msra.mxu0 0.0
        %4052 = vmatprep.subr.mxu0 0.0
        %4053 = vmatpush1.msra.mxu0 0.0
        %4054 = vmatprep.subr.mxu0 0.0
        %4055 = vmatpush1.msra.mxu0 0.0
        %4056 = vmatprep.subr.mxu0 0.0
        %4057 = vmatpush1.msra.mxu0 0.0
        %4058 = vmatprep.subr.mxu0 0.0
        %4059 = vmatpush1.msra.mxu0 0.0
        %4060 = vmatprep.subr.mxu0 0.0
        %4061 = vmatpush1.msra.mxu0 0.0
        %4062 = vmatprep.subr.mxu0 0.0
        %4063 = vmatpush1.msra.mxu0 0.0
        %4064 = vmatprep.subr.mxu0 0.0
        %4065 = vmatpush1.msra.mxu0 0.0
        %4066 = vmatprep.subr.mxu0 0.0
        %4067 = vmatpush1.msra.mxu0 0.0
        %4068 = vmatprep.subr.mxu0 0.0
        %4069 = vmatpush1.msra.mxu0 0.0
        %4070 = vmatprep.subr.mxu0 0.0
        %4071 = vmatpush1.msra.mxu0 0.0
        %4072 = vmatprep.mubr.f32.mxu0 0.0
        %4073 = vmatmul.mubr.f32.gmra.mrb[0].mxu0 %v3997
        %v4074 = vpop.f32.mrb[0].mxu0
        %v4075 = vadd.f32 %v3992, %v4074
        %v4076 = vpop.f32.mrb[0].mxu0
        %4077 = vmatprep.mubr.f32.mxu0 0.0
        %4078 = vmatmul.mubr.f32.gmra.mrb[0].mxu0 %v4000
        %v4079 = vpop.f32.mrb[0].mxu0
        %v4080 = vadd.f32 %v3993, %v4079
        %v4081 = vpop.f32.mrb[0].mxu0
        %4082 = vmatprep.mubr.f32.mxu0 0.0
        %4083 = vmatmul.mubr.f32.gmra.mrb[0].mxu0 %v4003
        %v4084 = vpop.f32.mrb[0].mxu0
        %v4085 = vadd.f32 %v3994, %v4084
        %v4086 = vpop.f32.mrb[0].mxu0
        %4087 = vmatprep.mubr.f32.mxu0 0.0
        %4088 = vmatmul.mubr.f32.gmra.mrb[0].mxu0 %v4006
        %v4089 = vpop.f32.mrb[0].mxu0
        %v4090 = vadd.f32 %v3995, %v4089
        %v4091 = vpop.f32.mrb[0].mxu0
        %4092 = vdwg.mxu0
        %v4093 = vadd.f32 %v3767, %v4075
        %v4094 = vadd.f32 %v3768, %v4080
        %v4095 = vadd.f32 %v3769, %v4085
        %v4096 = vadd.f32 %v3770, %v4090
        %v4097 = vadd.f32 %v4093, %v4094
        %v4098 = vadd.f32 %v4097, %v4095
        %v4099 = vadd.f32 %v4098, %v4096
        %v4100 = vrot.slane %v4099, 4
        %v4101 = vadd.f32 %v4099, %v4100
        %v4102 = vrot.slane %v4101, 2
        %v4103 = vadd.f32 %v4101, %v4102
        %v4104 = vrot.slane %v4103, 1
        %v4105 = vadd.f32 %v4103, %v4104
        %v4106 = vmul.f32 %v4105, %v668
        %v4107 = vsub.f32 %v4093, %v4106
        %v4108 = vsub.f32 %v4094, %v4106
        %v4109 = vsub.f32 %v4095, %v4106
        %v4110 = vsub.f32 %v4096, %v4106
        %v4111 = vmul.f32 %v4107, %v4107
        %v4112 = vmul.f32 %v4108, %v4108
        %v4113 = vmul.f32 %v4109, %v4109
        %v4114 = vmul.f32 %v4110, %v4110
        %v4115 = vadd.f32 %v4111, %v4112
        %v4116 = vadd.f32 %v4115, %v4113
        %v4117 = vadd.f32 %v4116, %v4114
        %v4118 = vrot.slane %v4117, 4
        %v4119 = vadd.f32 %v4117, %v4118
        %v4120 = vrot.slane %v4119, 2
        %v4121 = vadd.f32 %v4119, %v4120
        %v4122 = vrot.slane %v4121, 1
        %v4123 = vadd.f32 %v4121, %v4122
        %v4124 = vmul.f32 %v4123, %v668
        %v4125 = vadd.f32 %v4124, 1e-05
        %v4126 = vrsqrt.pop %v4125
        %v4127 = vmul.f32 %v4107, %v4126
        %v4128 = vmul.f32 %v4108, %v4126
        %v4129 = vmul.f32 %v4109, %v4126
        %v4130 = vmul.f32 %v4110, %v4126
        %v4131 = vld [vmem:[#allocation2 + $0x560] sm:$0xff]
        %v4132 = vld [vmem:[#allocation2 + $0x568] sm:$0xff]
        %v4133 = vld [vmem:[#allocation2 + $0x570] sm:$0xff]
        %v4134 = vld [vmem:[#allocation2 + $0x578] sm:$0xff]
        %v4135 = vmul.f32 %v4127, %v4131
        %v4136 = vmul.f32 %v4128, %v4132
        %v4137 = vmul.f32 %v4129, %v4133
        %v4138 = vmul.f32 %v4130, %v4134
        %v4139 = vld [vmem:[#allocation2 + $0x580] sm:$0xff]
        %v4140 = vld [vmem:[#allocation2 + $0x588] sm:$0xff]
        %v4141 = vld [vmem:[#allocation2 + $0x590] sm:$0xff]
        %v4142 = vld [vmem:[#allocation2 + $0x598] sm:$0xff]
        %v4143 = vadd.f32 %v4135, %v4139
        %v4144 = vadd.f32 %v4136, %v4140
        %v4145 = vadd.f32 %v4137, %v4141
        %v4146 = vadd.f32 %v4138, %v4142
        %4147 = vst [vmem:[%s209] sm:$0xff] %v4143
        %4148 = vst [vmem:[%s209 + $0x8] sm:$0xff] %v4144
        %4149 = vst [vmem:[%s209 + $0x10] sm:$0xff] %v4145
        %4150 = vst [vmem:[%s209 + $0x18] sm:$0xff] %v4146
        %4151 = vxpose.xlu0.b32.start [1/16] %v4143, 128
        %4152 = vxpose.xlu0.b32.cont [2/16] %v4144, 128
        %4153 = vxpose.xlu0.b32.cont [3/16] %v4145, 128
        %4154 = vxpose.xlu0.b32.cont [4/16] %v4146, 128
        %4155 = vxpose.xlu0.b32.cont [5/16] 0.0, 128
        %4156 = vxpose.xlu0.b32.cont [6/16] 0.0, 128
        %4157 = vxpose.xlu0.b32.cont [7/16] 0.0, 128
        %4158 = vxpose.xlu0.b32.cont [8/16] 0.0, 128
        %4159 = vxpose.xlu0.b32.cont [9/16] 0.0, 128
        %4160 = vxpose.xlu0.b32.cont [10/16] 0.0, 128
        %4161 = vxpose.xlu0.b32.cont [11/16] 0.0, 128
        %4162 = vxpose.xlu0.b32.cont [12/16] 0.0, 128
        %4163 = vxpose.xlu0.b32.cont [13/16] 0.0, 128
        %4164 = vxpose.xlu0.b32.cont [14/16] 0.0, 128
        %4165 = vxpose.xlu0.b32.cont [15/16] 0.0, 128
        %4166 = vxpose.xlu0.b32.end [16/16] 0.0, 128
        %v4167 = vpop.trf.xlu0
        %v4168 = vpop.trf.xlu0
        %v4169 = vpop.trf.xlu0
        %v4170 = vpop.trf.xlu0
        %v4171 = vpop.trf.xlu0
        %v4172 = vpop.trf.xlu0
        %v4173 = vpop.trf.xlu0
        %v4174 = vpop.trf.xlu0
        %v4175 = vpop.trf.xlu0
        %v4176 = vpop.trf.xlu0
        %v4177 = vpop.trf.xlu0
        %v4178 = vpop.trf.xlu0
        %v4179 = vpop.trf.xlu0
        %v4180 = vpop.trf.xlu0
        %v4181 = vpop.trf.xlu0
        %v4182 = vpop.trf.xlu0
        %v4184 = vsel %vm718, %v4167, 0
        %v4187 = vsel %vm718, %v4168, 0
        %v4190 = vsel %vm718, %v4169, 0
        %v4193 = vsel %vm718, %v4170, 0
        %v4196 = vsel %vm718, %v4171, 0
        %v4199 = vsel %vm718, %v4172, 0
        %v4202 = vsel %vm718, %v4173, 0
        %v4205 = vsel %vm718, %v4174, 0
        %v4208 = vsel %vm718, %v4175, 0
        %v4211 = vsel %vm718, %v4176, 0
        %v4214 = vsel %vm718, %v4177, 0
        %v4217 = vsel %vm718, %v4178, 0
        %v4220 = vsel %vm718, %v4179, 0
        %v4223 = vsel %vm718, %v4180, 0
        %v4226 = vsel %vm718, %v4181, 0
        %v4229 = vsel %vm718, %v4182, 0
        %4231 = vmatprep.subr.mxu0 0.0
        %4232 = vmatpush1.msra.mxu0 %v4143
        %4233 = vmatprep.subr.mxu0 0.0
        %4234 = vmatpush1.msra.mxu0 %v4144
        %4235 = vmatprep.subr.mxu0 0.0
        %4236 = vmatpush1.msra.mxu0 %v4145
        %4237 = vmatprep.subr.mxu0 0.0
        %4238 = vmatpush1.msra.mxu0 %v4146
        %4239 = vmatprep.subr.mxu0 0.0
        %4240 = vmatpush1.msra.mxu0 0.0
        %4241 = vmatprep.subr.mxu0 0.0
        %4242 = vmatpush1.msra.mxu0 0.0
        %4243 = vmatprep.subr.mxu0 0.0
        %4244 = vmatpush1.msra.mxu0 0.0
        %4245 = vmatprep.subr.mxu0 0.0
        %4246 = vmatpush1.msra.mxu0 0.0
        %4247 = vmatprep.subr.mxu0 0.0
        %4248 = vmatpush1.msra.mxu0 0.0
        %4249 = vmatprep.subr.mxu0 0.0
        %4250 = vmatpush1.msra.mxu0 0.0
        %4251 = vmatprep.subr.mxu0 0.0
        %4252 = vmatpush1.msra.mxu0 0.0
        %4253 = vmatprep.subr.mxu0 0.0
        %4254 = vmatpush1.msra.mxu0 0.0
        %4255 = vmatprep.subr.mxu0 0.0
        %4256 = vmatpush1.msra.mxu0 0.0
        %4257 = vmatprep.subr.mxu0 0.0
        %4258 = vmatpush1.msra.mxu0 0.0
        %4259 = vmatprep.subr.mxu0 0.0
        %4260 = vmatpush1.msra.mxu0 0.0
        %4261 = vmatprep.subr.mxu0 0.0
        %4262 = vmatpush1.msra.mxu0 0.0
        %4263 = vmatprep.subr.mxu0 0.0
        %4264 = vmatpush1.msra.mxu0 0.0
        %4265 = vmatprep.subr.mxu0 0.0
        %4266 = vmatpush1.msra.mxu0 0.0
        %4267 = vmatprep.subr.mxu0 0.0
        %4268 = vmatpush1.msra.mxu0 0.0
        %4269 = vmatprep.subr.mxu0 0.0
        %4270 = vmatpush1.msra.mxu0 0.0
        %4271 = vmatprep.subr.mxu0 0.0
        %4272 = vmatpush1.msra.mxu0 0.0
        %4273 = vmatprep.subr.mxu0 0.0
        %4274 = vmatpush1.msra.mxu0 0.0
        %4275 = vmatprep.subr.mxu0 0.0
        %4276 = vmatpush1.msra.mxu0 0.0
        %4277 = vmatprep.subr.mxu0 0.0
        %4278 = vmatpush1.msra.mxu0 0.0
        %4279 = vmatprep.subr.mxu0 0.0
        %4280 = vmatpush1.msra.mxu0 0.0
        %4281 = vmatprep.subr.mxu0 0.0
        %4282 = vmatpush1.msra.mxu0 0.0
        %4283 = vmatprep.subr.mxu0 0.0
        %4284 = vmatpush1.msra.mxu0 0.0
        %4285 = vmatprep.subr.mxu0 0.0
        %4286 = vmatpush1.msra.mxu0 0.0
        %4287 = vmatprep.subr.mxu0 0.0
        %4288 = vmatpush1.msra.mxu0 0.0
        %4289 = vmatprep.subr.mxu0 0.0
        %4290 = vmatpush1.msra.mxu0 0.0
        %4291 = vmatprep.subr.mxu0 0.0
        %4292 = vmatpush1.msra.mxu0 0.0
        %4293 = vmatprep.subr.mxu0 0.0
        %4294 = vmatpush1.msra.mxu0 0.0
        %4295 = vmatprep.mubr.f32.mxu0 0.0
        %4296 = vmatmul.mubr.f32.gmra.mrb[0].mxu0 %v4184
        %v4297 = vpop.f32.mrb[0].mxu0
        %v4298 = vadd.f32 0.0, %v4297
        %v4299 = vpop.f32.mrb[0].mxu0
        %4300 = vmatprep.mubr.f32.mxu0 0.0
        %4301 = vmatmul.mubr.f32.gmra.mrb[0].mxu0 %v4187
        %v4302 = vpop.f32.mrb[0].mxu0
        %v4303 = vadd.f32 0.0, %v4302
        %v4304 = vpop.f32.mrb[0].mxu0
        %4305 = vmatprep.mubr.f32.mxu0 0.0
        %4306 = vmatmul.mubr.f32.gmra.mrb[0].mxu0 %v4190
        %v4307 = vpop.f32.mrb[0].mxu0
        %v4308 = vadd.f32 0.0, %v4307
        %v4309 = vpop.f32.mrb[0].mxu0
        %4310 = vmatprep.mubr.f32.mxu0 0.0
        %4311 = vmatmul.mubr.f32.gmra.mrb[0].mxu0 %v4193
        %v4312 = vpop.f32.mrb[0].mxu0
        %v4313 = vadd.f32 0.0, %v4312
        %v4314 = vpop.f32.mrb[0].mxu0
        %4315 = vmatprep.mubr.f32.mxu0 0.0
        %4316 = vmatmul.mubr.f32.gmra.mrb[0].mxu0 %v4196
        %v4317 = vpop.f32.mrb[0].mxu0
        %v4318 = vadd.f32 0.0, %v4317
        %v4319 = vpop.f32.mrb[0].mxu0
        %4320 = vmatprep.mubr.f32.mxu0 0.0
        %4321 = vmatmul.mubr.f32.gmra.mrb[0].mxu0 %v4199
        %v4322 = vpop.f32.mrb[0].mxu0
        %v4323 = vadd.f32 0.0, %v4322
        %v4324 = vpop.f32.mrb[0].mxu0
        %4325 = vmatprep.mubr.f32.mxu0 0.0
        %4326 = vmatmul.mubr.f32.gmra.mrb[0].mxu0 %v4202
        %v4327 = vpop.f32.mrb[0].mxu0
        %v4328 = vadd.f32 0.0, %v4327
        %v4329 = vpop.f32.mrb[0].mxu0
        %4330 = vmatprep.mubr.f32.mxu0 0.0
        %4331 = vmatmul.mubr.f32.gmra.mrb[0].mxu0 %v4205
        %v4332 = vpop.f32.mrb[0].mxu0
        %v4333 = vadd.f32 0.0, %v4332
        %v4334 = vpop.f32.mrb[0].mxu0
        %4335 = vmatprep.mubr.f32.mxu0 0.0
        %4336 = vmatmul.mubr.f32.gmra.mrb[0].mxu0 %v4208
        %v4337 = vpop.f32.mrb[0].mxu0
        %v4338 = vadd.f32 0.0, %v4337
        %v4339 = vpop.f32.mrb[0].mxu0
        %4340 = vmatprep.mubr.f32.mxu0 0.0
        %4341 = vmatmul.mubr.f32.gmra.mrb[0].mxu0 %v4211
        %v4342 = vpop.f32.mrb[0].mxu0
        %v4343 = vadd.f32 0.0, %v4342
        %v4344 = vpop.f32.mrb[0].mxu0
        %4345 = vmatprep.mubr.f32.mxu0 0.0
        %4346 = vmatmul.mubr.f32.gmra.mrb[0].mxu0 %v4214
        %v4347 = vpop.f32.mrb[0].mxu0
        %v4348 = vadd.f32 0.0, %v4347
        %v4349 = vpop.f32.mrb[0].mxu0
        %4350 = vmatprep.mubr.f32.mxu0 0.0
        %4351 = vmatmul.mubr.f32.gmra.mrb[0].mxu0 %v4217
        %v4352 = vpop.f32.mrb[0].mxu0
        %v4353 = vadd.f32 0.0, %v4352
        %v4354 = vpop.f32.mrb[0].mxu0
        %4355 = vmatprep.mubr.f32.mxu0 0.0
        %4356 = vmatmul.mubr.f32.gmra.mrb[0].mxu0 %v4220
        %v4357 = vpop.f32.mrb[0].mxu0
        %v4358 = vadd.f32 0.0, %v4357
        %v4359 = vpop.f32.mrb[0].mxu0
        %4360 = vmatprep.mubr.f32.mxu0 0.0
        %4361 = vmatmul.mubr.f32.gmra.mrb[0].mxu0 %v4223
        %v4362 = vpop.f32.mrb[0].mxu0
        %v4363 = vadd.f32 0.0, %v4362
        %v4364 = vpop.f32.mrb[0].mxu0
        %4365 = vmatprep.mubr.f32.mxu0 0.0
        %4366 = vmatmul.mubr.f32.gmra.mrb[0].mxu0 %v4226
        %v4367 = vpop.f32.mrb[0].mxu0
        %v4368 = vadd.f32 0.0, %v4367
        %v4369 = vpop.f32.mrb[0].mxu0
        %4370 = vmatprep.mubr.f32.mxu0 0.0
        %4371 = vmatmul.mubr.f32.gmra.mrb[0].mxu0 %v4229
        %v4372 = vpop.f32.mrb[0].mxu0
        %v4373 = vadd.f32 0.0, %v4372
        %v4374 = vpop.f32.mrb[0].mxu0
        %4375 = vdwg.mxu0
        %4376 = vst [vmem:[%s216] sm:$0xff] %v4298
        %4377 = vst [vmem:[%s216 + $0x8] sm:$0xff] %v4303
        %4378 = vst [vmem:[%s216 + $0x10] sm:$0xff] %v4308
        %4379 = vst [vmem:[%s216 + $0x18] sm:$0xff] %v4313
        %4380 = vst [vmem:[%s216 + $0x20] sm:$0xff] %v4318
        %4381 = vst [vmem:[%s216 + $0x28] sm:$0xff] %v4323
        %4382 = vst [vmem:[%s216 + $0x30] sm:$0xff] %v4328
        %4383 = vst [vmem:[%s216 + $0x38] sm:$0xff] %v4333
        %4384 = vst [vmem:[%s216 + $0x40] sm:$0xff] %v4338
        %4385 = vst [vmem:[%s216 + $0x48] sm:$0xff] %v4343
        %4386 = vst [vmem:[%s216 + $0x50] sm:$0xff] %v4348
        %4387 = vst [vmem:[%s216 + $0x58] sm:$0xff] %v4353
        %4388 = vst [vmem:[%s216 + $0x60] sm:$0xff] %v4358
        %4389 = vst [vmem:[%s216 + $0x68] sm:$0xff] %v4363
        %4390 = vst [vmem:[%s216 + $0x70] sm:$0xff] %v4368
        %4391 = vst [vmem:[%s216 + $0x78] sm:$0xff] %v4373
        %v4392 = vld [vmem:[#allocation2 + $0x210] sm:$0xff]
        %v4393 = vld [vmem:[#allocation2 + $0x218] sm:$0xff]
        %4394 = vmatprep.subr.mxu0 0.0
        %4395 = vmatpush1.xpose.msra.mxu0 %v4143
        %4396 = vmatprep.subr.mxu0 0.0
        %4397 = vmatpush1.xpose.msra.mxu0 %v4144
        %4398 = vmatprep.subr.mxu0 0.0
        %4399 = vmatpush1.xpose.msra.mxu0 %v4145
        %4400 = vmatprep.subr.mxu0 0.0
        %4401 = vmatpush1.xpose.msra.mxu0 %v4146
        %4402 = vmatprep.subr.mxu0 0.0
        %4403 = vmatpush1.xpose.msra.mxu0 0.0
        %4404 = vmatprep.subr.mxu0 0.0
        %4405 = vmatpush1.xpose.msra.mxu0 0.0
        %4406 = vmatprep.subr.mxu0 0.0
        %4407 = vmatpush1.xpose.msra.mxu0 0.0
        %4408 = vmatprep.subr.mxu0 0.0
        %4409 = vmatpush1.xpose.msra.mxu0 0.0
        %4410 = vmatprep.subr.mxu0 0.0
        %4411 = vmatpush1.xpose.msra.mxu0 0.0
        %4412 = vmatprep.subr.mxu0 0.0
        %4413 = vmatpush1.xpose.msra.mxu0 0.0
        %4414 = vmatprep.subr.mxu0 0.0
        %4415 = vmatpush1.xpose.msra.mxu0 0.0
        %4416 = vmatprep.subr.mxu0 0.0
        %4417 = vmatpush1.xpose.msra.mxu0 0.0
        %4418 = vmatprep.subr.mxu0 0.0
        %4419 = vmatpush1.xpose.msra.mxu0 0.0
        %4420 = vmatprep.subr.mxu0 0.0
        %4421 = vmatpush1.xpose.msra.mxu0 0.0
        %4422 = vmatprep.subr.mxu0 0.0
        %4423 = vmatpush1.xpose.msra.mxu0 0.0
        %4424 = vmatprep.subr.mxu0 0.0
        %4425 = vmatpush1.xpose.msra.mxu0 0.0
        %4426 = vmatprep.subr.mxu0 0.0
        %4427 = vmatpush1.xpose.msra.mxu0 0.0
        %4428 = vmatprep.subr.mxu0 0.0
        %4429 = vmatpush1.xpose.msra.mxu0 0.0
        %4430 = vmatprep.subr.mxu0 0.0
        %4431 = vmatpush1.xpose.msra.mxu0 0.0
        %4432 = vmatprep.subr.mxu0 0.0
        %4433 = vmatpush1.xpose.msra.mxu0 0.0
        %4434 = vmatprep.subr.mxu0 0.0
        %4435 = vmatpush1.xpose.msra.mxu0 0.0
        %4436 = vmatprep.subr.mxu0 0.0
        %4437 = vmatpush1.xpose.msra.mxu0 0.0
        %4438 = vmatprep.subr.mxu0 0.0
        %4439 = vmatpush1.xpose.msra.mxu0 0.0
        %4440 = vmatprep.subr.mxu0 0.0
        %4441 = vmatpush1.xpose.msra.mxu0 0.0
        %4442 = vmatprep.subr.mxu0 0.0
        %4443 = vmatpush1.xpose.msra.mxu0 0.0
        %4444 = vmatprep.subr.mxu0 0.0
        %4445 = vmatpush1.xpose.msra.mxu0 0.0
        %4446 = vmatprep.subr.mxu0 0.0
        %4447 = vmatpush1.xpose.msra.mxu0 0.0
        %4448 = vmatprep.subr.mxu0 0.0
        %4449 = vmatpush1.xpose.msra.mxu0 0.0
        %4450 = vmatprep.subr.mxu0 0.0
        %4451 = vmatpush1.xpose.msra.mxu0 0.0
        %4452 = vmatprep.subr.mxu0 0.0
        %4453 = vmatpush1.xpose.msra.mxu0 0.0
        %4454 = vmatprep.subr.mxu0 0.0
        %4455 = vmatpush1.xpose.msra.mxu0 0.0
        %4456 = vmatprep.subr.mxu0 0.0
        %4457 = vmatpush1.xpose.msra.mxu0 0.0
        %4458 = vmatprep.mubr.f32.mxu0 0.0
        %4459 = vmatmul.mubr.f32.gmra.mrb[0].mxu0 %v4392
        %v4460 = vpop.f32.mrb[0].mxu0
        %v4461 = vadd.f32 0.0, %v4460
        %v4462 = vpop.f32.mrb[0].mxu0
        %4463 = vmatprep.mubr.f32.mxu0 0.0
        %4464 = vmatmul.mubr.f32.gmra.mrb[0].mxu0 %v4393
        %v4465 = vpop.f32.mrb[0].mxu0
        %v4466 = vadd.f32 0.0, %v4465
        %v4467 = vpop.f32.mrb[0].mxu0
        %4468 = vdwg.mxu0
        %v4469 = vld [vmem:[#allocation2 + $0x200] sm:$0xff]
        %v4470 = vld [vmem:[#allocation2 + $0x208] sm:$0xff]
        %v4472 = vsel %vm718, %v4469, 0
        %v4475 = vsel %vm718, %v4470, 0
        %v4478 = vsel %vm718, %v4461, 0
        %v4481 = vsel %vm718, %v4466, 0
        %4483 = vmatprep.subr.mxu0 0.0
        %4484 = vmatpush1.xpose.msra.mxu0 %v4478
        %4485 = vmatprep.subr.mxu0 0.0
        %4486 = vmatpush1.xpose.msra.mxu0 %v4481
        %4487 = vmatprep.subr.mxu0 0.0
        %4488 = vmatpush1.xpose.msra.mxu0 0.0
        %4489 = vmatprep.subr.mxu0 0.0
        %4490 = vmatpush1.xpose.msra.mxu0 0.0
        %4491 = vmatprep.subr.mxu0 0.0
        %4492 = vmatpush1.xpose.msra.mxu0 0.0
        %4493 = vmatprep.subr.mxu0 0.0
        %4494 = vmatpush1.xpose.msra.mxu0 0.0
        %4495 = vmatprep.subr.mxu0 0.0
        %4496 = vmatpush1.xpose.msra.mxu0 0.0
        %4497 = vmatprep.subr.mxu0 0.0
        %4498 = vmatpush1.xpose.msra.mxu0 0.0
        %4499 = vmatprep.subr.mxu0 0.0
        %4500 = vmatpush1.xpose.msra.mxu0 0.0
        %4501 = vmatprep.subr.mxu0 0.0
        %4502 = vmatpush1.xpose.msra.mxu0 0.0
        %4503 = vmatprep.subr.mxu0 0.0
        %4504 = vmatpush1.xpose.msra.mxu0 0.0
        %4505 = vmatprep.subr.mxu0 0.0
        %4506 = vmatpush1.xpose.msra.mxu0 0.0
        %4507 = vmatprep.subr.mxu0 0.0
        %4508 = vmatpush1.xpose.msra.mxu0 0.0
        %4509 = vmatprep.subr.mxu0 0.0
        %4510 = vmatpush1.xpose.msra.mxu0 0.0
        %4511 = vmatprep.subr.mxu0 0.0
        %4512 = vmatpush1.xpose.msra.mxu0 0.0
        %4513 = vmatprep.subr.mxu0 0.0
        %4514 = vmatpush1.xpose.msra.mxu0 0.0
        %4515 = vmatprep.subr.mxu0 0.0
        %4516 = vmatpush1.xpose.msra.mxu0 0.0
        %4517 = vmatprep.subr.mxu0 0.0
        %4518 = vmatpush1.xpose.msra.mxu0 0.0
        %4519 = vmatprep.subr.mxu0 0.0
        %4520 = vmatpush1.xpose.msra.mxu0 0.0
        %4521 = vmatprep.subr.mxu0 0.0
        %4522 = vmatpush1.xpose.msra.mxu0 0.0
        %4523 = vmatprep.subr.mxu0 0.0
        %4524 = vmatpush1.xpose.msra.mxu0 0.0
        %4525 = vmatprep.subr.mxu0 0.0
        %4526 = vmatpush1.xpose.msra.mxu0 0.0
        %4527 = vmatprep.subr.mxu0 0.0
        %4528 = vmatpush1.xpose.msra.mxu0 0.0
        %4529 = vmatprep.subr.mxu0 0.0
        %4530 = vmatpush1.xpose.msra.mxu0 0.0
        %4531 = vmatprep.subr.mxu0 0.0
        %4532 = vmatpush1.xpose.msra.mxu0 0.0
        %4533 = vmatprep.subr.mxu0 0.0
        %4534 = vmatpush1.xpose.msra.mxu0 0.0
        %4535 = vmatprep.subr.mxu0 0.0
        %4536 = vmatpush1.xpose.msra.mxu0 0.0
        %4537 = vmatprep.subr.mxu0 0.0
        %4538 = vmatpush1.xpose.msra.mxu0 0.0
        %4539 = vmatprep.subr.mxu0 0.0
        %4540 = vmatpush1.xpose.msra.mxu0 0.0
        %4541 = vmatprep.subr.mxu0 0.0
        %4542 = vmatpush1.xpose.msra.mxu0 0.0
        %4543 = vmatprep.subr.mxu0 0.0
        %4544 = vmatpush1.xpose.msra.mxu0 0.0
        %4545 = vmatprep.subr.mxu0 0.0
        %4546 = vmatpush1.xpose.msra.mxu0 0.0
        %4547 = vmatprep.mubr.f32.mxu0 0.0
        %4548 = vmatmul.mubr.f32.gmra.mrb[0].mxu0 %v4472
        %v4549 = vpop.f32.mrb[0].mxu0
        %v4550 = vadd.f32 0.0, %v4549
        %v4551 = vpop.f32.mrb[0].mxu0
        %4552 = vmatprep.mubr.f32.mxu0 0.0
        %4553 = vmatmul.mubr.f32.gmra.mrb[0].mxu0 %v4475
        %v4554 = vpop.f32.mrb[0].mxu0
        %v4555 = vadd.f32 0.0, %v4554
        %v4556 = vpop.f32.mrb[0].mxu0
        %4557 = vdwg.mxu0
        %v4558 = vmul.f32 %v4469, %v4469
        %v4559 = vmul.f32 %v4470, %v4470
        %v4560 = vsel %vm718, %v4558, 0.0
        %4561 = vadd.xlane.f32.xlu0 %v4560
        %v4562 = vpop.xlane.xlu0 %4561
        %v4563 = vsel %vm718, %v4559, 0.0
        %4564 = vadd.xlane.f32.xlu0 %v4563
        %v4565 = vpop.xlane.xlu0 %4564
        %v4566 = vmul.f32 %v4550, 2.0
        %v4567 = vmul.f32 %v4555, 2.0
        %v4568 = vsub.f32 %v4562, %v4566
        %v4569 = vsub.f32 %v4565, %v4567
        %v4570 = vsel %vm246, %v4568, inf
        %v4571 = vsel %vm246, %v4569, inf
        %v4572 = vmin.f32 %v4570, %v4571
        %v4573 = vrot.slane %v4572, 4
        %v4574 = vmin.f32 %v4572, %v4573
        %v4575 = vrot.slane %v4574, 2
        %v4576 = vmin.f32 %v4574, %v4575
        %v4577 = vrot.slane %v4576, 1
        %v4578 = vmin.f32 %v4576, %v4577
        %v4579 = vlaneseq
        %v4580 = vshrl.u32 %v4579, 7
        %v4581 = vadd.s32 %v4580, 8
        %vm4582 = vcmp.eq.f32.partialorder %v4568, %v4578
        %vm4583 = vcmp.eq.f32.partialorder %v4569, %v4578
        %v4584 = vsel %vm4582, %v4580, 16
        %v4585 = vsel %vm4583, %v4581, 16
        %v4586 = vsel %vm246, %v4584, 2147483647
        %v4587 = vsel %vm246, %v4585, 2147483647
        %vm4588 = vcmp.lt.s32.totalorder %v4586, %v4587
        %v4589 = vsel %vm4588, %v4586, %v4587
        %v4590 = vrot.slane %v4589, 4
        %vm4591 = vcmp.lt.s32.totalorder %v4589, %v4590
        %v4592 = vsel %vm4591, %v4589, %v4590
        %v4593 = vrot.slane %v4592, 2
        %vm4594 = vcmp.lt.s32.totalorder %v4592, %v4593
        %v4595 = vsel %vm4594, %v4592, %v4593
        %v4596 = vrot.slane %v4595, 1
        %vm4597 = vcmp.lt.s32.totalorder %v4595, %v4596
        %v4598 = vsel %vm4597, %v4595, %v4596
        %vm4599 = vcmask 122880
        %4600 = vst.msk [vmem:[%s229] sm:$0x1] %vm4599, %v4598
        %s4601 = sand.u32 %s78, 1
        %s4602 = scalar_lea.sflag [#allocation4], %s4601
        %s4603 = sand.u32 %s78, 1
        %s4604 = smul.addr %s4603, 32
        %s4605 = scalar_lea.vmem [#allocation5], %s4604
        %s4606 = sand.u32 %s104, 1
        %s4607 = scalar_lea.sflag [#allocation7], %s4606
        %s4608 = sand.u32 %s104, 1
        %s4609 = smul.addr %s4608, 128
        %s4610 = scalar_lea.vmem [#allocation6], %s4609
        %p4611 = scmp.lt.s32.totalorder %s23, 1
        %s4612 = scalar_select %p4611, %s23, 1
        %s4613 = scalar_lea.vmem %s4, %s4612
        // Predicated region
        $region33: #{hubert_forward.1} parent=27 // pred_check
          %p4614 = pneg %p88
        $region34: #{hubert_forward.1} parent=27 // pred_check_branch
          %4616 = sbr.rel (%p4614) target = $region36
        $region35: #{hubert_forward.1} parent=27 // pred_region
          %s4618 = ssub.s32 512, 512
          %4619 = vsyncadd %s4602, %s4618
          %s4620 = smul.addr %s23, 4
          %s4621 = smul.addr %s4620, 128
          %s4622 = scalar_lea.hbm %s2, %s4621
          %s4623 = sshll.u32 %s4605, 4
          %s4624 = int_to_ptr.vmem [resolvable:$true] %s4623
          %4629 = dma.vmem_to_hbm [thread:$0]  %s4624, 512, %s4622, %s4602, 128, 128, 8
        $region36: #{hubert_forward.1} parent=27 // pred_fallthru
          _
        // Predicated region
        $region37: #{hubert_forward.1} parent=27 // pred_check
          %p4630 = pneg %p114
        $region38: #{hubert_forward.1} parent=27 // pred_check_branch
          %4632 = sbr.rel (%p4630) target = $region40
        $region39: #{hubert_forward.1} parent=27 // pred_region
          %s4634 = ssub.s32 2048, 2048
          %4635 = vsyncadd %s4607, %s4634
          %s4636 = smul.addr %s23, 16
          %s4637 = smul.addr %s4636, 128
          %s4638 = scalar_lea.hbm %s3, %s4637
          %s4639 = sshll.u32 %s4610, 4
          %s4640 = int_to_ptr.vmem [resolvable:$true] %s4639
          %4645 = dma.vmem_to_hbm [thread:$0]  %s4640, 2048, %s4638, %s4607, 128, 128, 8
        $region40: #{hubert_forward.1} parent=27 // pred_fallthru
          _
        // Predicated region
        $region41: #{hubert_forward.1} parent=27 // pred_check
          %p4646 = pneg %p140
        $region42: #{hubert_forward.1} parent=27 // pred_check_branch
          %4648 = sbr.rel (%p4646) target = $region44
        $region43: #{hubert_forward.1} parent=27 // pred_region
          _
        $region44: #{hubert_forward.1} parent=27 // pred_fallthru
          _
      $region28: #{hubert_forward.1} parent=5 // pred_fallthru
        _
      %p4649 = scmp.le.s32.totalorder 2, %s18
      // Predicated region
      $region45: #{hubert_forward.1} parent=5 // pred_check
        %p4650 = pneg %p4649
      $region46: #{hubert_forward.1} parent=5 // pred_check_branch
        %4652 = sbr.rel (%p4650) target = $region48
      $region47: #{hubert_forward.1} parent=5 // pred_region
        %s4653 = ssub.s32 %s18, 2
        // Predicated region
        $region49: #{hubert_forward.1} parent=47 // pred_check
          %p4654 = pneg %p94
        $region50: #{hubert_forward.1} parent=47 // pred_check_branch
          %4656 = sbr.rel (%p4654) target = $region52
        $region51: #{hubert_forward.1} parent=47 // pred_region
          %s4657 = sand.u32 %s79, 1
          %s4658 = scalar_lea.sflag [#allocation4], %s4657
          %s4659 = sand.u32 %s79, 1
          %s4660 = smul.addr %s4659, 32
          %s4661 = scalar_lea.vmem [#allocation5], %s4660
          %4662 = dma.done %s4658, 512
        $region52: #{hubert_forward.1} parent=47 // pred_fallthru
          _
        // Predicated region
        $region53: #{hubert_forward.1} parent=47 // pred_check
          %p4663 = pneg %p120
        $region54: #{hubert_forward.1} parent=47 // pred_check_branch
          %4665 = sbr.rel (%p4663) target = $region56
        $region55: #{hubert_forward.1} parent=47 // pred_region
          %s4666 = sand.u32 %s105, 1
          %s4667 = scalar_lea.sflag [#allocation7], %s4666
          %s4668 = sand.u32 %s105, 1
          %s4669 = smul.addr %s4668, 128
          %s4670 = scalar_lea.vmem [#allocation6], %s4669
          %4671 = dma.done %s4667, 2048
        $region56: #{hubert_forward.1} parent=47 // pred_fallthru
          _
        // Predicated region
        $region57: #{hubert_forward.1} parent=47 // pred_check
          %p4672 = pneg %p146
        $region58: #{hubert_forward.1} parent=47 // pred_check_branch
          %4674 = sbr.rel (%p4672) target = $region60
        $region59: #{hubert_forward.1} parent=47 // pred_region
          %p4675 = scmp.lt.s32.totalorder %s24, 1
          %s4676 = scalar_select %p4675, %s24, 1
          %s4677 = scalar_lea.vmem %s4, %s4676
        $region60: #{hubert_forward.1} parent=47 // pred_fallthru
          _
      $region48: #{hubert_forward.1} parent=5 // pred_fallthru
        _
    $region6: #{hubert_forward.1} parent=1 // loop_footer
      %s22 = sadd.s32 1, %s18
    $region7: #{hubert_forward.1} parent=1 // loop_footer_branch
      %17 = sbr.rel target = $region3
    $region8: #{hubert_forward.1} parent=1 // loop_exit
      _
    %4678 = vsyncpa [#allocation3], 1
    %s4679 = scalar_lea.sflag [#allocation3], 1
    %4680 = vsyncpa %s4679, 1
    %4681 = vsyncpa [#allocation4], 1
    %s4682 = scalar_lea.sflag [#allocation4], 1
    %4683 = vsyncpa %s4682, 1
    %4684 = vsyncpa [#allocation7], 1
    %s4685 = scalar_lea.sflag [#allocation7], 1
    %4686 = vsyncpa %s4685, 1

</llo_original>
